<compile_context>
chip_gen: v6e
topology: v6e:2x2x1
jax: 0.10.0
libtpu: 0.0.40
codegen_flags: <defaults>
</compile_context>

<pallas_src>
import jax
import jax.numpy as jnp
from jax import lax
from jax.experimental import pallas as pl
from jax.experimental.pallas import tpu as pltpu

EPS = 1e-12
INV_SQRT2 = 0.7071067811865476
SQRT2 = 1.4142135623730951


def _fused_kernel(x1_ref, x2_ref, w_ref, bias_ref, o_ref):
    # x1_ref, x2_ref: (tm, H) f32 ; w_ref: (H, N) bf16 (gamma pre-folded)
    # bias_ref: (1, N) f32 (beta@W + bias pre-folded) ; o_ref: (tm, N) f32
    x = x1_ref[...] + x2_ref[...]                                 # add

    mean = jnp.mean(x, axis=-1, keepdims=True)                    # layernorm (no affine;
    xc = x - mean                                                 #  affine folded into W/b)
    var = jnp.mean(xc * xc, axis=-1, keepdims=True)
    xhat = xc * lax.rsqrt(var + EPS)

    y = jnp.dot(xhat.astype(jnp.bfloat16), w_ref[...],            # bf16 MXU, f32 accum
                preferred_element_type=jnp.float32)
    y = y + bias_ref[...]

    o_ref[...] = 0.5 * y * (1.0 + lax.erf(y * INV_SQRT2))         # exact gelu


def _default_tm():
    # v7x has 2 TensorCores -> grid of 2 balances them; single-TC chips
    # prefer one big step (fewer pipeline-step overheads).
    try:
        kind = jax.devices()[0].device_kind.lower()
    except Exception:
        return 192
    if "v7" in kind or "7x" in kind:
        return 192
    return 384


def fused_add_ln_linear_gelu(x399, x365, gamma, beta, weight, bias, *, tm=None):
    """x399, x365: (B, S, H); gamma/beta: (H,); weight: (H, N); bias: (N,)."""
    B, S, H = x399.shape
    N = weight.shape[1]
    x1 = x399.reshape(B * S, H)
    x2 = x365.reshape(B * S, H)

    # Fold LayerNorm affine into the linear layer (wrapper-side, f32 math,
    # then cast the weight to bf16 for the MXU / halved DMA).
    w_folded = (gamma[:, None] * weight).astype(jnp.bfloat16)      # (H, N) bf16
    bias_folded = (beta @ weight + bias).reshape(1, N)             # (1, N) f32

    M = B * S
    if tm is None:
        tm = _default_tm()
    if M % tm != 0:
        tm = 128 if M % 128 == 0 else M
    assert M % tm == 0, "rows must tile evenly for this simple kernel"

    out = pl.pallas_call(
        _fused_kernel,
        out_shape=jax.ShapeDtypeStruct((M, N), jnp.float32),
        grid_spec=pltpu.PrefetchScalarGridSpec(
            num_scalar_prefetch=0,
            grid=(M // tm,),
            in_specs=[
                pl.BlockSpec((tm, H), lambda i: (i, 0)),   # x399 rows
                pl.BlockSpec((tm, H), lambda i: (i, 0)),   # x365 rows
                pl.BlockSpec((H, N), lambda i: (0, 0)),    # folded weight (bf16)
                pl.BlockSpec((1, N), lambda i: (0, 0)),    # folded bias
            ],
            out_specs=pl.BlockSpec((tm, N), lambda i: (i, 0)),
        ),
        compiler_params=pltpu.CompilerParams(
            dimension_semantics=("parallel",),
        ),
    )(x1, x2, w_folded, bias_folded)

    return out.reshape(B, S, N)


def reference(x399, x365, gamma, beta, weight, bias):
    # Pure f32, unfused, exact-erf GELU: the true module semantics.
    x = x399 + x365
    mean = jnp.mean(x, axis=-1, keepdims=True)
    var = jnp.mean((x - mean) ** 2, axis=-1, keepdims=True)
    xn = (x - mean) / jnp.sqrt(var + EPS) * gamma + beta
    y = xn @ weight + bias
    return 0.5 * y * (1.0 + lax.erf(y / SQRT2))


if __name__ == "__main__":
    B, S, H, N = 1, 384, 256, 1024
    key = jax.random.PRNGKey(0)
    k1, k2, k3, k4, k5, k6 = jax.random.split(key, 6)

    # module inputs
    x399 = jax.random.normal(k1, (B, S, H), dtype=jnp.float32)
    x365 = jax.random.normal(k2, (B, S, H), dtype=jnp.float32)

    # deterministic synthetic parameters
    gamma = 1.0 + 0.1 * jax.random.normal(k3, (H,), dtype=jnp.float32)
    beta = 0.1 * jax.random.normal(k4, (H,), dtype=jnp.float32)
    weight = 0.02 * jax.random.normal(k5, (H, N), dtype=jnp.float32)  # (in, out)
    bias = 0.02 * jax.random.normal(k6, (N,), dtype=jnp.float32)

    out = fused_add_ln_linear_gelu(x399, x365, gamma, beta, weight, bias)
    out = jax.block_until_ready(out)

    ref = reference(x399, x365, gamma, beta, weight, bias)
    assert out.shape == (B, S, N)
    # bf16 matmul (K=256) -> loosen tolerance vs the pure-f32 reference.
    assert jnp.allclose(out, ref, atol=2e-2, rtol=2e-2), "mismatch vs reference"

    print("KERNEL_OK")
</pallas_src>

<mosaic_0001>
module attributes {stable_mosaic.version = 11 : i64} {
  func.func @_fused_kernel(%arg0: i32, %arg1: memref<384x256xf32, #tpu.memory_space<vmem>>, %arg2: memref<384x256xf32, #tpu.memory_space<vmem>>, %arg3: memref<256x1024xbf16, #tpu.memory_space<vmem>>, %arg4: memref<1x1024xf32, #tpu.memory_space<vmem>>, %arg5: memref<384x1024xf32, #tpu.memory_space<vmem>>) attributes {dimension_semantics = [#tpu.dimension_semantics<parallel>], iteration_bounds = array<i64: 1>, scalar_prefetch = 0 : i64, scratch_operands = 0 : i64, tpu.core_type = #tpu.core_type<tc>, window_params = [{transform_indices = @transform_0, window_bounds = array<i64: 384, 256>}, {transform_indices = @transform_1, window_bounds = array<i64: 384, 256>}, {pipeline_mode = #tpu.pipeline_mode<synchronous>, transform_indices = @transform_2, window_bounds = array<i64: 256, 1024>}, {pipeline_mode = #tpu.pipeline_mode<synchronous>, transform_indices = @transform_3, window_bounds = array<i64: 1, 1024>}, {transform_indices = @transform_4, window_bounds = array<i64: 384, 1024>}]} {
    %c0 = arith.constant 0 : index
    %c0_0 = arith.constant 0 : index
    %0 = vector.load %arg1[%c0, %c0_0] : memref<384x256xf32, #tpu.memory_space<vmem>>, vector<384x256xf32>
    %c0_1 = arith.constant 0 : index
    %c0_2 = arith.constant 0 : index
    %1 = vector.load %arg2[%c0_1, %c0_2] : memref<384x256xf32, #tpu.memory_space<vmem>>, vector<384x256xf32>
    %2 = arith.addf %0, %1 : vector<384x256xf32>
    %cst = arith.constant dense<0.000000e+00> : vector<384xf32>
    %3 = vector.multi_reduction <add>, %2, %cst [1] : vector<384x256xf32> to vector<384xf32>
    %4 = vector.shape_cast %3 : vector<384xf32> to vector<384x1xf32>
    %cst_3 = arith.constant 2.560000e+02 : f32
    %5 = vector.broadcast %cst_3 : f32 to vector<384x1xf32>
    %6 = arith.divf %4, %5 : vector<384x1xf32>
    %7 = vector.broadcast %6 : vector<384x1xf32> to vector<384x256xf32>
    %8 = arith.subf %2, %7 : vector<384x256xf32>
    %9 = arith.mulf %8, %8 : vector<384x256xf32>
    %cst_4 = arith.constant dense<0.000000e+00> : vector<384xf32>
    %10 = vector.multi_reduction <add>, %9, %cst_4 [1] : vector<384x256xf32> to vector<384xf32>
    %11 = vector.shape_cast %10 : vector<384xf32> to vector<384x1xf32>
    %cst_5 = arith.constant 2.560000e+02 : f32
    %12 = vector.broadcast %cst_5 : f32 to vector<384x1xf32>
    %13 = arith.divf %11, %12 : vector<384x1xf32>
    %cst_6 = arith.constant 9.99999996E-13 : f32
    %14 = vector.broadcast %cst_6 : f32 to vector<384x1xf32>
    %15 = arith.addf %13, %14 : vector<384x1xf32>
    %16 = math.rsqrt %15 : vector<384x1xf32>
    %17 = vector.broadcast %16 : vector<384x1xf32> to vector<384x256xf32>
    %18 = arith.mulf %8, %17 : vector<384x256xf32>
    %19 = arith.truncf %18 : vector<384x256xf32> to vector<384x256xbf16>
    %c0_7 = arith.constant 0 : index
    %c0_8 = arith.constant 0 : index
    %20 = vector.load %arg3[%c0_7, %c0_8] : memref<256x1024xbf16, #tpu.memory_space<vmem>>, vector<256x1024xbf16>
    %cst_9 = arith.constant dense<0.000000e+00> : vector<384x1024xf32>
    %21 = tpu.matmul %19, %20, %cst_9 {dimension_numbers = #tpu.dot_dimension_numbers<[1], [0], [0], [1], [0, 0, 1, 1], [], []>} : vector<384x256xbf16>, vector<256x1024xbf16>, vector<384x1024xf32> -> vector<384x1024xf32>
    %c0_10 = arith.constant 0 : index
    %c0_11 = arith.constant 0 : index
    %22 = vector.load %arg4[%c0_10, %c0_11] : memref<1x1024xf32, #tpu.memory_space<vmem>>, vector<1x1024xf32>
    %23 = vector.broadcast %22 : vector<1x1024xf32> to vector<384x1024xf32>
    %24 = arith.addf %21, %23 : vector<384x1024xf32>
    %cst_12 = arith.constant 5.000000e-01 : f32
    %25 = vector.broadcast %cst_12 : f32 to vector<384x1024xf32>
    %26 = arith.mulf %25, %24 : vector<384x1024xf32>
    %cst_13 = arith.constant 0.707106769 : f32
    %27 = vector.broadcast %cst_13 : f32 to vector<384x1024xf32>
    %28 = arith.mulf %24, %27 : vector<384x1024xf32>
    %29 = math.erf %28 : vector<384x1024xf32>
    %cst_14 = arith.constant 1.000000e+00 : f32
    %30 = vector.broadcast %cst_14 : f32 to vector<384x1024xf32>
    %31 = arith.addf %30, %29 : vector<384x1024xf32>
    %32 = arith.mulf %26, %31 : vector<384x1024xf32>
    %c0_15 = arith.constant 0 : index
    %c0_16 = arith.constant 0 : index
    %33 = vector.load %arg5[%c0_15, %c0_16] : memref<384x1024xf32, #tpu.memory_space<vmem>>, vector<384x1024xf32>
    tpu.vector_store %arg5[%c0_15, %c0_16], %32 {strides = array<i32>} : memref<384x1024xf32, #tpu.memory_space<vmem>>, vector<384x1024xf32>,
    return
  }
  func.func @transform_0(%arg0: i32) -> (i32, i32) {
    %c0_i32 = arith.constant 0 : i32
    %c0_i32_0 = arith.constant 0 : i32
    return %arg0, %c0_i32 : i32, i32
  }
  func.func @transform_1(%arg0: i32) -> (i32, i32) {
    %c0_i32 = arith.constant 0 : i32
    %c0_i32_0 = arith.constant 0 : i32
    return %arg0, %c0_i32 : i32, i32
  }
  func.func @transform_2(%arg0: i32) -> (i32, i32) {
    %c0_i32 = arith.constant 0 : i32
    %c0_i32_0 = arith.constant 0 : i32
    %c0_i32_1 = arith.constant 0 : i32
    return %c0_i32, %c0_i32_0 : i32, i32
  }
  func.func @transform_3(%arg0: i32) -> (i32, i32) {
    %c0_i32 = arith.constant 0 : i32
    %c0_i32_0 = arith.constant 0 : i32
    %c0_i32_1 = arith.constant 0 : i32
    return %c0_i32, %c0_i32_0 : i32, i32
  }
  func.func @transform_4(%arg0: i32) -> (i32, i32) {
    %c0_i32 = arith.constant 0 : i32
    %c0_i32_0 = arith.constant 0 : i32
    return %arg0, %c0_i32 : i32, i32
  }
}

</mosaic_0001>

<llo_original>
// kernel: tpu_custom_call.1
$region0: #{tpu_custom_call.1}
  #allocation0 [shape = 'u32[]', space=smem, size = 0x4, offset = 0x4, fixed_abs, tag = 'smem constant byte address 0x4 - core index']
  #allocation1 [shape = 'u32[144,128]{1,0:T(1,128)}', space=vmem, size = 0x12000, scoped, tag = 'internal scratch']
  %s0 = inlined_call_operand.hbm [shape: f32[384,256], index: 0, kind: input, shape index: {}]
  %s1 = inlined_call_operand.hbm [shape: f32[384,256], index: 1, kind: input, shape index: {}]
  %s2 = inlined_call_operand.hbm [shape: bf16[256,1024], index: 2, kind: input, shape index: {}]
  %s3 = inlined_call_operand.hbm [shape: f32[1,1024], index: 3, kind: input, shape index: {}]
  %s4 = inlined_call_operand.hbm [shape: f32[384,1024], index: 4, kind: output, shape index: {}]
  %s5 = sld [smem:[#allocation0]]
  $region42: #{tpu_custom_call.1} parent=0
    _
  %s7 = ssub.s32 1, %s5
  %s8 = scalar_select 0, %s7, %s5
  $region1: #{tpu_custom_call.1} parent=0
    #allocation2 [shape = 'u8[393216]{0}', space=vmem, size = 0x60000, scoped, tag = 'input window, operand 0, single buffered']
    #allocation3 [shape = 's32[1]{0}', space=sflag, size = 0x4, scoped, tag = 'scoped memory for tpu_custom_call.1']
    #allocation4 [shape = 's32[1]{0}', space=sflag, size = 0x4, scoped, tag = 'scoped memory for tpu_custom_call.1']
    #allocation5 [shape = 'u8[393216]{0}', space=vmem, size = 0x60000, scoped, tag = 'input window, operand 1, single buffered']
    #allocation6 [shape = 's32[1]{0}', space=sflag, size = 0x4, scoped, tag = 'scoped memory for tpu_custom_call.1']
    #allocation7 [shape = 'u8[524288]{0}', space=vmem, size = 0x80000, scoped, tag = 'input window, operand 2, single buffered']
    #allocation8 [shape = 'u8[4096]{0}', space=vmem, size = 0x1000, scoped, tag = 'input window, operand 3, single buffered']
    #allocation9 [shape = 's32[1]{0}', space=sflag, size = 0x4, scoped, tag = 'scoped memory for tpu_custom_call.1']
    #allocation10 [shape = 'u8[1572864]{0}', space=vmem, size = 0x180000, scoped, tag = 'output window, operand 0, single buffered']
    %9 = vsyncpa [#allocation3], 0
    %10 = vsyncpa [#allocation6], 0
    %11 = vsyncpa [#allocation9], 0
    %12 = vsyncpa [#allocation4], 0
    // Predicated region
    $region2: #{tpu_custom_call.1} parent=1 // pred_check
      _
    $region3: #{tpu_custom_call.1} parent=1 // pred_check_branch
      %14 = sbr.rel (0) target = $region5
    $region4: #{tpu_custom_call.1} parent=1 // pred_region
      %s16 = ssub.s32 12288, 12288
      %17 = vsyncadd [#allocation3], %s16
      %s18 = sshll.u32 [#allocation2], 4
      %s19 = int_to_ptr.vmem [resolvable:$true] %s18
      %24 = dma.hbm_to_vmem [thread:$0]  %s0, 12288, %s19, [#allocation3], 256, 256, 16
    $region5: #{tpu_custom_call.1} parent=1 // pred_fallthru
      _
    // Predicated region
    $region6: #{tpu_custom_call.1} parent=1 // pred_check
      _
    $region7: #{tpu_custom_call.1} parent=1 // pred_check_branch
      %26 = sbr.rel (0) target = $region9
    $region8: #{tpu_custom_call.1} parent=1 // pred_region
      %s28 = ssub.s32 12288, 12288
      %29 = vsyncadd [#allocation6], %s28
      %s30 = sshll.u32 [#allocation5], 4
      %s31 = int_to_ptr.vmem [resolvable:$true] %s30
      %36 = dma.hbm_to_vmem [thread:$0]  %s1, 12288, %s31, [#allocation6], 256, 256, 16
    $region9: #{tpu_custom_call.1} parent=1 // pred_fallthru
      _
    // Predicated region
    $region10: #{tpu_custom_call.1} parent=1 // pred_check
      _
    $region11: #{tpu_custom_call.1} parent=1 // pred_check_branch
      %38 = sbr.rel (0) target = $region13
    $region12: #{tpu_custom_call.1} parent=1 // pred_region
      %s40 = ssub.s32 16384, 16384
      %41 = vsyncadd [#allocation6], %s40
      %s42 = sshll.u32 [#allocation7], 4
      %s43 = int_to_ptr.vmem [resolvable:$true] %s42
      %48 = dma.hbm_to_vmem [thread:$0]  %s2, 16384, %s43, [#allocation6], 512, 512, 32
    $region13: #{tpu_custom_call.1} parent=1 // pred_fallthru
      _
    // Predicated region
    $region14: #{tpu_custom_call.1} parent=1 // pred_check
      _
    $region15: #{tpu_custom_call.1} parent=1 // pred_check_branch
      %50 = sbr.rel (0) target = $region17
    $region16: #{tpu_custom_call.1} parent=1 // pred_region
      %s52 = ssub.s32 128, 128
      %53 = vsyncadd [#allocation9], %s52
      %s55 = sshll.u32 [#allocation8], 4
      %s56 = int_to_ptr.vmem [resolvable:$true] %s55
      %58 = dma.hbm_to_vmem [thread:$0]  %s3, 128, %s56, [#allocation9]
    $region17: #{tpu_custom_call.1} parent=1 // pred_fallthru
      _
    // Predicated region
    $region18: #{tpu_custom_call.1} parent=1 // pred_check
      _
    $region19: #{tpu_custom_call.1} parent=1 // pred_check_branch
      %60 = sbr.rel (0) target = $region21
    $region20: #{tpu_custom_call.1} parent=1 // pred_region
      %61 = dma.done [#allocation3], 12288
    $region21: #{tpu_custom_call.1} parent=1 // pred_fallthru
      _
    // Predicated region
    $region22: #{tpu_custom_call.1} parent=1 // pred_check
      _
    $region23: #{tpu_custom_call.1} parent=1 // pred_check_branch
      %63 = sbr.rel (0) target = $region25
    $region24: #{tpu_custom_call.1} parent=1 // pred_region
      %64 = dma.done [#allocation6], 12288
    $region25: #{tpu_custom_call.1} parent=1 // pred_fallthru
      _
    // Predicated region
    $region26: #{tpu_custom_call.1} parent=1 // pred_check
      _
    $region27: #{tpu_custom_call.1} parent=1 // pred_check_branch
      %66 = sbr.rel (0) target = $region29
    $region28: #{tpu_custom_call.1} parent=1 // pred_region
      %67 = dma.done [#allocation6], 16384
    $region29: #{tpu_custom_call.1} parent=1 // pred_fallthru
      _
    // Predicated region
    $region30: #{tpu_custom_call.1} parent=1 // pred_check
      _
    $region31: #{tpu_custom_call.1} parent=1 // pred_check_branch
      %69 = sbr.rel (0) target = $region33
    $region32: #{tpu_custom_call.1} parent=1 // pred_region
      %70 = dma.done [#allocation9], 128
    $region33: #{tpu_custom_call.1} parent=1 // pred_fallthru
      _
    %v71 = vld [vmem:[#allocation2] sm:$0xff]
    %v72 = vld [vmem:[#allocation2 + $0x8] sm:$0xff]
    %v73 = vld [vmem:[#allocation2 + $0x10] sm:$0xff]
    %v74 = vld [vmem:[#allocation2 + $0x18] sm:$0xff]
    %v75 = vld [vmem:[#allocation2 + $0x20] sm:$0xff]
    %v76 = vld [vmem:[#allocation2 + $0x28] sm:$0xff]
    %v77 = vld [vmem:[#allocation2 + $0x30] sm:$0xff]
    %v78 = vld [vmem:[#allocation2 + $0x38] sm:$0xff]
    %v79 = vld [vmem:[#allocation2 + $0x40] sm:$0xff]
    %v80 = vld [vmem:[#allocation2 + $0x48] sm:$0xff]
    %v81 = vld [vmem:[#allocation2 + $0x50] sm:$0xff]
    %v82 = vld [vmem:[#allocation2 + $0x58] sm:$0xff]
    %v83 = vld [vmem:[#allocation2 + $0x60] sm:$0xff]
    %v84 = vld [vmem:[#allocation2 + $0x68] sm:$0xff]
    %v85 = vld [vmem:[#allocation2 + $0x70] sm:$0xff]
    %v86 = vld [vmem:[#allocation2 + $0x78] sm:$0xff]
    %v87 = vld [vmem:[#allocation2 + $0x80] sm:$0xff]
    %v88 = vld [vmem:[#allocation2 + $0x88] sm:$0xff]
    %v89 = vld [vmem:[#allocation2 + $0x90] sm:$0xff]
    %v90 = vld [vmem:[#allocation2 + $0x98] sm:$0xff]
    %v91 = vld [vmem:[#allocation2 + $0xa0] sm:$0xff]
    %v92 = vld [vmem:[#allocation2 + $0xa8] sm:$0xff]
    %v93 = vld [vmem:[#allocation2 + $0xb0] sm:$0xff]
    %v94 = vld [vmem:[#allocation2 + $0xb8] sm:$0xff]
    %v95 = vld [vmem:[#allocation2 + $0xc0] sm:$0xff]
    %v96 = vld [vmem:[#allocation2 + $0xc8] sm:$0xff]
    %v97 = vld [vmem:[#allocation2 + $0xd0] sm:$0xff]
    %v98 = vld [vmem:[#allocation2 + $0xd8] sm:$0xff]
    %v99 = vld [vmem:[#allocation2 + $0xe0] sm:$0xff]
    %v100 = vld [vmem:[#allocation2 + $0xe8] sm:$0xff]
    %v101 = vld [vmem:[#allocation2 + $0xf0] sm:$0xff]
    %v102 = vld [vmem:[#allocation2 + $0xf8] sm:$0xff]
    %v103 = vld [vmem:[#allocation2 + $0x100] sm:$0xff]
    %v104 = vld [vmem:[#allocation2 + $0x108] sm:$0xff]
    %v105 = vld [vmem:[#allocation2 + $0x110] sm:$0xff]
    %v106 = vld [vmem:[#allocation2 + $0x118] sm:$0xff]
    %v107 = vld [vmem:[#allocation2 + $0x120] sm:$0xff]
    %v108 = vld [vmem:[#allocation2 + $0x128] sm:$0xff]
    %v109 = vld [vmem:[#allocation2 + $0x130] sm:$0xff]
    %v110 = vld [vmem:[#allocation2 + $0x138] sm:$0xff]
    %v111 = vld [vmem:[#allocation2 + $0x140] sm:$0xff]
    %v112 = vld [vmem:[#allocation2 + $0x148] sm:$0xff]
    %v113 = vld [vmem:[#allocation2 + $0x150] sm:$0xff]
    %v114 = vld [vmem:[#allocation2 + $0x158] sm:$0xff]
    %v115 = vld [vmem:[#allocation2 + $0x160] sm:$0xff]
    %v116 = vld [vmem:[#allocation2 + $0x168] sm:$0xff]
    %v117 = vld [vmem:[#allocation2 + $0x170] sm:$0xff]
    %v118 = vld [vmem:[#allocation2 + $0x178] sm:$0xff]
    %v119 = vld [vmem:[#allocation2 + $0x180] sm:$0xff]
    %v120 = vld [vmem:[#allocation2 + $0x188] sm:$0xff]
    %v121 = vld [vmem:[#allocation2 + $0x190] sm:$0xff]
    %v122 = vld [vmem:[#allocation2 + $0x198] sm:$0xff]
    %v123 = vld [vmem:[#allocation2 + $0x1a0] sm:$0xff]
    %v124 = vld [vmem:[#allocation2 + $0x1a8] sm:$0xff]
    %v125 = vld [vmem:[#allocation2 + $0x1b0] sm:$0xff]
    %v126 = vld [vmem:[#allocation2 + $0x1b8] sm:$0xff]
    %v127 = vld [vmem:[#allocation2 + $0x1c0] sm:$0xff]
    %v128 = vld [vmem:[#allocation2 + $0x1c8] sm:$0xff]
    %v129 = vld [vmem:[#allocation2 + $0x1d0] sm:$0xff]
    %v130 = vld [vmem:[#allocation2 + $0x1d8] sm:$0xff]
    %v131 = vld [vmem:[#allocation2 + $0x1e0] sm:$0xff]
    %v132 = vld [vmem:[#allocation2 + $0x1e8] sm:$0xff]
    %v133 = vld [vmem:[#allocation2 + $0x1f0] sm:$0xff]
    %v134 = vld [vmem:[#allocation2 + $0x1f8] sm:$0xff]
    %v135 = vld [vmem:[#allocation2 + $0x200] sm:$0xff]
    %v136 = vld [vmem:[#allocation2 + $0x208] sm:$0xff]
    %v137 = vld [vmem:[#allocation2 + $0x210] sm:$0xff]
    %v138 = vld [vmem:[#allocation2 + $0x218] sm:$0xff]
    %v139 = vld [vmem:[#allocation2 + $0x220] sm:$0xff]
    %v140 = vld [vmem:[#allocation2 + $0x228] sm:$0xff]
    %v141 = vld [vmem:[#allocation2 + $0x230] sm:$0xff]
    %v142 = vld [vmem:[#allocation2 + $0x238] sm:$0xff]
    %v143 = vld [vmem:[#allocation2 + $0x240] sm:$0xff]
    %v144 = vld [vmem:[#allocation2 + $0x248] sm:$0xff]
    %v145 = vld [vmem:[#allocation2 + $0x250] sm:$0xff]
    %v146 = vld [vmem:[#allocation2 + $0x258] sm:$0xff]
    %v147 = vld [vmem:[#allocation2 + $0x260] sm:$0xff]
    %v148 = vld [vmem:[#allocation2 + $0x268] sm:$0xff]
    %v149 = vld [vmem:[#allocation2 + $0x270] sm:$0xff]
    %v150 = vld [vmem:[#allocation2 + $0x278] sm:$0xff]
    %v151 = vld [vmem:[#allocation2 + $0x280] sm:$0xff]
    %v152 = vld [vmem:[#allocation2 + $0x288] sm:$0xff]
    %v153 = vld [vmem:[#allocation2 + $0x290] sm:$0xff]
    %v154 = vld [vmem:[#allocation2 + $0x298] sm:$0xff]
    %v155 = vld [vmem:[#allocation2 + $0x2a0] sm:$0xff]
    %v156 = vld [vmem:[#allocation2 + $0x2a8] sm:$0xff]
    %v157 = vld [vmem:[#allocation2 + $0x2b0] sm:$0xff]
    %v158 = vld [vmem:[#allocation2 + $0x2b8] sm:$0xff]
    %v159 = vld [vmem:[#allocation2 + $0x2c0] sm:$0xff]
    %v160 = vld [vmem:[#allocation2 + $0x2c8] sm:$0xff]
    %v161 = vld [vmem:[#allocation2 + $0x2d0] sm:$0xff]
    %v162 = vld [vmem:[#allocation2 + $0x2d8] sm:$0xff]
    %v163 = vld [vmem:[#allocation2 + $0x2e0] sm:$0xff]
    %v164 = vld [vmem:[#allocation2 + $0x2e8] sm:$0xff]
    %v165 = vld [vmem:[#allocation2 + $0x2f0] sm:$0xff]
    %v166 = vld [vmem:[#allocation2 + $0x2f8] sm:$0xff]
    %v167 = vld [vmem:[#allocation5] sm:$0xff]
    %v168 = vld [vmem:[#allocation5 + $0x8] sm:$0xff]
    %v169 = vld [vmem:[#allocation5 + $0x10] sm:$0xff]
    %v170 = vld [vmem:[#allocation5 + $0x18] sm:$0xff]
    %v171 = vld [vmem:[#allocation5 + $0x20] sm:$0xff]
    %v172 = vld [vmem:[#allocation5 + $0x28] sm:$0xff]
    %v173 = vld [vmem:[#allocation5 + $0x30] sm:$0xff]
    %v174 = vld [vmem:[#allocation5 + $0x38] sm:$0xff]
    %v175 = vld [vmem:[#allocation5 + $0x40] sm:$0xff]
    %v176 = vld [vmem:[#allocation5 + $0x48] sm:$0xff]
    %v177 = vld [vmem:[#allocation5 + $0x50] sm:$0xff]
    %v178 = vld [vmem:[#allocation5 + $0x58] sm:$0xff]
    %v179 = vld [vmem:[#allocation5 + $0x60] sm:$0xff]
    %v180 = vld [vmem:[#allocation5 + $0x68] sm:$0xff]
    %v181 = vld [vmem:[#allocation5 + $0x70] sm:$0xff]
    %v182 = vld [vmem:[#allocation5 + $0x78] sm:$0xff]
    %v183 = vld [vmem:[#allocation5 + $0x80] sm:$0xff]
    %v184 = vld [vmem:[#allocation5 + $0x88] sm:$0xff]
    %v185 = vld [vmem:[#allocation5 + $0x90] sm:$0xff]
    %v186 = vld [vmem:[#allocation5 + $0x98] sm:$0xff]
    %v187 = vld [vmem:[#allocation5 + $0xa0] sm:$0xff]
    %v188 = vld [vmem:[#allocation5 + $0xa8] sm:$0xff]
    %v189 = vld [vmem:[#allocation5 + $0xb0] sm:$0xff]
    %v190 = vld [vmem:[#allocation5 + $0xb8] sm:$0xff]
    %v191 = vld [vmem:[#allocation5 + $0xc0] sm:$0xff]
    %v192 = vld [vmem:[#allocation5 + $0xc8] sm:$0xff]
    %v193 = vld [vmem:[#allocation5 + $0xd0] sm:$0xff]
    %v194 = vld [vmem:[#allocation5 + $0xd8] sm:$0xff]
    %v195 = vld [vmem:[#allocation5 + $0xe0] sm:$0xff]
    %v196 = vld [vmem:[#allocation5 + $0xe8] sm:$0xff]
    %v197 = vld [vmem:[#allocation5 + $0xf0] sm:$0xff]
    %v198 = vld [vmem:[#allocation5 + $0xf8] sm:$0xff]
    %v199 = vld [vmem:[#allocation5 + $0x100] sm:$0xff]
    %v200 = vld [vmem:[#allocation5 + $0x108] sm:$0xff]
    %v201 = vld [vmem:[#allocation5 + $0x110] sm:$0xff]
    %v202 = vld [vmem:[#allocation5 + $0x118] sm:$0xff]
    %v203 = vld [vmem:[#allocation5 + $0x120] sm:$0xff]
    %v204 = vld [vmem:[#allocation5 + $0x128] sm:$0xff]
    %v205 = vld [vmem:[#allocation5 + $0x130] sm:$0xff]
    %v206 = vld [vmem:[#allocation5 + $0x138] sm:$0xff]
    %v207 = vld [vmem:[#allocation5 + $0x140] sm:$0xff]
    %v208 = vld [vmem:[#allocation5 + $0x148] sm:$0xff]
    %v209 = vld [vmem:[#allocation5 + $0x150] sm:$0xff]
    %v210 = vld [vmem:[#allocation5 + $0x158] sm:$0xff]
    %v211 = vld [vmem:[#allocation5 + $0x160] sm:$0xff]
    %v212 = vld [vmem:[#allocation5 + $0x168] sm:$0xff]
    %v213 = vld [vmem:[#allocation5 + $0x170] sm:$0xff]
    %v214 = vld [vmem:[#allocation5 + $0x178] sm:$0xff]
    %v215 = vld [vmem:[#allocation5 + $0x180] sm:$0xff]
    %v216 = vld [vmem:[#allocation5 + $0x188] sm:$0xff]
    %v217 = vld [vmem:[#allocation5 + $0x190] sm:$0xff]
    %v218 = vld [vmem:[#allocation5 + $0x198] sm:$0xff]
    %v219 = vld [vmem:[#allocation5 + $0x1a0] sm:$0xff]
    %v220 = vld [vmem:[#allocation5 + $0x1a8] sm:$0xff]
    %v221 = vld [vmem:[#allocation5 + $0x1b0] sm:$0xff]
    %v222 = vld [vmem:[#allocation5 + $0x1b8] sm:$0xff]
    %v223 = vld [vmem:[#allocation5 + $0x1c0] sm:$0xff]
    %v224 = vld [vmem:[#allocation5 + $0x1c8] sm:$0xff]
    %v225 = vld [vmem:[#allocation5 + $0x1d0] sm:$0xff]
    %v226 = vld [vmem:[#allocation5 + $0x1d8] sm:$0xff]
    %v227 = vld [vmem:[#allocation5 + $0x1e0] sm:$0xff]
    %v228 = vld [vmem:[#allocation5 + $0x1e8] sm:$0xff]
    %v229 = vld [vmem:[#allocation5 + $0x1f0] sm:$0xff]
    %v230 = vld [vmem:[#allocation5 + $0x1f8] sm:$0xff]
    %v231 = vld [vmem:[#allocation5 + $0x200] sm:$0xff]
    %v232 = vld [vmem:[#allocation5 + $0x208] sm:$0xff]
    %v233 = vld [vmem:[#allocation5 + $0x210] sm:$0xff]
    %v234 = vld [vmem:[#allocation5 + $0x218] sm:$0xff]
    %v235 = vld [vmem:[#allocation5 + $0x220] sm:$0xff]
    %v236 = vld [vmem:[#allocation5 + $0x228] sm:$0xff]
    %v237 = vld [vmem:[#allocation5 + $0x230] sm:$0xff]
    %v238 = vld [vmem:[#allocation5 + $0x238] sm:$0xff]
    %v239 = vld [vmem:[#allocation5 + $0x240] sm:$0xff]
    %v240 = vld [vmem:[#allocation5 + $0x248] sm:$0xff]
    %v241 = vld [vmem:[#allocation5 + $0x250] sm:$0xff]
    %v242 = vld [vmem:[#allocation5 + $0x258] sm:$0xff]
    %v243 = vld [vmem:[#allocation5 + $0x260] sm:$0xff]
    %v244 = vld [vmem:[#allocation5 + $0x268] sm:$0xff]
    %v245 = vld [vmem:[#allocation5 + $0x270] sm:$0xff]
    %v246 = vld [vmem:[#allocation5 + $0x278] sm:$0xff]
    %v247 = vld [vmem:[#allocation5 + $0x280] sm:$0xff]
    %v248 = vld [vmem:[#allocation5 + $0x288] sm:$0xff]
    %v249 = vld [vmem:[#allocation5 + $0x290] sm:$0xff]
    %v250 = vld [vmem:[#allocation5 + $0x298] sm:$0xff]
    %v251 = vld [vmem:[#allocation5 + $0x2a0] sm:$0xff]
    %v252 = vld [vmem:[#allocation5 + $0x2a8] sm:$0xff]
    %v253 = vld [vmem:[#allocation5 + $0x2b0] sm:$0xff]
    %v254 = vld [vmem:[#allocation5 + $0x2b8] sm:$0xff]
    %v255 = vld [vmem:[#allocation5 + $0x2c0] sm:$0xff]
    %v256 = vld [vmem:[#allocation5 + $0x2c8] sm:$0xff]
    %v257 = vld [vmem:[#allocation5 + $0x2d0] sm:$0xff]
    %v258 = vld [vmem:[#allocation5 + $0x2d8] sm:$0xff]
    %v259 = vld [vmem:[#allocation5 + $0x2e0] sm:$0xff]
    %v260 = vld [vmem:[#allocation5 + $0x2e8] sm:$0xff]
    %v261 = vld [vmem:[#allocation5 + $0x2f0] sm:$0xff]
    %v262 = vld [vmem:[#allocation5 + $0x2f8] sm:$0xff]
    %v263 = vadd.f32 %v71, %v167
    %v264 = vadd.f32 %v72, %v168
    %v265 = vadd.f32 %v73, %v169
    %v266 = vadd.f32 %v74, %v170
    %v267 = vadd.f32 %v75, %v171
    %v268 = vadd.f32 %v76, %v172
    %v269 = vadd.f32 %v77, %v173
    %v270 = vadd.f32 %v78, %v174
    %v271 = vadd.f32 %v79, %v175
    %v272 = vadd.f32 %v80, %v176
    %v273 = vadd.f32 %v81, %v177
    %v274 = vadd.f32 %v82, %v178
    %v275 = vadd.f32 %v83, %v179
    %v276 = vadd.f32 %v84, %v180
    %v277 = vadd.f32 %v85, %v181
    %v278 = vadd.f32 %v86, %v182
    %v279 = vadd.f32 %v87, %v183
    %v280 = vadd.f32 %v88, %v184
    %v281 = vadd.f32 %v89, %v185
    %v282 = vadd.f32 %v90, %v186
    %v283 = vadd.f32 %v91, %v187
    %v284 = vadd.f32 %v92, %v188
    %v285 = vadd.f32 %v93, %v189
    %v286 = vadd.f32 %v94, %v190
    %v287 = vadd.f32 %v95, %v191
    %v288 = vadd.f32 %v96, %v192
    %v289 = vadd.f32 %v97, %v193
    %v290 = vadd.f32 %v98, %v194
    %v291 = vadd.f32 %v99, %v195
    %v292 = vadd.f32 %v100, %v196
    %v293 = vadd.f32 %v101, %v197
    %v294 = vadd.f32 %v102, %v198
    %v295 = vadd.f32 %v103, %v199
    %v296 = vadd.f32 %v104, %v200
    %v297 = vadd.f32 %v105, %v201
    %v298 = vadd.f32 %v106, %v202
    %v299 = vadd.f32 %v107, %v203
    %v300 = vadd.f32 %v108, %v204
    %v301 = vadd.f32 %v109, %v205
    %v302 = vadd.f32 %v110, %v206
    %v303 = vadd.f32 %v111, %v207
    %v304 = vadd.f32 %v112, %v208
    %v305 = vadd.f32 %v113, %v209
    %v306 = vadd.f32 %v114, %v210
    %v307 = vadd.f32 %v115, %v211
    %v308 = vadd.f32 %v116, %v212
    %v309 = vadd.f32 %v117, %v213
    %v310 = vadd.f32 %v118, %v214
    %v311 = vadd.f32 %v119, %v215
    %v312 = vadd.f32 %v120, %v216
    %v313 = vadd.f32 %v121, %v217
    %v314 = vadd.f32 %v122, %v218
    %v315 = vadd.f32 %v123, %v219
    %v316 = vadd.f32 %v124, %v220
    %v317 = vadd.f32 %v125, %v221
    %v318 = vadd.f32 %v126, %v222
    %v319 = vadd.f32 %v127, %v223
    %v320 = vadd.f32 %v128, %v224
    %v321 = vadd.f32 %v129, %v225
    %v322 = vadd.f32 %v130, %v226
    %v323 = vadd.f32 %v131, %v227
    %v324 = vadd.f32 %v132, %v228
    %v325 = vadd.f32 %v133, %v229
    %v326 = vadd.f32 %v134, %v230
    %v327 = vadd.f32 %v135, %v231
    %v328 = vadd.f32 %v136, %v232
    %v329 = vadd.f32 %v137, %v233
    %v330 = vadd.f32 %v138, %v234
    %v331 = vadd.f32 %v139, %v235
    %v332 = vadd.f32 %v140, %v236
    %v333 = vadd.f32 %v141, %v237
    %v334 = vadd.f32 %v142, %v238
    %v335 = vadd.f32 %v143, %v239
    %v336 = vadd.f32 %v144, %v240
    %v337 = vadd.f32 %v145, %v241
    %v338 = vadd.f32 %v146, %v242
    %v339 = vadd.f32 %v147, %v243
    %v340 = vadd.f32 %v148, %v244
    %v341 = vadd.f32 %v149, %v245
    %v342 = vadd.f32 %v150, %v246
    %v343 = vadd.f32 %v151, %v247
    %v344 = vadd.f32 %v152, %v248
    %v345 = vadd.f32 %v153, %v249
    %v346 = vadd.f32 %v154, %v250
    %v347 = vadd.f32 %v155, %v251
    %v348 = vadd.f32 %v156, %v252
    %v349 = vadd.f32 %v157, %v253
    %v350 = vadd.f32 %v158, %v254
    %v351 = vadd.f32 %v159, %v255
    %v352 = vadd.f32 %v160, %v256
    %v353 = vadd.f32 %v161, %v257
    %v354 = vadd.f32 %v162, %v258
    %v355 = vadd.f32 %v163, %v259
    %v356 = vadd.f32 %v164, %v260
    %v357 = vadd.f32 %v165, %v261
    %v358 = vadd.f32 %v166, %v262
    %v359 = vadd.f32 %v263, %v264
    %360 = vadd.xlane.f32.xlu0 %v359
    %v361 = vpop.xlane.xlu0 %360
    %v362 = vadd.f32 %v265, %v266
    %363 = vadd.xlane.f32.xlu0 %v362
    %v364 = vpop.xlane.xlu0 %363
    %v365 = vadd.f32 %v267, %v268
    %366 = vadd.xlane.f32.xlu0 %v365
    %v367 = vpop.xlane.xlu0 %366
    %v368 = vadd.f32 %v269, %v270
    %369 = vadd.xlane.f32.xlu0 %v368
    %v370 = vpop.xlane.xlu0 %369
    %v371 = vadd.f32 %v271, %v272
    %372 = vadd.xlane.f32.xlu0 %v371
    %v373 = vpop.xlane.xlu0 %372
    %v374 = vadd.f32 %v273, %v274
    %375 = vadd.xlane.f32.xlu0 %v374
    %v376 = vpop.xlane.xlu0 %375
    %v377 = vadd.f32 %v275, %v276
    %378 = vadd.xlane.f32.xlu0 %v377
    %v379 = vpop.xlane.xlu0 %378
    %v380 = vadd.f32 %v277, %v278
    %381 = vadd.xlane.f32.xlu0 %v380
    %v382 = vpop.xlane.xlu0 %381
    %v383 = vadd.f32 %v279, %v280
    %384 = vadd.xlane.f32.xlu0 %v383
    %v385 = vpop.xlane.xlu0 %384
    %v386 = vadd.f32 %v281, %v282
    %387 = vadd.xlane.f32.xlu0 %v386
    %v388 = vpop.xlane.xlu0 %387
    %v389 = vadd.f32 %v283, %v284
    %390 = vadd.xlane.f32.xlu0 %v389
    %v391 = vpop.xlane.xlu0 %390
    %v392 = vadd.f32 %v285, %v286
    %393 = vadd.xlane.f32.xlu0 %v392
    %v394 = vpop.xlane.xlu0 %393
    %v395 = vadd.f32 %v287, %v288
    %396 = vadd.xlane.f32.xlu0 %v395
    %v397 = vpop.xlane.xlu0 %396
    %v398 = vadd.f32 %v289, %v290
    %399 = vadd.xlane.f32.xlu0 %v398
    %v400 = vpop.xlane.xlu0 %399
    %v401 = vadd.f32 %v291, %v292
    %402 = vadd.xlane.f32.xlu0 %v401
    %v403 = vpop.xlane.xlu0 %402
    %v404 = vadd.f32 %v293, %v294
    %405 = vadd.xlane.f32.xlu0 %v404
    %v406 = vpop.xlane.xlu0 %405
    %v407 = vadd.f32 %v295, %v296
    %408 = vadd.xlane.f32.xlu0 %v407
    %v409 = vpop.xlane.xlu0 %408
    %v410 = vadd.f32 %v297, %v298
    %411 = vadd.xlane.f32.xlu0 %v410
    %v412 = vpop.xlane.xlu0 %411
    %v413 = vadd.f32 %v299, %v300
    %414 = vadd.xlane.f32.xlu0 %v413
    %v415 = vpop.xlane.xlu0 %414
    %v416 = vadd.f32 %v301, %v302
    %417 = vadd.xlane.f32.xlu0 %v416
    %v418 = vpop.xlane.xlu0 %417
    %v419 = vadd.f32 %v303, %v304
    %420 = vadd.xlane.f32.xlu0 %v419
    %v421 = vpop.xlane.xlu0 %420
    %v422 = vadd.f32 %v305, %v306
    %423 = vadd.xlane.f32.xlu0 %v422
    %v424 = vpop.xlane.xlu0 %423
    %v425 = vadd.f32 %v307, %v308
    %426 = vadd.xlane.f32.xlu0 %v425
    %v427 = vpop.xlane.xlu0 %426
    %v428 = vadd.f32 %v309, %v310
    %429 = vadd.xlane.f32.xlu0 %v428
    %v430 = vpop.xlane.xlu0 %429
    %v431 = vadd.f32 %v311, %v312
    %432 = vadd.xlane.f32.xlu0 %v431
    %v433 = vpop.xlane.xlu0 %432
    %v434 = vadd.f32 %v313, %v314
    %435 = vadd.xlane.f32.xlu0 %v434
    %v436 = vpop.xlane.xlu0 %435
    %v437 = vadd.f32 %v315, %v316
    %438 = vadd.xlane.f32.xlu0 %v437
    %v439 = vpop.xlane.xlu0 %438
    %v440 = vadd.f32 %v317, %v318
    %441 = vadd.xlane.f32.xlu0 %v440
    %v442 = vpop.xlane.xlu0 %441
    %v443 = vadd.f32 %v319, %v320
    %444 = vadd.xlane.f32.xlu0 %v443
    %v445 = vpop.xlane.xlu0 %444
    %v446 = vadd.f32 %v321, %v322
    %447 = vadd.xlane.f32.xlu0 %v446
    %v448 = vpop.xlane.xlu0 %447
    %v449 = vadd.f32 %v323, %v324
    %450 = vadd.xlane.f32.xlu0 %v449
    %v451 = vpop.xlane.xlu0 %450
    %v452 = vadd.f32 %v325, %v326
    %453 = vadd.xlane.f32.xlu0 %v452
    %v454 = vpop.xlane.xlu0 %453
    %v455 = vadd.f32 %v327, %v328
    %456 = vadd.xlane.f32.xlu0 %v455
    %v457 = vpop.xlane.xlu0 %456
    %v458 = vadd.f32 %v329, %v330
    %459 = vadd.xlane.f32.xlu0 %v458
    %v460 = vpop.xlane.xlu0 %459
    %v461 = vadd.f32 %v331, %v332
    %462 = vadd.xlane.f32.xlu0 %v461
    %v463 = vpop.xlane.xlu0 %462
    %v464 = vadd.f32 %v333, %v334
    %465 = vadd.xlane.f32.xlu0 %v464
    %v466 = vpop.xlane.xlu0 %465
    %v467 = vadd.f32 %v335, %v336
    %468 = vadd.xlane.f32.xlu0 %v467
    %v469 = vpop.xlane.xlu0 %468
    %v470 = vadd.f32 %v337, %v338
    %471 = vadd.xlane.f32.xlu0 %v470
    %v472 = vpop.xlane.xlu0 %471
    %v473 = vadd.f32 %v339, %v340
    %474 = vadd.xlane.f32.xlu0 %v473
    %v475 = vpop.xlane.xlu0 %474
    %v476 = vadd.f32 %v341, %v342
    %477 = vadd.xlane.f32.xlu0 %v476
    %v478 = vpop.xlane.xlu0 %477
    %v479 = vadd.f32 %v343, %v344
    %480 = vadd.xlane.f32.xlu0 %v479
    %v481 = vpop.xlane.xlu0 %480
    %v482 = vadd.f32 %v345, %v346
    %483 = vadd.xlane.f32.xlu0 %v482
    %v484 = vpop.xlane.xlu0 %483
    %v485 = vadd.f32 %v347, %v348
    %486 = vadd.xlane.f32.xlu0 %v485
    %v487 = vpop.xlane.xlu0 %486
    %v488 = vadd.f32 %v349, %v350
    %489 = vadd.xlane.f32.xlu0 %v488
    %v490 = vpop.xlane.xlu0 %489
    %v491 = vadd.f32 %v351, %v352
    %492 = vadd.xlane.f32.xlu0 %v491
    %v493 = vpop.xlane.xlu0 %492
    %v494 = vadd.f32 %v353, %v354
    %495 = vadd.xlane.f32.xlu0 %v494
    %v496 = vpop.xlane.xlu0 %495
    %v497 = vadd.f32 %v355, %v356
    %498 = vadd.xlane.f32.xlu0 %v497
    %v499 = vpop.xlane.xlu0 %498
    %v500 = vadd.f32 %v357, %v358
    %501 = vadd.xlane.f32.xlu0 %v500
    %v502 = vpop.xlane.xlu0 %501
    %v503 = vrcp.pop 256.0
    %v504 = vmul.f32 %v361, %v503
    %v505 = vmul.f32 %v364, %v503
    %v506 = vmul.f32 %v367, %v503
    %v507 = vmul.f32 %v370, %v503
    %v508 = vmul.f32 %v373, %v503
    %v509 = vmul.f32 %v376, %v503
    %v510 = vmul.f32 %v379, %v503
    %v511 = vmul.f32 %v382, %v503
    %v512 = vmul.f32 %v385, %v503
    %v513 = vmul.f32 %v388, %v503
    %v514 = vmul.f32 %v391, %v503
    %v515 = vmul.f32 %v394, %v503
    %v516 = vmul.f32 %v397, %v503
    %v517 = vmul.f32 %v400, %v503
    %v518 = vmul.f32 %v403, %v503
    %v519 = vmul.f32 %v406, %v503
    %v520 = vmul.f32 %v409, %v503
    %v521 = vmul.f32 %v412, %v503
    %v522 = vmul.f32 %v415, %v503
    %v523 = vmul.f32 %v418, %v503
    %v524 = vmul.f32 %v421, %v503
    %v525 = vmul.f32 %v424, %v503
    %v526 = vmul.f32 %v427, %v503
    %v527 = vmul.f32 %v430, %v503
    %v528 = vmul.f32 %v433, %v503
    %v529 = vmul.f32 %v436, %v503
    %v530 = vmul.f32 %v439, %v503
    %v531 = vmul.f32 %v442, %v503
    %v532 = vmul.f32 %v445, %v503
    %v533 = vmul.f32 %v448, %v503
    %v534 = vmul.f32 %v451, %v503
    %v535 = vmul.f32 %v454, %v503
    %v536 = vmul.f32 %v457, %v503
    %v537 = vmul.f32 %v460, %v503
    %v538 = vmul.f32 %v463, %v503
    %v539 = vmul.f32 %v466, %v503
    %v540 = vmul.f32 %v469, %v503
    %v541 = vmul.f32 %v472, %v503
    %v542 = vmul.f32 %v475, %v503
    %v543 = vmul.f32 %v478, %v503
    %v544 = vmul.f32 %v481, %v503
    %v545 = vmul.f32 %v484, %v503
    %v546 = vmul.f32 %v487, %v503
    %v547 = vmul.f32 %v490, %v503
    %v548 = vmul.f32 %v493, %v503
    %v549 = vmul.f32 %v496, %v503
    %v550 = vmul.f32 %v499, %v503
    %v551 = vmul.f32 %v502, %v503
    %v552 = vsub.f32 %v263, %v504
    %v553 = vsub.f32 %v264, %v504
    %v554 = vsub.f32 %v265, %v505
    %v555 = vsub.f32 %v266, %v505
    %v556 = vsub.f32 %v267, %v506
    %v557 = vsub.f32 %v268, %v506
    %v558 = vsub.f32 %v269, %v507
    %v559 = vsub.f32 %v270, %v507
    %v560 = vsub.f32 %v271, %v508
    %v561 = vsub.f32 %v272, %v508
    %v562 = vsub.f32 %v273, %v509
    %v563 = vsub.f32 %v274, %v509
    %v564 = vsub.f32 %v275, %v510
    %v565 = vsub.f32 %v276, %v510
    %v566 = vsub.f32 %v277, %v511
    %v567 = vsub.f32 %v278, %v511
    %v568 = vsub.f32 %v279, %v512
    %v569 = vsub.f32 %v280, %v512
    %v570 = vsub.f32 %v281, %v513
    %v571 = vsub.f32 %v282, %v513
    %v572 = vsub.f32 %v283, %v514
    %v573 = vsub.f32 %v284, %v514
    %v574 = vsub.f32 %v285, %v515
    %v575 = vsub.f32 %v286, %v515
    %v576 = vsub.f32 %v287, %v516
    %v577 = vsub.f32 %v288, %v516
    %v578 = vsub.f32 %v289, %v517
    %v579 = vsub.f32 %v290, %v517
    %v580 = vsub.f32 %v291, %v518
    %v581 = vsub.f32 %v292, %v518
    %v582 = vsub.f32 %v293, %v519
    %v583 = vsub.f32 %v294, %v519
    %v584 = vsub.f32 %v295, %v520
    %v585 = vsub.f32 %v296, %v520
    %v586 = vsub.f32 %v297, %v521
    %v587 = vsub.f32 %v298, %v521
    %v588 = vsub.f32 %v299, %v522
    %v589 = vsub.f32 %v300, %v522
    %v590 = vsub.f32 %v301, %v523
    %v591 = vsub.f32 %v302, %v523
    %v592 = vsub.f32 %v303, %v524
    %v593 = vsub.f32 %v304, %v524
    %v594 = vsub.f32 %v305, %v525
    %v595 = vsub.f32 %v306, %v525
    %v596 = vsub.f32 %v307, %v526
    %v597 = vsub.f32 %v308, %v526
    %v598 = vsub.f32 %v309, %v527
    %v599 = vsub.f32 %v310, %v527
    %v600 = vsub.f32 %v311, %v528
    %v601 = vsub.f32 %v312, %v528
    %v602 = vsub.f32 %v313, %v529
    %v603 = vsub.f32 %v314, %v529
    %v604 = vsub.f32 %v315, %v530
    %v605 = vsub.f32 %v316, %v530
    %v606 = vsub.f32 %v317, %v531
    %v607 = vsub.f32 %v318, %v531
    %v608 = vsub.f32 %v319, %v532
    %v609 = vsub.f32 %v320, %v532
    %v610 = vsub.f32 %v321, %v533
    %v611 = vsub.f32 %v322, %v533
    %v612 = vsub.f32 %v323, %v534
    %v613 = vsub.f32 %v324, %v534
    %v614 = vsub.f32 %v325, %v535
    %v615 = vsub.f32 %v326, %v535
    %v616 = vsub.f32 %v327, %v536
    %v617 = vsub.f32 %v328, %v536
    %v618 = vsub.f32 %v329, %v537
    %v619 = vsub.f32 %v330, %v537
    %v620 = vsub.f32 %v331, %v538
    %v621 = vsub.f32 %v332, %v538
    %v622 = vsub.f32 %v333, %v539
    %v623 = vsub.f32 %v334, %v539
    %v624 = vsub.f32 %v335, %v540
    %v625 = vsub.f32 %v336, %v540
    %v626 = vsub.f32 %v337, %v541
    %v627 = vsub.f32 %v338, %v541
    %v628 = vsub.f32 %v339, %v542
    %v629 = vsub.f32 %v340, %v542
    %v630 = vsub.f32 %v341, %v543
    %v631 = vsub.f32 %v342, %v543
    %v632 = vsub.f32 %v343, %v544
    %v633 = vsub.f32 %v344, %v544
    %v634 = vsub.f32 %v345, %v545
    %v635 = vsub.f32 %v346, %v545
    %v636 = vsub.f32 %v347, %v546
    %v637 = vsub.f32 %v348, %v546
    %v638 = vsub.f32 %v349, %v547
    %v639 = vsub.f32 %v350, %v547
    %v640 = vsub.f32 %v351, %v548
    %v641 = vsub.f32 %v352, %v548
    %v642 = vsub.f32 %v353, %v549
    %v643 = vsub.f32 %v354, %v549
    %v644 = vsub.f32 %v355, %v550
    %v645 = vsub.f32 %v356, %v550
    %v646 = vsub.f32 %v357, %v551
    %v647 = vsub.f32 %v358, %v551
    %v648 = vmul.f32 %v552, %v552
    %v649 = vmul.f32 %v553, %v553
    %v650 = vmul.f32 %v554, %v554
    %v651 = vmul.f32 %v555, %v555
    %v652 = vmul.f32 %v556, %v556
    %v653 = vmul.f32 %v557, %v557
    %v654 = vmul.f32 %v558, %v558
    %v655 = vmul.f32 %v559, %v559
    %v656 = vmul.f32 %v560, %v560
    %v657 = vmul.f32 %v561, %v561
    %v658 = vmul.f32 %v562, %v562
    %v659 = vmul.f32 %v563, %v563
    %v660 = vmul.f32 %v564, %v564
    %v661 = vmul.f32 %v565, %v565
    %v662 = vmul.f32 %v566, %v566
    %v663 = vmul.f32 %v567, %v567
    %v664 = vmul.f32 %v568, %v568
    %v665 = vmul.f32 %v569, %v569
    %v666 = vmul.f32 %v570, %v570
    %v667 = vmul.f32 %v571, %v571
    %v668 = vmul.f32 %v572, %v572
    %v669 = vmul.f32 %v573, %v573
    %v670 = vmul.f32 %v574, %v574
    %v671 = vmul.f32 %v575, %v575
    %v672 = vmul.f32 %v576, %v576
    %v673 = vmul.f32 %v577, %v577
    %v674 = vmul.f32 %v578, %v578
    %v675 = vmul.f32 %v579, %v579
    %v676 = vmul.f32 %v580, %v580
    %v677 = vmul.f32 %v581, %v581
    %v678 = vmul.f32 %v582, %v582
    %v679 = vmul.f32 %v583, %v583
    %v680 = vmul.f32 %v584, %v584
    %v681 = vmul.f32 %v585, %v585
    %v682 = vmul.f32 %v586, %v586
    %v683 = vmul.f32 %v587, %v587
    %v684 = vmul.f32 %v588, %v588
    %v685 = vmul.f32 %v589, %v589
    %v686 = vmul.f32 %v590, %v590
    %v687 = vmul.f32 %v591, %v591
    %v688 = vmul.f32 %v592, %v592
    %v689 = vmul.f32 %v593, %v593
    %v690 = vmul.f32 %v594, %v594
    %v691 = vmul.f32 %v595, %v595
    %v692 = vmul.f32 %v596, %v596
    %v693 = vmul.f32 %v597, %v597
    %v694 = vmul.f32 %v598, %v598
    %v695 = vmul.f32 %v599, %v599
    %v696 = vmul.f32 %v600, %v600
    %v697 = vmul.f32 %v601, %v601
    %v698 = vmul.f32 %v602, %v602
    %v699 = vmul.f32 %v603, %v603
    %v700 = vmul.f32 %v604, %v604
    %v701 = vmul.f32 %v605, %v605
    %v702 = vmul.f32 %v606, %v606
    %v703 = vmul.f32 %v607, %v607
    %v704 = vmul.f32 %v608, %v608
    %v705 = vmul.f32 %v609, %v609
    %v706 = vmul.f32 %v610, %v610
    %v707 = vmul.f32 %v611, %v611
    %v708 = vmul.f32 %v612, %v612
    %v709 = vmul.f32 %v613, %v613
    %v710 = vmul.f32 %v614, %v614
    %v711 = vmul.f32 %v615, %v615
    %v712 = vmul.f32 %v616, %v616
    %v713 = vmul.f32 %v617, %v617
    %v714 = vmul.f32 %v618, %v618
    %v715 = vmul.f32 %v619, %v619
    %v716 = vmul.f32 %v620, %v620
    %v717 = vmul.f32 %v621, %v621
    %v718 = vmul.f32 %v622, %v622
    %v719 = vmul.f32 %v623, %v623
    %v720 = vmul.f32 %v624, %v624
    %v721 = vmul.f32 %v625, %v625
    %v722 = vmul.f32 %v626, %v626
    %v723 = vmul.f32 %v627, %v627
    %v724 = vmul.f32 %v628, %v628
    %v725 = vmul.f32 %v629, %v629
    %v726 = vmul.f32 %v630, %v630
    %v727 = vmul.f32 %v631, %v631
    %v728 = vmul.f32 %v632, %v632
    %v729 = vmul.f32 %v633, %v633
    %v730 = vmul.f32 %v634, %v634
    %v731 = vmul.f32 %v635, %v635
    %v732 = vmul.f32 %v636, %v636
    %v733 = vmul.f32 %v637, %v637
    %v734 = vmul.f32 %v638, %v638
    %v735 = vmul.f32 %v639, %v639
    %v736 = vmul.f32 %v640, %v640
    %v737 = vmul.f32 %v641, %v641
    %v738 = vmul.f32 %v642, %v642
    %v739 = vmul.f32 %v643, %v643
    %v740 = vmul.f32 %v644, %v644
    %v741 = vmul.f32 %v645, %v645
    %v742 = vmul.f32 %v646, %v646
    %v743 = vmul.f32 %v647, %v647
    %v744 = vadd.f32 %v648, %v649
    %745 = vadd.xlane.f32.xlu0 %v744
    %v746 = vpop.xlane.xlu0 %745
    %v747 = vadd.f32 %v650, %v651
    %748 = vadd.xlane.f32.xlu0 %v747
    %v749 = vpop.xlane.xlu0 %748
    %v750 = vadd.f32 %v652, %v653
    %751 = vadd.xlane.f32.xlu0 %v750
    %v752 = vpop.xlane.xlu0 %751
    %v753 = vadd.f32 %v654, %v655
    %754 = vadd.xlane.f32.xlu0 %v753
    %v755 = vpop.xlane.xlu0 %754
    %v756 = vadd.f32 %v656, %v657
    %757 = vadd.xlane.f32.xlu0 %v756
    %v758 = vpop.xlane.xlu0 %757
    %v759 = vadd.f32 %v658, %v659
    %760 = vadd.xlane.f32.xlu0 %v759
    %v761 = vpop.xlane.xlu0 %760
    %v762 = vadd.f32 %v660, %v661
    %763 = vadd.xlane.f32.xlu0 %v762
    %v764 = vpop.xlane.xlu0 %763
    %v765 = vadd.f32 %v662, %v663
    %766 = vadd.xlane.f32.xlu0 %v765
    %v767 = vpop.xlane.xlu0 %766
    %v768 = vadd.f32 %v664, %v665
    %769 = vadd.xlane.f32.xlu0 %v768
    %v770 = vpop.xlane.xlu0 %769
    %v771 = vadd.f32 %v666, %v667
    %772 = vadd.xlane.f32.xlu0 %v771
    %v773 = vpop.xlane.xlu0 %772
    %v774 = vadd.f32 %v668, %v669
    %775 = vadd.xlane.f32.xlu0 %v774
    %v776 = vpop.xlane.xlu0 %775
    %v777 = vadd.f32 %v670, %v671
    %778 = vadd.xlane.f32.xlu0 %v777
    %v779 = vpop.xlane.xlu0 %778
    %v780 = vadd.f32 %v672, %v673
    %781 = vadd.xlane.f32.xlu0 %v780
    %v782 = vpop.xlane.xlu0 %781
    %v783 = vadd.f32 %v674, %v675
    %784 = vadd.xlane.f32.xlu0 %v783
    %v785 = vpop.xlane.xlu0 %784
    %v786 = vadd.f32 %v676, %v677
    %787 = vadd.xlane.f32.xlu0 %v786
    %v788 = vpop.xlane.xlu0 %787
    %v789 = vadd.f32 %v678, %v679
    %790 = vadd.xlane.f32.xlu0 %v789
    %v791 = vpop.xlane.xlu0 %790
    %v792 = vadd.f32 %v680, %v681
    %793 = vadd.xlane.f32.xlu0 %v792
    %v794 = vpop.xlane.xlu0 %793
    %v795 = vadd.f32 %v682, %v683
    %796 = vadd.xlane.f32.xlu0 %v795
    %v797 = vpop.xlane.xlu0 %796
    %v798 = vadd.f32 %v684, %v685
    %799 = vadd.xlane.f32.xlu0 %v798
    %v800 = vpop.xlane.xlu0 %799
    %v801 = vadd.f32 %v686, %v687
    %802 = vadd.xlane.f32.xlu0 %v801
    %v803 = vpop.xlane.xlu0 %802
    %v804 = vadd.f32 %v688, %v689
    %805 = vadd.xlane.f32.xlu0 %v804
    %v806 = vpop.xlane.xlu0 %805
    %v807 = vadd.f32 %v690, %v691
    %808 = vadd.xlane.f32.xlu0 %v807
    %v809 = vpop.xlane.xlu0 %808
    %v810 = vadd.f32 %v692, %v693
    %811 = vadd.xlane.f32.xlu0 %v810
    %v812 = vpop.xlane.xlu0 %811
    %v813 = vadd.f32 %v694, %v695
    %814 = vadd.xlane.f32.xlu0 %v813
    %v815 = vpop.xlane.xlu0 %814
    %v816 = vadd.f32 %v696, %v697
    %817 = vadd.xlane.f32.xlu0 %v816
    %v818 = vpop.xlane.xlu0 %817
    %v819 = vadd.f32 %v698, %v699
    %820 = vadd.xlane.f32.xlu0 %v819
    %v821 = vpop.xlane.xlu0 %820
    %v822 = vadd.f32 %v700, %v701
    %823 = vadd.xlane.f32.xlu0 %v822
    %v824 = vpop.xlane.xlu0 %823
    %v825 = vadd.f32 %v702, %v703
    %826 = vadd.xlane.f32.xlu0 %v825
    %v827 = vpop.xlane.xlu0 %826
    %v828 = vadd.f32 %v704, %v705
    %829 = vadd.xlane.f32.xlu0 %v828
    %v830 = vpop.xlane.xlu0 %829
    %v831 = vadd.f32 %v706, %v707
    %832 = vadd.xlane.f32.xlu0 %v831
    %v833 = vpop.xlane.xlu0 %832
    %v834 = vadd.f32 %v708, %v709
    %835 = vadd.xlane.f32.xlu0 %v834
    %v836 = vpop.xlane.xlu0 %835
    %v837 = vadd.f32 %v710, %v711
    %838 = vadd.xlane.f32.xlu0 %v837
    %v839 = vpop.xlane.xlu0 %838
    %v840 = vadd.f32 %v712, %v713
    %841 = vadd.xlane.f32.xlu0 %v840
    %v842 = vpop.xlane.xlu0 %841
    %v843 = vadd.f32 %v714, %v715
    %844 = vadd.xlane.f32.xlu0 %v843
    %v845 = vpop.xlane.xlu0 %844
    %v846 = vadd.f32 %v716, %v717
    %847 = vadd.xlane.f32.xlu0 %v846
    %v848 = vpop.xlane.xlu0 %847
    %v849 = vadd.f32 %v718, %v719
    %850 = vadd.xlane.f32.xlu0 %v849
    %v851 = vpop.xlane.xlu0 %850
    %v852 = vadd.f32 %v720, %v721
    %853 = vadd.xlane.f32.xlu0 %v852
    %v854 = vpop.xlane.xlu0 %853
    %v855 = vadd.f32 %v722, %v723
    %856 = vadd.xlane.f32.xlu0 %v855
    %v857 = vpop.xlane.xlu0 %856
    %v858 = vadd.f32 %v724, %v725
    %859 = vadd.xlane.f32.xlu0 %v858
    %v860 = vpop.xlane.xlu0 %859
    %v861 = vadd.f32 %v726, %v727
    %862 = vadd.xlane.f32.xlu0 %v861
    %v863 = vpop.xlane.xlu0 %862
    %v864 = vadd.f32 %v728, %v729
    %865 = vadd.xlane.f32.xlu0 %v864
    %v866 = vpop.xlane.xlu0 %865
    %v867 = vadd.f32 %v730, %v731
    %868 = vadd.xlane.f32.xlu0 %v867
    %v869 = vpop.xlane.xlu0 %868
    %v870 = vadd.f32 %v732, %v733
    %871 = vadd.xlane.f32.xlu0 %v870
    %v872 = vpop.xlane.xlu0 %871
    %v873 = vadd.f32 %v734, %v735
    %874 = vadd.xlane.f32.xlu0 %v873
    %v875 = vpop.xlane.xlu0 %874
    %v876 = vadd.f32 %v736, %v737
    %877 = vadd.xlane.f32.xlu0 %v876
    %v878 = vpop.xlane.xlu0 %877
    %v879 = vadd.f32 %v738, %v739
    %880 = vadd.xlane.f32.xlu0 %v879
    %v881 = vpop.xlane.xlu0 %880
    %v882 = vadd.f32 %v740, %v741
    %883 = vadd.xlane.f32.xlu0 %v882
    %v884 = vpop.xlane.xlu0 %883
    %v885 = vadd.f32 %v742, %v743
    %886 = vadd.xlane.f32.xlu0 %v885
    %v887 = vpop.xlane.xlu0 %886
    %v888 = vmul.f32 %v746, %v503
    %v889 = vmul.f32 %v749, %v503
    %v890 = vmul.f32 %v752, %v503
    %v891 = vmul.f32 %v755, %v503
    %v892 = vmul.f32 %v758, %v503
    %v893 = vmul.f32 %v761, %v503
    %v894 = vmul.f32 %v764, %v503
    %v895 = vmul.f32 %v767, %v503
    %v896 = vmul.f32 %v770, %v503
    %v897 = vmul.f32 %v773, %v503
    %v898 = vmul.f32 %v776, %v503
    %v899 = vmul.f32 %v779, %v503
    %v900 = vmul.f32 %v782, %v503
    %v901 = vmul.f32 %v785, %v503
    %v902 = vmul.f32 %v788, %v503
    %v903 = vmul.f32 %v791, %v503
    %v904 = vmul.f32 %v794, %v503
    %v905 = vmul.f32 %v797, %v503
    %v906 = vmul.f32 %v800, %v503
    %v907 = vmul.f32 %v803, %v503
    %v908 = vmul.f32 %v806, %v503
    %v909 = vmul.f32 %v809, %v503
    %v910 = vmul.f32 %v812, %v503
    %v911 = vmul.f32 %v815, %v503
    %v912 = vmul.f32 %v818, %v503
    %v913 = vmul.f32 %v821, %v503
    %v914 = vmul.f32 %v824, %v503
    %v915 = vmul.f32 %v827, %v503
    %v916 = vmul.f32 %v830, %v503
    %v917 = vmul.f32 %v833, %v503
    %v918 = vmul.f32 %v836, %v503
    %v919 = vmul.f32 %v839, %v503
    %v920 = vmul.f32 %v842, %v503
    %v921 = vmul.f32 %v845, %v503
    %v922 = vmul.f32 %v848, %v503
    %v923 = vmul.f32 %v851, %v503
    %v924 = vmul.f32 %v854, %v503
    %v925 = vmul.f32 %v857, %v503
    %v926 = vmul.f32 %v860, %v503
    %v927 = vmul.f32 %v863, %v503
    %v928 = vmul.f32 %v866, %v503
    %v929 = vmul.f32 %v869, %v503
    %v930 = vmul.f32 %v872, %v503
    %v931 = vmul.f32 %v875, %v503
    %v932 = vmul.f32 %v878, %v503
    %v933 = vmul.f32 %v881, %v503
    %v934 = vmul.f32 %v884, %v503
    %v935 = vmul.f32 %v887, %v503
    %v936 = vadd.f32 %v888, 1e-12
    %v937 = vadd.f32 %v889, 1e-12
    %v938 = vadd.f32 %v890, 1e-12
    %v939 = vadd.f32 %v891, 1e-12
    %v940 = vadd.f32 %v892, 1e-12
    %v941 = vadd.f32 %v893, 1e-12
    %v942 = vadd.f32 %v894, 1e-12
    %v943 = vadd.f32 %v895, 1e-12
    %v944 = vadd.f32 %v896, 1e-12
    %v945 = vadd.f32 %v897, 1e-12
    %v946 = vadd.f32 %v898, 1e-12
    %v947 = vadd.f32 %v899, 1e-12
    %v948 = vadd.f32 %v900, 1e-12
    %v949 = vadd.f32 %v901, 1e-12
    %v950 = vadd.f32 %v902, 1e-12
    %v951 = vadd.f32 %v903, 1e-12
    %v952 = vadd.f32 %v904, 1e-12
    %v953 = vadd.f32 %v905, 1e-12
    %v954 = vadd.f32 %v906, 1e-12
    %v955 = vadd.f32 %v907, 1e-12
    %v956 = vadd.f32 %v908, 1e-12
    %v957 = vadd.f32 %v909, 1e-12
    %v958 = vadd.f32 %v910, 1e-12
    %v959 = vadd.f32 %v911, 1e-12
    %v960 = vadd.f32 %v912, 1e-12
    %v961 = vadd.f32 %v913, 1e-12
    %v962 = vadd.f32 %v914, 1e-12
    %v963 = vadd.f32 %v915, 1e-12
    %v964 = vadd.f32 %v916, 1e-12
    %v965 = vadd.f32 %v917, 1e-12
    %v966 = vadd.f32 %v918, 1e-12
    %v967 = vadd.f32 %v919, 1e-12
    %v968 = vadd.f32 %v920, 1e-12
    %v969 = vadd.f32 %v921, 1e-12
    %v970 = vadd.f32 %v922, 1e-12
    %v971 = vadd.f32 %v923, 1e-12
    %v972 = vadd.f32 %v924, 1e-12
    %v973 = vadd.f32 %v925, 1e-12
    %v974 = vadd.f32 %v926, 1e-12
    %v975 = vadd.f32 %v927, 1e-12
    %v976 = vadd.f32 %v928, 1e-12
    %v977 = vadd.f32 %v929, 1e-12
    %v978 = vadd.f32 %v930, 1e-12
    %v979 = vadd.f32 %v931, 1e-12
    %v980 = vadd.f32 %v932, 1e-12
    %v981 = vadd.f32 %v933, 1e-12
    %v982 = vadd.f32 %v934, 1e-12
    %v983 = vadd.f32 %v935, 1e-12
    %v984 = vrsqrt.pop %v936
    %v985 = vrsqrt.pop %v937
    %v986 = vrsqrt.pop %v938
    %v987 = vrsqrt.pop %v939
    %v988 = vrsqrt.pop %v940
    %v989 = vrsqrt.pop %v941
    %v990 = vrsqrt.pop %v942
    %v991 = vrsqrt.pop %v943
    %v992 = vrsqrt.pop %v944
    %v993 = vrsqrt.pop %v945
    %v994 = vrsqrt.pop %v946
    %v995 = vrsqrt.pop %v947
    %v996 = vrsqrt.pop %v948
    %v997 = vrsqrt.pop %v949
    %v998 = vrsqrt.pop %v950
    %v999 = vrsqrt.pop %v951
    %v1000 = vrsqrt.pop %v952
    %v1001 = vrsqrt.pop %v953
    %v1002 = vrsqrt.pop %v954
    %v1003 = vrsqrt.pop %v955
    %v1004 = vrsqrt.pop %v956
    %v1005 = vrsqrt.pop %v957
    %v1006 = vrsqrt.pop %v958
    %v1007 = vrsqrt.pop %v959
    %v1008 = vrsqrt.pop %v960
    %v1009 = vrsqrt.pop %v961
    %v1010 = vrsqrt.pop %v962
    %v1011 = vrsqrt.pop %v963
    %v1012 = vrsqrt.pop %v964
    %v1013 = vrsqrt.pop %v965
    %v1014 = vrsqrt.pop %v966
    %v1015 = vrsqrt.pop %v967
    %v1016 = vrsqrt.pop %v968
    %v1017 = vrsqrt.pop %v969
    %v1018 = vrsqrt.pop %v970
    %v1019 = vrsqrt.pop %v971
    %v1020 = vrsqrt.pop %v972
    %v1021 = vrsqrt.pop %v973
    %v1022 = vrsqrt.pop %v974
    %v1023 = vrsqrt.pop %v975
    %v1024 = vrsqrt.pop %v976
    %v1025 = vrsqrt.pop %v977
    %v1026 = vrsqrt.pop %v978
    %v1027 = vrsqrt.pop %v979
    %v1028 = vrsqrt.pop %v980
    %v1029 = vrsqrt.pop %v981
    %v1030 = vrsqrt.pop %v982
    %v1031 = vrsqrt.pop %v983
    %v1032 = vmul.f32 %v552, %v984
    %v1033 = vmul.f32 %v553, %v984
    %v1034 = vmul.f32 %v554, %v985
    %v1035 = vmul.f32 %v555, %v985
    %v1036 = vmul.f32 %v556, %v986
    %v1037 = vmul.f32 %v557, %v986
    %v1038 = vmul.f32 %v558, %v987
    %v1039 = vmul.f32 %v559, %v987
    %v1040 = vmul.f32 %v560, %v988
    %v1041 = vmul.f32 %v561, %v988
    %v1042 = vmul.f32 %v562, %v989
    %v1043 = vmul.f32 %v563, %v989
    %v1044 = vmul.f32 %v564, %v990
    %v1045 = vmul.f32 %v565, %v990
    %v1046 = vmul.f32 %v566, %v991
    %v1047 = vmul.f32 %v567, %v991
    %v1048 = vmul.f32 %v568, %v992
    %v1049 = vmul.f32 %v569, %v992
    %v1050 = vmul.f32 %v570, %v993
    %v1051 = vmul.f32 %v571, %v993
    %v1052 = vmul.f32 %v572, %v994
    %v1053 = vmul.f32 %v573, %v994
    %v1054 = vmul.f32 %v574, %v995
    %v1055 = vmul.f32 %v575, %v995
    %v1056 = vmul.f32 %v576, %v996
    %v1057 = vmul.f32 %v577, %v996
    %v1058 = vmul.f32 %v578, %v997
    %v1059 = vmul.f32 %v579, %v997
    %v1060 = vmul.f32 %v580, %v998
    %v1061 = vmul.f32 %v581, %v998
    %v1062 = vmul.f32 %v582, %v999
    %v1063 = vmul.f32 %v583, %v999
    %v1064 = vmul.f32 %v584, %v1000
    %v1065 = vmul.f32 %v585, %v1000
    %v1066 = vmul.f32 %v586, %v1001
    %v1067 = vmul.f32 %v587, %v1001
    %v1068 = vmul.f32 %v588, %v1002
    %v1069 = vmul.f32 %v589, %v1002
    %v1070 = vmul.f32 %v590, %v1003
    %v1071 = vmul.f32 %v591, %v1003
    %v1072 = vmul.f32 %v592, %v1004
    %v1073 = vmul.f32 %v593, %v1004
    %v1074 = vmul.f32 %v594, %v1005
    %v1075 = vmul.f32 %v595, %v1005
    %v1076 = vmul.f32 %v596, %v1006
    %v1077 = vmul.f32 %v597, %v1006
    %v1078 = vmul.f32 %v598, %v1007
    %v1079 = vmul.f32 %v599, %v1007
    %v1080 = vmul.f32 %v600, %v1008
    %v1081 = vmul.f32 %v601, %v1008
    %v1082 = vmul.f32 %v602, %v1009
    %v1083 = vmul.f32 %v603, %v1009
    %v1084 = vmul.f32 %v604, %v1010
    %v1085 = vmul.f32 %v605, %v1010
    %v1086 = vmul.f32 %v606, %v1011
    %v1087 = vmul.f32 %v607, %v1011
    %v1088 = vmul.f32 %v608, %v1012
    %v1089 = vmul.f32 %v609, %v1012
    %v1090 = vmul.f32 %v610, %v1013
    %v1091 = vmul.f32 %v611, %v1013
    %v1092 = vmul.f32 %v612, %v1014
    %v1093 = vmul.f32 %v613, %v1014
    %v1094 = vmul.f32 %v614, %v1015
    %v1095 = vmul.f32 %v615, %v1015
    %v1096 = vmul.f32 %v616, %v1016
    %v1097 = vmul.f32 %v617, %v1016
    %v1098 = vmul.f32 %v618, %v1017
    %v1099 = vmul.f32 %v619, %v1017
    %v1100 = vmul.f32 %v620, %v1018
    %v1101 = vmul.f32 %v621, %v1018
    %v1102 = vmul.f32 %v622, %v1019
    %v1103 = vmul.f32 %v623, %v1019
    %v1104 = vmul.f32 %v624, %v1020
    %v1105 = vmul.f32 %v625, %v1020
    %v1106 = vmul.f32 %v626, %v1021
    %v1107 = vmul.f32 %v627, %v1021
    %v1108 = vmul.f32 %v628, %v1022
    %v1109 = vmul.f32 %v629, %v1022
    %v1110 = vmul.f32 %v630, %v1023
    %v1111 = vmul.f32 %v631, %v1023
    %v1112 = vmul.f32 %v632, %v1024
    %v1113 = vmul.f32 %v633, %v1024
    %v1114 = vmul.f32 %v634, %v1025
    %v1115 = vmul.f32 %v635, %v1025
    %v1116 = vmul.f32 %v636, %v1026
    %v1117 = vmul.f32 %v637, %v1026
    %v1118 = vmul.f32 %v638, %v1027
    %v1119 = vmul.f32 %v639, %v1027
    %v1120 = vmul.f32 %v640, %v1028
    %v1121 = vmul.f32 %v641, %v1028
    %v1122 = vmul.f32 %v642, %v1029
    %v1123 = vmul.f32 %v643, %v1029
    %v1124 = vmul.f32 %v644, %v1030
    %v1125 = vmul.f32 %v645, %v1030
    %v1126 = vmul.f32 %v646, %v1031
    %v1127 = vmul.f32 %v647, %v1031
    %v1128 = vpack.c.bf16 %v1034, %v1032
    %v1129 = vpack.c.bf16 %v1035, %v1033
    %v1130 = vpack.c.bf16 %v1038, %v1036
    %v1131 = vpack.c.bf16 %v1039, %v1037
    %v1132 = vpack.c.bf16 %v1042, %v1040
    %v1133 = vpack.c.bf16 %v1043, %v1041
    %v1134 = vpack.c.bf16 %v1046, %v1044
    %v1135 = vpack.c.bf16 %v1047, %v1045
    %v1136 = vpack.c.bf16 %v1050, %v1048
    %v1137 = vpack.c.bf16 %v1051, %v1049
    %v1138 = vpack.c.bf16 %v1054, %v1052
    %v1139 = vpack.c.bf16 %v1055, %v1053
    %v1140 = vpack.c.bf16 %v1058, %v1056
    %v1141 = vpack.c.bf16 %v1059, %v1057
    %v1142 = vpack.c.bf16 %v1062, %v1060
    %v1143 = vpack.c.bf16 %v1063, %v1061
    %v1144 = vpack.c.bf16 %v1066, %v1064
    %v1145 = vpack.c.bf16 %v1067, %v1065
    %v1146 = vpack.c.bf16 %v1070, %v1068
    %v1147 = vpack.c.bf16 %v1071, %v1069
    %v1148 = vpack.c.bf16 %v1074, %v1072
    %v1149 = vpack.c.bf16 %v1075, %v1073
    %v1150 = vpack.c.bf16 %v1078, %v1076
    %v1151 = vpack.c.bf16 %v1079, %v1077
    %v1152 = vpack.c.bf16 %v1082, %v1080
    %v1153 = vpack.c.bf16 %v1083, %v1081
    %v1154 = vpack.c.bf16 %v1086, %v1084
    %v1155 = vpack.c.bf16 %v1087, %v1085
    %v1156 = vpack.c.bf16 %v1090, %v1088
    %v1157 = vpack.c.bf16 %v1091, %v1089
    %v1158 = vpack.c.bf16 %v1094, %v1092
    %v1159 = vpack.c.bf16 %v1095, %v1093
    %v1160 = vpack.c.bf16 %v1098, %v1096
    %v1161 = vpack.c.bf16 %v1099, %v1097
    %v1162 = vpack.c.bf16 %v1102, %v1100
    %v1163 = vpack.c.bf16 %v1103, %v1101
    %v1164 = vpack.c.bf16 %v1106, %v1104
    %v1165 = vpack.c.bf16 %v1107, %v1105
    %v1166 = vpack.c.bf16 %v1110, %v1108
    %v1167 = vpack.c.bf16 %v1111, %v1109
    %v1168 = vpack.c.bf16 %v1114, %v1112
    %v1169 = vpack.c.bf16 %v1115, %v1113
    %v1170 = vpack.c.bf16 %v1118, %v1116
    %v1171 = vpack.c.bf16 %v1119, %v1117
    %v1172 = vpack.c.bf16 %v1122, %v1120
    %v1173 = vpack.c.bf16 %v1123, %v1121
    %v1174 = vpack.c.bf16 %v1126, %v1124
    %v1175 = vpack.c.bf16 %v1127, %v1125
    %v1176 = vld [vmem:[#allocation7] sm:$0xff]
    %v1177 = vld [vmem:[#allocation7 + $0x8] sm:$0xff]
    %v1178 = vld [vmem:[#allocation7 + $0x10] sm:$0xff]
    %v1179 = vld [vmem:[#allocation7 + $0x18] sm:$0xff]
    %v1180 = vld [vmem:[#allocation7 + $0x20] sm:$0xff]
    %v1181 = vld [vmem:[#allocation7 + $0x28] sm:$0xff]
    %v1182 = vld [vmem:[#allocation7 + $0x30] sm:$0xff]
    %v1183 = vld [vmem:[#allocation7 + $0x38] sm:$0xff]
    %v1184 = vld [vmem:[#allocation7 + $0x40] sm:$0xff]
    %v1185 = vld [vmem:[#allocation7 + $0x48] sm:$0xff]
    %v1186 = vld [vmem:[#allocation7 + $0x50] sm:$0xff]
    %v1187 = vld [vmem:[#allocation7 + $0x58] sm:$0xff]
    %v1188 = vld [vmem:[#allocation7 + $0x60] sm:$0xff]
    %v1189 = vld [vmem:[#allocation7 + $0x68] sm:$0xff]
    %v1190 = vld [vmem:[#allocation7 + $0x70] sm:$0xff]
    %v1191 = vld [vmem:[#allocation7 + $0x78] sm:$0xff]
    %v1192 = vld [vmem:[#allocation7 + $0x80] sm:$0xff]
    %v1193 = vld [vmem:[#allocation7 + $0x88] sm:$0xff]
    %v1194 = vld [vmem:[#allocation7 + $0x90] sm:$0xff]
    %v1195 = vld [vmem:[#allocation7 + $0x98] sm:$0xff]
    %v1196 = vld [vmem:[#allocation7 + $0xa0] sm:$0xff]
    %v1197 = vld [vmem:[#allocation7 + $0xa8] sm:$0xff]
    %v1198 = vld [vmem:[#allocation7 + $0xb0] sm:$0xff]
    %v1199 = vld [vmem:[#allocation7 + $0xb8] sm:$0xff]
    %v1200 = vld [vmem:[#allocation7 + $0xc0] sm:$0xff]
    %v1201 = vld [vmem:[#allocation7 + $0xc8] sm:$0xff]
    %v1202 = vld [vmem:[#allocation7 + $0xd0] sm:$0xff]
    %v1203 = vld [vmem:[#allocation7 + $0xd8] sm:$0xff]
    %v1204 = vld [vmem:[#allocation7 + $0xe0] sm:$0xff]
    %v1205 = vld [vmem:[#allocation7 + $0xe8] sm:$0xff]
    %v1206 = vld [vmem:[#allocation7 + $0xf0] sm:$0xff]
    %v1207 = vld [vmem:[#allocation7 + $0xf8] sm:$0xff]
    %v1208 = vld [vmem:[#allocation7 + $0x100] sm:$0xff]
    %v1209 = vld [vmem:[#allocation7 + $0x108] sm:$0xff]
    %v1210 = vld [vmem:[#allocation7 + $0x110] sm:$0xff]
    %v1211 = vld [vmem:[#allocation7 + $0x118] sm:$0xff]
    %v1212 = vld [vmem:[#allocation7 + $0x120] sm:$0xff]
    %v1213 = vld [vmem:[#allocation7 + $0x128] sm:$0xff]
    %v1214 = vld [vmem:[#allocation7 + $0x130] sm:$0xff]
    %v1215 = vld [vmem:[#allocation7 + $0x138] sm:$0xff]
    %v1216 = vld [vmem:[#allocation7 + $0x140] sm:$0xff]
    %v1217 = vld [vmem:[#allocation7 + $0x148] sm:$0xff]
    %v1218 = vld [vmem:[#allocation7 + $0x150] sm:$0xff]
    %v1219 = vld [vmem:[#allocation7 + $0x158] sm:$0xff]
    %v1220 = vld [vmem:[#allocation7 + $0x160] sm:$0xff]
    %v1221 = vld [vmem:[#allocation7 + $0x168] sm:$0xff]
    %v1222 = vld [vmem:[#allocation7 + $0x170] sm:$0xff]
    %v1223 = vld [vmem:[#allocation7 + $0x178] sm:$0xff]
    %v1224 = vld [vmem:[#allocation7 + $0x180] sm:$0xff]
    %v1225 = vld [vmem:[#allocation7 + $0x188] sm:$0xff]
    %v1226 = vld [vmem:[#allocation7 + $0x190] sm:$0xff]
    %v1227 = vld [vmem:[#allocation7 + $0x198] sm:$0xff]
    %v1228 = vld [vmem:[#allocation7 + $0x1a0] sm:$0xff]
    %v1229 = vld [vmem:[#allocation7 + $0x1a8] sm:$0xff]
    %v1230 = vld [vmem:[#allocation7 + $0x1b0] sm:$0xff]
    %v1231 = vld [vmem:[#allocation7 + $0x1b8] sm:$0xff]
    %v1232 = vld [vmem:[#allocation7 + $0x1c0] sm:$0xff]
    %v1233 = vld [vmem:[#allocation7 + $0x1c8] sm:$0xff]
    %v1234 = vld [vmem:[#allocation7 + $0x1d0] sm:$0xff]
    %v1235 = vld [vmem:[#allocation7 + $0x1d8] sm:$0xff]
    %v1236 = vld [vmem:[#allocation7 + $0x1e0] sm:$0xff]
    %v1237 = vld [vmem:[#allocation7 + $0x1e8] sm:$0xff]
    %v1238 = vld [vmem:[#allocation7 + $0x1f0] sm:$0xff]
    %v1239 = vld [vmem:[#allocation7 + $0x1f8] sm:$0xff]
    %v1240 = vld [vmem:[#allocation7 + $0x200] sm:$0xff]
    %v1241 = vld [vmem:[#allocation7 + $0x208] sm:$0xff]
    %v1242 = vld [vmem:[#allocation7 + $0x210] sm:$0xff]
    %v1243 = vld [vmem:[#allocation7 + $0x218] sm:$0xff]
    %v1244 = vld [vmem:[#allocation7 + $0x220] sm:$0xff]
    %v1245 = vld [vmem:[#allocation7 + $0x228] sm:$0xff]
    %v1246 = vld [vmem:[#allocation7 + $0x230] sm:$0xff]
    %v1247 = vld [vmem:[#allocation7 + $0x238] sm:$0xff]
    %v1248 = vld [vmem:[#allocation7 + $0x240] sm:$0xff]
    %v1249 = vld [vmem:[#allocation7 + $0x248] sm:$0xff]
    %v1250 = vld [vmem:[#allocation7 + $0x250] sm:$0xff]
    %v1251 = vld [vmem:[#allocation7 + $0x258] sm:$0xff]
    %v1252 = vld [vmem:[#allocation7 + $0x260] sm:$0xff]
    %v1253 = vld [vmem:[#allocation7 + $0x268] sm:$0xff]
    %v1254 = vld [vmem:[#allocation7 + $0x270] sm:$0xff]
    %v1255 = vld [vmem:[#allocation7 + $0x278] sm:$0xff]
    %v1256 = vld [vmem:[#allocation7 + $0x280] sm:$0xff]
    %v1257 = vld [vmem:[#allocation7 + $0x288] sm:$0xff]
    %v1258 = vld [vmem:[#allocation7 + $0x290] sm:$0xff]
    %v1259 = vld [vmem:[#allocation7 + $0x298] sm:$0xff]
    %v1260 = vld [vmem:[#allocation7 + $0x2a0] sm:$0xff]
    %v1261 = vld [vmem:[#allocation7 + $0x2a8] sm:$0xff]
    %v1262 = vld [vmem:[#allocation7 + $0x2b0] sm:$0xff]
    %v1263 = vld [vmem:[#allocation7 + $0x2b8] sm:$0xff]
    %v1264 = vld [vmem:[#allocation7 + $0x2c0] sm:$0xff]
    %v1265 = vld [vmem:[#allocation7 + $0x2c8] sm:$0xff]
    %v1266 = vld [vmem:[#allocation7 + $0x2d0] sm:$0xff]
    %v1267 = vld [vmem:[#allocation7 + $0x2d8] sm:$0xff]
    %v1268 = vld [vmem:[#allocation7 + $0x2e0] sm:$0xff]
    %v1269 = vld [vmem:[#allocation7 + $0x2e8] sm:$0xff]
    %v1270 = vld [vmem:[#allocation7 + $0x2f0] sm:$0xff]
    %v1271 = vld [vmem:[#allocation7 + $0x2f8] sm:$0xff]
    %v1272 = vld [vmem:[#allocation7 + $0x300] sm:$0xff]
    %v1273 = vld [vmem:[#allocation7 + $0x308] sm:$0xff]
    %v1274 = vld [vmem:[#allocation7 + $0x310] sm:$0xff]
    %v1275 = vld [vmem:[#allocation7 + $0x318] sm:$0xff]
    %v1276 = vld [vmem:[#allocation7 + $0x320] sm:$0xff]
    %v1277 = vld [vmem:[#allocation7 + $0x328] sm:$0xff]
    %v1278 = vld [vmem:[#allocation7 + $0x330] sm:$0xff]
    %v1279 = vld [vmem:[#allocation7 + $0x338] sm:$0xff]
    %v1280 = vld [vmem:[#allocation7 + $0x340] sm:$0xff]
    %v1281 = vld [vmem:[#allocation7 + $0x348] sm:$0xff]
    %v1282 = vld [vmem:[#allocation7 + $0x350] sm:$0xff]
    %v1283 = vld [vmem:[#allocation7 + $0x358] sm:$0xff]
    %v1284 = vld [vmem:[#allocation7 + $0x360] sm:$0xff]
    %v1285 = vld [vmem:[#allocation7 + $0x368] sm:$0xff]
    %v1286 = vld [vmem:[#allocation7 + $0x370] sm:$0xff]
    %v1287 = vld [vmem:[#allocation7 + $0x378] sm:$0xff]
    %v1288 = vld [vmem:[#allocation7 + $0x380] sm:$0xff]
    %v1289 = vld [vmem:[#allocation7 + $0x388] sm:$0xff]
    %v1290 = vld [vmem:[#allocation7 + $0x390] sm:$0xff]
    %v1291 = vld [vmem:[#allocation7 + $0x398] sm:$0xff]
    %v1292 = vld [vmem:[#allocation7 + $0x3a0] sm:$0xff]
    %v1293 = vld [vmem:[#allocation7 + $0x3a8] sm:$0xff]
    %v1294 = vld [vmem:[#allocation7 + $0x3b0] sm:$0xff]
    %v1295 = vld [vmem:[#allocation7 + $0x3b8] sm:$0xff]
    %v1296 = vld [vmem:[#allocation7 + $0x3c0] sm:$0xff]
    %v1297 = vld [vmem:[#allocation7 + $0x3c8] sm:$0xff]
    %v1298 = vld [vmem:[#allocation7 + $0x3d0] sm:$0xff]
    %v1299 = vld [vmem:[#allocation7 + $0x3d8] sm:$0xff]
    %v1300 = vld [vmem:[#allocation7 + $0x3e0] sm:$0xff]
    %v1301 = vld [vmem:[#allocation7 + $0x3e8] sm:$0xff]
    %v1302 = vld [vmem:[#allocation7 + $0x3f0] sm:$0xff]
    %v1303 = vld [vmem:[#allocation7 + $0x3f8] sm:$0xff]
    %v1304 = vld [vmem:[#allocation8] sm:$0xff]
    %v1306 = vlaneseq
    %v1307 = vshrl.u32 %v1306, 7
    %v1308 = vsub.s32 0, %v1307
    %v1309 = vrot.slane %v1304, %v1308
    %v1310 = vlaneseq
    %v1311 = vshrl.u32 %v1310, 7
    %v1312 = vsub.s32 1, %v1311
    %v1313 = vrot.slane %v1304, %v1312
    %v1314 = vlaneseq
    %v1315 = vshrl.u32 %v1314, 7
    %v1316 = vsub.s32 2, %v1315
    %v1317 = vrot.slane %v1304, %v1316
    %v1318 = vlaneseq
    %v1319 = vshrl.u32 %v1318, 7
    %v1320 = vsub.s32 3, %v1319
    %v1321 = vrot.slane %v1304, %v1320
    %v1322 = vlaneseq
    %v1323 = vshrl.u32 %v1322, 7
    %v1324 = vsub.s32 4, %v1323
    %v1325 = vrot.slane %v1304, %v1324
    %v1326 = vlaneseq
    %v1327 = vshrl.u32 %v1326, 7
    %v1328 = vsub.s32 5, %v1327
    %v1329 = vrot.slane %v1304, %v1328
    %v1330 = vlaneseq
    %v1331 = vshrl.u32 %v1330, 7
    %v1332 = vsub.s32 6, %v1331
    %v1333 = vrot.slane %v1304, %v1332
    %v1334 = vlaneseq
    %v1335 = vshrl.u32 %v1334, 7
    %v1336 = vsub.s32 7, %v1335
    %v1337 = vrot.slane %v1304, %v1336
    %v1474 = vunpack.c.l.b16 %v1176
    %v1475 = vunpack.c.h.b16 %v1176
    %v1476 = vunpack.c.l.b16 %v1177
    %v1477 = vunpack.c.h.b16 %v1177
    %v1478 = vunpack.c.l.b16 %v1178
    %v1479 = vunpack.c.h.b16 %v1178
    %v1480 = vunpack.c.l.b16 %v1179
    %v1481 = vunpack.c.h.b16 %v1179
    %v1482 = vunpack.c.l.b16 %v1180
    %v1483 = vunpack.c.h.b16 %v1180
    %v1484 = vunpack.c.l.b16 %v1181
    %v1485 = vunpack.c.h.b16 %v1181
    %v1486 = vunpack.c.l.b16 %v1182
    %v1487 = vunpack.c.h.b16 %v1182
    %v1488 = vunpack.c.l.b16 %v1183
    %v1489 = vunpack.c.h.b16 %v1183
    %v1490 = vunpack.c.l.b16 %v1184
    %v1491 = vunpack.c.h.b16 %v1184
    %v1492 = vunpack.c.l.b16 %v1185
    %v1493 = vunpack.c.h.b16 %v1185
    %v1494 = vunpack.c.l.b16 %v1186
    %v1495 = vunpack.c.h.b16 %v1186
    %v1496 = vunpack.c.l.b16 %v1187
    %v1497 = vunpack.c.h.b16 %v1187
    %v1498 = vunpack.c.l.b16 %v1188
    %v1499 = vunpack.c.h.b16 %v1188
    %v1500 = vunpack.c.l.b16 %v1189
    %v1501 = vunpack.c.h.b16 %v1189
    %v1502 = vunpack.c.l.b16 %v1190
    %v1503 = vunpack.c.h.b16 %v1190
    %v1504 = vunpack.c.l.b16 %v1191
    %v1505 = vunpack.c.h.b16 %v1191
    %v1506 = vunpack.c.l.b16 %v1192
    %v1507 = vunpack.c.h.b16 %v1192
    %v1508 = vunpack.c.l.b16 %v1193
    %v1509 = vunpack.c.h.b16 %v1193
    %v1510 = vunpack.c.l.b16 %v1194
    %v1511 = vunpack.c.h.b16 %v1194
    %v1512 = vunpack.c.l.b16 %v1195
    %v1513 = vunpack.c.h.b16 %v1195
    %v1514 = vunpack.c.l.b16 %v1196
    %v1515 = vunpack.c.h.b16 %v1196
    %v1516 = vunpack.c.l.b16 %v1197
    %v1517 = vunpack.c.h.b16 %v1197
    %v1518 = vunpack.c.l.b16 %v1198
    %v1519 = vunpack.c.h.b16 %v1198
    %v1520 = vunpack.c.l.b16 %v1199
    %v1521 = vunpack.c.h.b16 %v1199
    %v1522 = vunpack.c.l.b16 %v1200
    %v1523 = vunpack.c.h.b16 %v1200
    %v1524 = vunpack.c.l.b16 %v1201
    %v1525 = vunpack.c.h.b16 %v1201
    %v1526 = vunpack.c.l.b16 %v1202
    %v1527 = vunpack.c.h.b16 %v1202
    %v1528 = vunpack.c.l.b16 %v1203
    %v1529 = vunpack.c.h.b16 %v1203
    %v1530 = vunpack.c.l.b16 %v1204
    %v1531 = vunpack.c.h.b16 %v1204
    %v1532 = vunpack.c.l.b16 %v1205
    %v1533 = vunpack.c.h.b16 %v1205
    %v1534 = vunpack.c.l.b16 %v1206
    %v1535 = vunpack.c.h.b16 %v1206
    %v1536 = vunpack.c.l.b16 %v1207
    %v1537 = vunpack.c.h.b16 %v1207
    %v1538 = vunpack.c.l.b16 %v1208
    %v1539 = vunpack.c.h.b16 %v1208
    %v1540 = vunpack.c.l.b16 %v1209
    %v1541 = vunpack.c.h.b16 %v1209
    %v1542 = vunpack.c.l.b16 %v1210
    %v1543 = vunpack.c.h.b16 %v1210
    %v1544 = vunpack.c.l.b16 %v1211
    %v1545 = vunpack.c.h.b16 %v1211
    %v1546 = vunpack.c.l.b16 %v1212
    %v1547 = vunpack.c.h.b16 %v1212
    %v1548 = vunpack.c.l.b16 %v1213
    %v1549 = vunpack.c.h.b16 %v1213
    %v1550 = vunpack.c.l.b16 %v1214
    %v1551 = vunpack.c.h.b16 %v1214
    %v1552 = vunpack.c.l.b16 %v1215
    %v1553 = vunpack.c.h.b16 %v1215
    %v1554 = vunpack.c.l.b16 %v1216
    %v1555 = vunpack.c.h.b16 %v1216
    %v1556 = vunpack.c.l.b16 %v1217
    %v1557 = vunpack.c.h.b16 %v1217
    %v1558 = vunpack.c.l.b16 %v1218
    %v1559 = vunpack.c.h.b16 %v1218
    %v1560 = vunpack.c.l.b16 %v1219
    %v1561 = vunpack.c.h.b16 %v1219
    %v1562 = vunpack.c.l.b16 %v1220
    %v1563 = vunpack.c.h.b16 %v1220
    %v1564 = vunpack.c.l.b16 %v1221
    %v1565 = vunpack.c.h.b16 %v1221
    %v1566 = vunpack.c.l.b16 %v1222
    %v1567 = vunpack.c.h.b16 %v1222
    %v1568 = vunpack.c.l.b16 %v1223
    %v1569 = vunpack.c.h.b16 %v1223
    %v1570 = vunpack.c.l.b16 %v1224
    %v1571 = vunpack.c.h.b16 %v1224
    %v1572 = vunpack.c.l.b16 %v1225
    %v1573 = vunpack.c.h.b16 %v1225
    %v1574 = vunpack.c.l.b16 %v1226
    %v1575 = vunpack.c.h.b16 %v1226
    %v1576 = vunpack.c.l.b16 %v1227
    %v1577 = vunpack.c.h.b16 %v1227
    %v1578 = vunpack.c.l.b16 %v1228
    %v1579 = vunpack.c.h.b16 %v1228
    %v1580 = vunpack.c.l.b16 %v1229
    %v1581 = vunpack.c.h.b16 %v1229
    %v1582 = vunpack.c.l.b16 %v1230
    %v1583 = vunpack.c.h.b16 %v1230
    %v1584 = vunpack.c.l.b16 %v1231
    %v1585 = vunpack.c.h.b16 %v1231
    %v1586 = vunpack.c.l.b16 %v1232
    %v1587 = vunpack.c.h.b16 %v1232
    %v1588 = vunpack.c.l.b16 %v1233
    %v1589 = vunpack.c.h.b16 %v1233
    %v1590 = vunpack.c.l.b16 %v1234
    %v1591 = vunpack.c.h.b16 %v1234
    %v1592 = vunpack.c.l.b16 %v1235
    %v1593 = vunpack.c.h.b16 %v1235
    %v1594 = vunpack.c.l.b16 %v1236
    %v1595 = vunpack.c.h.b16 %v1236
    %v1596 = vunpack.c.l.b16 %v1237
    %v1597 = vunpack.c.h.b16 %v1237
    %v1598 = vunpack.c.l.b16 %v1238
    %v1599 = vunpack.c.h.b16 %v1238
    %v1600 = vunpack.c.l.b16 %v1239
    %v1601 = vunpack.c.h.b16 %v1239
    %v1602 = vunpack.c.l.b16 %v1240
    %v1603 = vunpack.c.h.b16 %v1240
    %v1604 = vunpack.c.l.b16 %v1241
    %v1605 = vunpack.c.h.b16 %v1241
    %v1606 = vunpack.c.l.b16 %v1242
    %v1607 = vunpack.c.h.b16 %v1242
    %v1608 = vunpack.c.l.b16 %v1243
    %v1609 = vunpack.c.h.b16 %v1243
    %v1610 = vunpack.c.l.b16 %v1244
    %v1611 = vunpack.c.h.b16 %v1244
    %v1612 = vunpack.c.l.b16 %v1245
    %v1613 = vunpack.c.h.b16 %v1245
    %v1614 = vunpack.c.l.b16 %v1246
    %v1615 = vunpack.c.h.b16 %v1246
    %v1616 = vunpack.c.l.b16 %v1247
    %v1617 = vunpack.c.h.b16 %v1247
    %v1618 = vunpack.c.l.b16 %v1248
    %v1619 = vunpack.c.h.b16 %v1248
    %v1620 = vunpack.c.l.b16 %v1249
    %v1621 = vunpack.c.h.b16 %v1249
    %v1622 = vunpack.c.l.b16 %v1250
    %v1623 = vunpack.c.h.b16 %v1250
    %v1624 = vunpack.c.l.b16 %v1251
    %v1625 = vunpack.c.h.b16 %v1251
    %v1626 = vunpack.c.l.b16 %v1252
    %v1627 = vunpack.c.h.b16 %v1252
    %v1628 = vunpack.c.l.b16 %v1253
    %v1629 = vunpack.c.h.b16 %v1253
    %v1630 = vunpack.c.l.b16 %v1254
    %v1631 = vunpack.c.h.b16 %v1254
    %v1632 = vunpack.c.l.b16 %v1255
    %v1633 = vunpack.c.h.b16 %v1255
    %v1634 = vunpack.c.l.b16 %v1256
    %v1635 = vunpack.c.h.b16 %v1256
    %v1636 = vunpack.c.l.b16 %v1257
    %v1637 = vunpack.c.h.b16 %v1257
    %v1638 = vunpack.c.l.b16 %v1258
    %v1639 = vunpack.c.h.b16 %v1258
    %v1640 = vunpack.c.l.b16 %v1259
    %v1641 = vunpack.c.h.b16 %v1259
    %v1642 = vunpack.c.l.b16 %v1260
    %v1643 = vunpack.c.h.b16 %v1260
    %v1644 = vunpack.c.l.b16 %v1261
    %v1645 = vunpack.c.h.b16 %v1261
    %v1646 = vunpack.c.l.b16 %v1262
    %v1647 = vunpack.c.h.b16 %v1262
    %v1648 = vunpack.c.l.b16 %v1263
    %v1649 = vunpack.c.h.b16 %v1263
    %v1650 = vunpack.c.l.b16 %v1264
    %v1651 = vunpack.c.h.b16 %v1264
    %v1652 = vunpack.c.l.b16 %v1265
    %v1653 = vunpack.c.h.b16 %v1265
    %v1654 = vunpack.c.l.b16 %v1266
    %v1655 = vunpack.c.h.b16 %v1266
    %v1656 = vunpack.c.l.b16 %v1267
    %v1657 = vunpack.c.h.b16 %v1267
    %v1658 = vunpack.c.l.b16 %v1268
    %v1659 = vunpack.c.h.b16 %v1268
    %v1660 = vunpack.c.l.b16 %v1269
    %v1661 = vunpack.c.h.b16 %v1269
    %v1662 = vunpack.c.l.b16 %v1270
    %v1663 = vunpack.c.h.b16 %v1270
    %v1664 = vunpack.c.l.b16 %v1271
    %v1665 = vunpack.c.h.b16 %v1271
    %v1666 = vunpack.c.l.b16 %v1272
    %v1667 = vunpack.c.h.b16 %v1272
    %v1668 = vunpack.c.l.b16 %v1273
    %v1669 = vunpack.c.h.b16 %v1273
    %v1670 = vunpack.c.l.b16 %v1274
    %v1671 = vunpack.c.h.b16 %v1274
    %v1672 = vunpack.c.l.b16 %v1275
    %v1673 = vunpack.c.h.b16 %v1275
    %v1674 = vunpack.c.l.b16 %v1276
    %v1675 = vunpack.c.h.b16 %v1276
    %v1676 = vunpack.c.l.b16 %v1277
    %v1677 = vunpack.c.h.b16 %v1277
    %v1678 = vunpack.c.l.b16 %v1278
    %v1679 = vunpack.c.h.b16 %v1278
    %v1680 = vunpack.c.l.b16 %v1279
    %v1681 = vunpack.c.h.b16 %v1279
    %v1682 = vunpack.c.l.b16 %v1280
    %v1683 = vunpack.c.h.b16 %v1280
    %v1684 = vunpack.c.l.b16 %v1281
    %v1685 = vunpack.c.h.b16 %v1281
    %v1686 = vunpack.c.l.b16 %v1282
    %v1687 = vunpack.c.h.b16 %v1282
    %v1688 = vunpack.c.l.b16 %v1283
    %v1689 = vunpack.c.h.b16 %v1283
    %v1690 = vunpack.c.l.b16 %v1284
    %v1691 = vunpack.c.h.b16 %v1284
    %v1692 = vunpack.c.l.b16 %v1285
    %v1693 = vunpack.c.h.b16 %v1285
    %v1694 = vunpack.c.l.b16 %v1286
    %v1695 = vunpack.c.h.b16 %v1286
    %v1696 = vunpack.c.l.b16 %v1287
    %v1697 = vunpack.c.h.b16 %v1287
    %v1698 = vunpack.c.l.b16 %v1288
    %v1699 = vunpack.c.h.b16 %v1288
    %v1700 = vunpack.c.l.b16 %v1289
    %v1701 = vunpack.c.h.b16 %v1289
    %v1702 = vunpack.c.l.b16 %v1290
    %v1703 = vunpack.c.h.b16 %v1290
    %v1704 = vunpack.c.l.b16 %v1291
    %v1705 = vunpack.c.h.b16 %v1291
    %v1706 = vunpack.c.l.b16 %v1292
    %v1707 = vunpack.c.h.b16 %v1292
    %v1708 = vunpack.c.l.b16 %v1293
    %v1709 = vunpack.c.h.b16 %v1293
    %v1710 = vunpack.c.l.b16 %v1294
    %v1711 = vunpack.c.h.b16 %v1294
    %v1712 = vunpack.c.l.b16 %v1295
    %v1713 = vunpack.c.h.b16 %v1295
    %v1714 = vunpack.c.l.b16 %v1296
    %v1715 = vunpack.c.h.b16 %v1296
    %v1716 = vunpack.c.l.b16 %v1297
    %v1717 = vunpack.c.h.b16 %v1297
    %v1718 = vunpack.c.l.b16 %v1298
    %v1719 = vunpack.c.h.b16 %v1298
    %v1720 = vunpack.c.l.b16 %v1299
    %v1721 = vunpack.c.h.b16 %v1299
    %v1722 = vunpack.c.l.b16 %v1300
    %v1723 = vunpack.c.h.b16 %v1300
    %v1724 = vunpack.c.l.b16 %v1301
    %v1725 = vunpack.c.h.b16 %v1301
    %v1726 = vunpack.c.l.b16 %v1302
    %v1727 = vunpack.c.h.b16 %v1302
    %v1728 = vunpack.c.l.b16 %v1303
    %v1729 = vunpack.c.h.b16 %v1303
    %v1730 = vpack.c.b16 %v1482, %v1474
    %v1731 = vpack.c.b16 %v1483, %v1475
    %v1732 = vpack.c.b16 %v1484, %v1476
    %v1733 = vpack.c.b16 %v1485, %v1477
    %v1734 = vpack.c.b16 %v1486, %v1478
    %v1735 = vpack.c.b16 %v1487, %v1479
    %v1736 = vpack.c.b16 %v1488, %v1480
    %v1737 = vpack.c.b16 %v1489, %v1481
    %v1738 = vpack.c.b16 %v1498, %v1490
    %v1739 = vpack.c.b16 %v1499, %v1491
    %v1740 = vpack.c.b16 %v1500, %v1492
    %v1741 = vpack.c.b16 %v1501, %v1493
    %v1742 = vpack.c.b16 %v1502, %v1494
    %v1743 = vpack.c.b16 %v1503, %v1495
    %v1744 = vpack.c.b16 %v1504, %v1496
    %v1745 = vpack.c.b16 %v1505, %v1497
    %v1746 = vpack.c.b16 %v1514, %v1506
    %v1747 = vpack.c.b16 %v1515, %v1507
    %v1748 = vpack.c.b16 %v1516, %v1508
    %v1749 = vpack.c.b16 %v1517, %v1509
    %v1750 = vpack.c.b16 %v1518, %v1510
    %v1751 = vpack.c.b16 %v1519, %v1511
    %v1752 = vpack.c.b16 %v1520, %v1512
    %v1753 = vpack.c.b16 %v1521, %v1513
    %v1754 = vpack.c.b16 %v1530, %v1522
    %v1755 = vpack.c.b16 %v1531, %v1523
    %v1756 = vpack.c.b16 %v1532, %v1524
    %v1757 = vpack.c.b16 %v1533, %v1525
    %v1758 = vpack.c.b16 %v1534, %v1526
    %v1759 = vpack.c.b16 %v1535, %v1527
    %v1760 = vpack.c.b16 %v1536, %v1528
    %v1761 = vpack.c.b16 %v1537, %v1529
    %v1762 = vpack.c.b16 %v1546, %v1538
    %v1763 = vpack.c.b16 %v1547, %v1539
    %v1764 = vpack.c.b16 %v1548, %v1540
    %v1765 = vpack.c.b16 %v1549, %v1541
    %v1766 = vpack.c.b16 %v1550, %v1542
    %v1767 = vpack.c.b16 %v1551, %v1543
    %v1768 = vpack.c.b16 %v1552, %v1544
    %v1769 = vpack.c.b16 %v1553, %v1545
    %v1770 = vpack.c.b16 %v1562, %v1554
    %v1771 = vpack.c.b16 %v1563, %v1555
    %v1772 = vpack.c.b16 %v1564, %v1556
    %v1773 = vpack.c.b16 %v1565, %v1557
    %v1774 = vpack.c.b16 %v1566, %v1558
    %v1775 = vpack.c.b16 %v1567, %v1559
    %v1776 = vpack.c.b16 %v1568, %v1560
    %v1777 = vpack.c.b16 %v1569, %v1561
    %v1778 = vpack.c.b16 %v1578, %v1570
    %v1779 = vpack.c.b16 %v1579, %v1571
    %v1780 = vpack.c.b16 %v1580, %v1572
    %v1781 = vpack.c.b16 %v1581, %v1573
    %v1782 = vpack.c.b16 %v1582, %v1574
    %v1783 = vpack.c.b16 %v1583, %v1575
    %v1784 = vpack.c.b16 %v1584, %v1576
    %v1785 = vpack.c.b16 %v1585, %v1577
    %v1786 = vpack.c.b16 %v1594, %v1586
    %v1787 = vpack.c.b16 %v1595, %v1587
    %v1788 = vpack.c.b16 %v1596, %v1588
    %v1789 = vpack.c.b16 %v1597, %v1589
    %v1790 = vpack.c.b16 %v1598, %v1590
    %v1791 = vpack.c.b16 %v1599, %v1591
    %v1792 = vpack.c.b16 %v1600, %v1592
    %v1793 = vpack.c.b16 %v1601, %v1593
    %v1794 = vpack.c.b16 %v1610, %v1602
    %v1795 = vpack.c.b16 %v1611, %v1603
    %v1796 = vpack.c.b16 %v1612, %v1604
    %v1797 = vpack.c.b16 %v1613, %v1605
    %v1798 = vpack.c.b16 %v1614, %v1606
    %v1799 = vpack.c.b16 %v1615, %v1607
    %v1800 = vpack.c.b16 %v1616, %v1608
    %v1801 = vpack.c.b16 %v1617, %v1609
    %v1802 = vpack.c.b16 %v1626, %v1618
    %v1803 = vpack.c.b16 %v1627, %v1619
    %v1804 = vpack.c.b16 %v1628, %v1620
    %v1805 = vpack.c.b16 %v1629, %v1621
    %v1806 = vpack.c.b16 %v1630, %v1622
    %v1807 = vpack.c.b16 %v1631, %v1623
    %v1808 = vpack.c.b16 %v1632, %v1624
    %v1809 = vpack.c.b16 %v1633, %v1625
    %v1810 = vpack.c.b16 %v1642, %v1634
    %v1811 = vpack.c.b16 %v1643, %v1635
    %v1812 = vpack.c.b16 %v1644, %v1636
    %v1813 = vpack.c.b16 %v1645, %v1637
    %v1814 = vpack.c.b16 %v1646, %v1638
    %v1815 = vpack.c.b16 %v1647, %v1639
    %v1816 = vpack.c.b16 %v1648, %v1640
    %v1817 = vpack.c.b16 %v1649, %v1641
    %v1818 = vpack.c.b16 %v1658, %v1650
    %v1819 = vpack.c.b16 %v1659, %v1651
    %v1820 = vpack.c.b16 %v1660, %v1652
    %v1821 = vpack.c.b16 %v1661, %v1653
    %v1822 = vpack.c.b16 %v1662, %v1654
    %v1823 = vpack.c.b16 %v1663, %v1655
    %v1824 = vpack.c.b16 %v1664, %v1656
    %v1825 = vpack.c.b16 %v1665, %v1657
    %v1826 = vpack.c.b16 %v1674, %v1666
    %v1827 = vpack.c.b16 %v1675, %v1667
    %v1828 = vpack.c.b16 %v1676, %v1668
    %v1829 = vpack.c.b16 %v1677, %v1669
    %v1830 = vpack.c.b16 %v1678, %v1670
    %v1831 = vpack.c.b16 %v1679, %v1671
    %v1832 = vpack.c.b16 %v1680, %v1672
    %v1833 = vpack.c.b16 %v1681, %v1673
    %v1834 = vpack.c.b16 %v1690, %v1682
    %v1835 = vpack.c.b16 %v1691, %v1683
    %v1836 = vpack.c.b16 %v1692, %v1684
    %v1837 = vpack.c.b16 %v1693, %v1685
    %v1838 = vpack.c.b16 %v1694, %v1686
    %v1839 = vpack.c.b16 %v1695, %v1687
    %v1840 = vpack.c.b16 %v1696, %v1688
    %v1841 = vpack.c.b16 %v1697, %v1689
    %v1842 = vpack.c.b16 %v1706, %v1698
    %v1843 = vpack.c.b16 %v1707, %v1699
    %v1844 = vpack.c.b16 %v1708, %v1700
    %v1845 = vpack.c.b16 %v1709, %v1701
    %v1846 = vpack.c.b16 %v1710, %v1702
    %v1847 = vpack.c.b16 %v1711, %v1703
    %v1848 = vpack.c.b16 %v1712, %v1704
    %v1849 = vpack.c.b16 %v1713, %v1705
    %v1850 = vpack.c.b16 %v1722, %v1714
    %v1851 = vpack.c.b16 %v1723, %v1715
    %v1852 = vpack.c.b16 %v1724, %v1716
    %v1853 = vpack.c.b16 %v1725, %v1717
    %v1854 = vpack.c.b16 %v1726, %v1718
    %v1855 = vpack.c.b16 %v1727, %v1719
    %v1856 = vpack.c.b16 %v1728, %v1720
    %v1857 = vpack.c.b16 %v1729, %v1721
    %1986 = vmatprep.subr.bf16.mxu0 %v1787
    %1987 = vmatpush1.bf16.msra.mxu0 %v1786
    %1988 = vmatprep.subr.bf16.mxu0 %v1779
    %1989 = vmatpush1.bf16.msra.mxu0 %v1778
    %1990 = vmatprep.subr.bf16.mxu0 %v1771
    %1991 = vmatpush1.bf16.msra.mxu0 %v1770
    %1992 = vmatprep.subr.bf16.mxu0 %v1763
    %1993 = vmatpush1.bf16.msra.mxu0 %v1762
    %1994 = vmatprep.subr.bf16.mxu0 %v1755
    %1995 = vmatpush1.bf16.msra.mxu0 %v1754
    %1996 = vmatprep.subr.bf16.mxu0 %v1747
    %1997 = vmatpush1.bf16.msra.mxu0 %v1746
    %1998 = vmatprep.subr.bf16.mxu0 %v1739
    %1999 = vmatpush1.bf16.msra.mxu0 %v1738
    %2000 = vmatprep.subr.bf16.mxu0 %v1731
    %2001 = vmatpush1.bf16.msra.mxu0 %v1730
    %2002 = vmatprep.subr.bf16.mxu0 %v1851
    %2003 = vmatpush2.bf16.msra.mxu0 %v1850
    %2004 = vmatprep.subr.bf16.mxu0 %v1843
    %2005 = vmatpush2.bf16.msra.mxu0 %v1842
    %2006 = vmatprep.subr.bf16.mxu0 %v1835
    %2007 = vmatpush2.bf16.msra.mxu0 %v1834
    %2008 = vmatprep.subr.bf16.mxu0 %v1827
    %2009 = vmatpush2.bf16.msra.mxu0 %v1826
    %2010 = vmatprep.subr.bf16.mxu0 %v1819
    %2011 = vmatpush2.bf16.msra.mxu0 %v1818
    %2012 = vmatprep.subr.bf16.mxu0 %v1811
    %2013 = vmatpush2.bf16.msra.mxu0 %v1810
    %2014 = vmatprep.subr.bf16.mxu0 %v1803
    %2015 = vmatpush2.bf16.msra.mxu0 %v1802
    %2016 = vmatprep.subr.bf16.mxu0 %v1795
    %2017 = vmatpush2.bf16.msra.mxu0 %v1794
    %2018 = vmatprep.mubr.bf16.mxu0 %v1129
    %2019 = vmatmul.mubr.bf16.gmra.mxu0 %v1128
    %v2020 = vpop.f32.mrf.mxu0
    %v2021 = vadd.f32 %v1309, %v2020
    %v2022 = vpop.f32.mrf.mxu0
    %v2023 = vadd.f32 %v1313, %v2022
    %v2024 = vpop.f32.mrf.mxu0
    %v2025 = vadd.f32 %v1309, %v2024
    %v2026 = vpop.f32.mrf.mxu0
    %v2027 = vadd.f32 %v1313, %v2026
    %2028 = vmatprep.mubr.bf16.mxu0 %v1131
    %2029 = vmatmul.mubr.bf16.gmra.mxu0 %v1130
    %v2030 = vpop.f32.mrf.mxu0
    %v2031 = vadd.f32 %v1309, %v2030
    %v2032 = vpop.f32.mrf.mxu0
    %v2033 = vadd.f32 %v1313, %v2032
    %v2034 = vpop.f32.mrf.mxu0
    %v2035 = vadd.f32 %v1309, %v2034
    %v2036 = vpop.f32.mrf.mxu0
    %v2037 = vadd.f32 %v1313, %v2036
    %2038 = vmatprep.mubr.bf16.mxu0 %v1133
    %2039 = vmatmul.mubr.bf16.gmra.mxu0 %v1132
    %v2040 = vpop.f32.mrf.mxu0
    %v2041 = vadd.f32 %v1309, %v2040
    %v2042 = vpop.f32.mrf.mxu0
    %v2043 = vadd.f32 %v1313, %v2042
    %v2044 = vpop.f32.mrf.mxu0
    %v2045 = vadd.f32 %v1309, %v2044
    %v2046 = vpop.f32.mrf.mxu0
    %v2047 = vadd.f32 %v1313, %v2046
    %2048 = vmatprep.mubr.bf16.mxu0 %v1135
    %2049 = vmatmul.mubr.bf16.gmra.mxu0 %v1134
    %v2050 = vpop.f32.mrf.mxu0
    %v2051 = vadd.f32 %v1309, %v2050
    %v2052 = vpop.f32.mrf.mxu0
    %v2053 = vadd.f32 %v1313, %v2052
    %v2054 = vpop.f32.mrf.mxu0
    %v2055 = vadd.f32 %v1309, %v2054
    %v2056 = vpop.f32.mrf.mxu0
    %v2057 = vadd.f32 %v1313, %v2056
    %2058 = vmatprep.mubr.bf16.mxu0 %v1137
    %2059 = vmatmul.mubr.bf16.gmra.mxu0 %v1136
    %v2060 = vpop.f32.mrf.mxu0
    %v2061 = vadd.f32 %v1309, %v2060
    %v2062 = vpop.f32.mrf.mxu0
    %v2063 = vadd.f32 %v1313, %v2062
    %v2064 = vpop.f32.mrf.mxu0
    %v2065 = vadd.f32 %v1309, %v2064
    %v2066 = vpop.f32.mrf.mxu0
    %v2067 = vadd.f32 %v1313, %v2066
    %2068 = vmatprep.mubr.bf16.mxu0 %v1139
    %2069 = vmatmul.mubr.bf16.gmra.mxu0 %v1138
    %v2070 = vpop.f32.mrf.mxu0
    %v2071 = vadd.f32 %v1309, %v2070
    %v2072 = vpop.f32.mrf.mxu0
    %v2073 = vadd.f32 %v1313, %v2072
    %v2074 = vpop.f32.mrf.mxu0
    %v2075 = vadd.f32 %v1309, %v2074
    %v2076 = vpop.f32.mrf.mxu0
    %v2077 = vadd.f32 %v1313, %v2076
    %2078 = vmatprep.mubr.bf16.mxu0 %v1141
    %2079 = vmatmul.mubr.bf16.gmra.mxu0 %v1140
    %v2080 = vpop.f32.mrf.mxu0
    %v2081 = vadd.f32 %v1309, %v2080
    %v2082 = vpop.f32.mrf.mxu0
    %v2083 = vadd.f32 %v1313, %v2082
    %v2084 = vpop.f32.mrf.mxu0
    %v2085 = vadd.f32 %v1309, %v2084
    %v2086 = vpop.f32.mrf.mxu0
    %v2087 = vadd.f32 %v1313, %v2086
    %2088 = vmatprep.mubr.bf16.mxu0 %v1143
    %2089 = vmatmul.mubr.bf16.gmra.mxu0 %v1142
    %v2090 = vpop.f32.mrf.mxu0
    %v2091 = vadd.f32 %v1309, %v2090
    %v2092 = vpop.f32.mrf.mxu0
    %v2093 = vadd.f32 %v1313, %v2092
    %v2094 = vpop.f32.mrf.mxu0
    %v2095 = vadd.f32 %v1309, %v2094
    %v2096 = vpop.f32.mrf.mxu0
    %v2097 = vadd.f32 %v1313, %v2096
    %2098 = vmatprep.mubr.bf16.mxu0 %v1145
    %2099 = vmatmul.mubr.bf16.gmra.mxu0 %v1144
    %v2100 = vpop.f32.mrf.mxu0
    %v2101 = vadd.f32 %v1309, %v2100
    %v2102 = vpop.f32.mrf.mxu0
    %v2103 = vadd.f32 %v1313, %v2102
    %v2104 = vpop.f32.mrf.mxu0
    %v2105 = vadd.f32 %v1309, %v2104
    %v2106 = vpop.f32.mrf.mxu0
    %v2107 = vadd.f32 %v1313, %v2106
    %2108 = vmatprep.mubr.bf16.mxu0 %v1147
    %2109 = vmatmul.mubr.bf16.gmra.mxu0 %v1146
    %v2110 = vpop.f32.mrf.mxu0
    %v2111 = vadd.f32 %v1309, %v2110
    %v2112 = vpop.f32.mrf.mxu0
    %v2113 = vadd.f32 %v1313, %v2112
    %v2114 = vpop.f32.mrf.mxu0
    %v2115 = vadd.f32 %v1309, %v2114
    %v2116 = vpop.f32.mrf.mxu0
    %v2117 = vadd.f32 %v1313, %v2116
    %2118 = vmatprep.mubr.bf16.mxu0 %v1149
    %2119 = vmatmul.mubr.bf16.gmra.mxu0 %v1148
    %v2120 = vpop.f32.mrf.mxu0
    %v2121 = vadd.f32 %v1309, %v2120
    %v2122 = vpop.f32.mrf.mxu0
    %v2123 = vadd.f32 %v1313, %v2122
    %v2124 = vpop.f32.mrf.mxu0
    %v2125 = vadd.f32 %v1309, %v2124
    %v2126 = vpop.f32.mrf.mxu0
    %v2127 = vadd.f32 %v1313, %v2126
    %2128 = vmatprep.mubr.bf16.mxu0 %v1151
    %2129 = vmatmul.mubr.bf16.gmra.mxu0 %v1150
    %v2130 = vpop.f32.mrf.mxu0
    %v2131 = vadd.f32 %v1309, %v2130
    %v2132 = vpop.f32.mrf.mxu0
    %v2133 = vadd.f32 %v1313, %v2132
    %v2134 = vpop.f32.mrf.mxu0
    %v2135 = vadd.f32 %v1309, %v2134
    %v2136 = vpop.f32.mrf.mxu0
    %v2137 = vadd.f32 %v1313, %v2136
    %2138 = vmatprep.mubr.bf16.mxu0 %v1153
    %2139 = vmatmul.mubr.bf16.gmra.mxu0 %v1152
    %v2140 = vpop.f32.mrf.mxu0
    %v2141 = vadd.f32 %v1309, %v2140
    %v2142 = vpop.f32.mrf.mxu0
    %v2143 = vadd.f32 %v1313, %v2142
    %v2144 = vpop.f32.mrf.mxu0
    %v2145 = vadd.f32 %v1309, %v2144
    %v2146 = vpop.f32.mrf.mxu0
    %v2147 = vadd.f32 %v1313, %v2146
    %2148 = vmatprep.mubr.bf16.mxu0 %v1155
    %2149 = vmatmul.mubr.bf16.gmra.mxu0 %v1154
    %v2150 = vpop.f32.mrf.mxu0
    %v2151 = vadd.f32 %v1309, %v2150
    %v2152 = vpop.f32.mrf.mxu0
    %v2153 = vadd.f32 %v1313, %v2152
    %v2154 = vpop.f32.mrf.mxu0
    %v2155 = vadd.f32 %v1309, %v2154
    %v2156 = vpop.f32.mrf.mxu0
    %v2157 = vadd.f32 %v1313, %v2156
    %2158 = vmatprep.mubr.bf16.mxu0 %v1157
    %2159 = vmatmul.mubr.bf16.gmra.mxu0 %v1156
    %v2160 = vpop.f32.mrf.mxu0
    %v2161 = vadd.f32 %v1309, %v2160
    %v2162 = vpop.f32.mrf.mxu0
    %v2163 = vadd.f32 %v1313, %v2162
    %v2164 = vpop.f32.mrf.mxu0
    %v2165 = vadd.f32 %v1309, %v2164
    %v2166 = vpop.f32.mrf.mxu0
    %v2167 = vadd.f32 %v1313, %v2166
    %2168 = vmatprep.mubr.bf16.mxu0 %v1159
    %2169 = vmatmul.mubr.bf16.gmra.mxu0 %v1158
    %v2170 = vpop.f32.mrf.mxu0
    %v2171 = vadd.f32 %v1309, %v2170
    %v2172 = vpop.f32.mrf.mxu0
    %v2173 = vadd.f32 %v1313, %v2172
    %v2174 = vpop.f32.mrf.mxu0
    %v2175 = vadd.f32 %v1309, %v2174
    %v2176 = vpop.f32.mrf.mxu0
    %v2177 = vadd.f32 %v1313, %v2176
    %2178 = vmatprep.mubr.bf16.mxu0 %v1161
    %2179 = vmatmul.mubr.bf16.gmra.mxu0 %v1160
    %v2180 = vpop.f32.mrf.mxu0
    %v2181 = vadd.f32 %v1309, %v2180
    %v2182 = vpop.f32.mrf.mxu0
    %v2183 = vadd.f32 %v1313, %v2182
    %v2184 = vpop.f32.mrf.mxu0
    %v2185 = vadd.f32 %v1309, %v2184
    %v2186 = vpop.f32.mrf.mxu0
    %v2187 = vadd.f32 %v1313, %v2186
    %2188 = vmatprep.mubr.bf16.mxu0 %v1163
    %2189 = vmatmul.mubr.bf16.gmra.mxu0 %v1162
    %v2190 = vpop.f32.mrf.mxu0
    %v2191 = vadd.f32 %v1309, %v2190
    %v2192 = vpop.f32.mrf.mxu0
    %v2193 = vadd.f32 %v1313, %v2192
    %v2194 = vpop.f32.mrf.mxu0
    %v2195 = vadd.f32 %v1309, %v2194
    %v2196 = vpop.f32.mrf.mxu0
    %v2197 = vadd.f32 %v1313, %v2196
    %2198 = vmatprep.mubr.bf16.mxu0 %v1165
    %2199 = vmatmul.mubr.bf16.gmra.mxu0 %v1164
    %v2200 = vpop.f32.mrf.mxu0
    %v2201 = vadd.f32 %v1309, %v2200
    %v2202 = vpop.f32.mrf.mxu0
    %v2203 = vadd.f32 %v1313, %v2202
    %v2204 = vpop.f32.mrf.mxu0
    %v2205 = vadd.f32 %v1309, %v2204
    %v2206 = vpop.f32.mrf.mxu0
    %v2207 = vadd.f32 %v1313, %v2206
    %2208 = vmatprep.mubr.bf16.mxu0 %v1167
    %2209 = vmatmul.mubr.bf16.gmra.mxu0 %v1166
    %v2210 = vpop.f32.mrf.mxu0
    %v2211 = vadd.f32 %v1309, %v2210
    %v2212 = vpop.f32.mrf.mxu0
    %v2213 = vadd.f32 %v1313, %v2212
    %v2214 = vpop.f32.mrf.mxu0
    %v2215 = vadd.f32 %v1309, %v2214
    %v2216 = vpop.f32.mrf.mxu0
    %v2217 = vadd.f32 %v1313, %v2216
    %2218 = vmatprep.mubr.bf16.mxu0 %v1169
    %2219 = vmatmul.mubr.bf16.gmra.mxu0 %v1168
    %v2220 = vpop.f32.mrf.mxu0
    %v2221 = vadd.f32 %v1309, %v2220
    %v2222 = vpop.f32.mrf.mxu0
    %v2223 = vadd.f32 %v1313, %v2222
    %v2224 = vpop.f32.mrf.mxu0
    %v2225 = vadd.f32 %v1309, %v2224
    %v2226 = vpop.f32.mrf.mxu0
    %v2227 = vadd.f32 %v1313, %v2226
    %2228 = vmatprep.mubr.bf16.mxu0 %v1171
    %2229 = vmatmul.mubr.bf16.gmra.mxu0 %v1170
    %v2230 = vpop.f32.mrf.mxu0
    %v2231 = vadd.f32 %v1309, %v2230
    %v2232 = vpop.f32.mrf.mxu0
    %v2233 = vadd.f32 %v1313, %v2232
    %v2234 = vpop.f32.mrf.mxu0
    %v2235 = vadd.f32 %v1309, %v2234
    %v2236 = vpop.f32.mrf.mxu0
    %v2237 = vadd.f32 %v1313, %v2236
    %2238 = vmatprep.mubr.bf16.mxu0 %v1173
    %2239 = vmatmul.mubr.bf16.gmra.mxu0 %v1172
    %v2240 = vpop.f32.mrf.mxu0
    %v2241 = vadd.f32 %v1309, %v2240
    %v2242 = vpop.f32.mrf.mxu0
    %v2243 = vadd.f32 %v1313, %v2242
    %v2244 = vpop.f32.mrf.mxu0
    %v2245 = vadd.f32 %v1309, %v2244
    %v2246 = vpop.f32.mrf.mxu0
    %v2247 = vadd.f32 %v1313, %v2246
    %2248 = vmatprep.mubr.bf16.mxu0 %v1175
    %2249 = vmatmul.mubr.bf16.gmra.mxu0 %v1174
    %v2250 = vpop.f32.mrf.mxu0
    %v2251 = vadd.f32 %v1309, %v2250
    %v2252 = vpop.f32.mrf.mxu0
    %v2253 = vadd.f32 %v1313, %v2252
    %v2254 = vpop.f32.mrf.mxu0
    %v2255 = vadd.f32 %v1309, %v2254
    %v2256 = vpop.f32.mrf.mxu0
    %v2257 = vadd.f32 %v1313, %v2256
    %2258 = vdwg.mxu0
    %2259 = vmatprep.subr.bf16.mxu0 %v1789
    %2260 = vmatpush1.bf16.msra.mxu0 %v1788
    %2261 = vmatprep.subr.bf16.mxu0 %v1781
    %2262 = vmatpush1.bf16.msra.mxu0 %v1780
    %2263 = vmatprep.subr.bf16.mxu0 %v1773
    %2264 = vmatpush1.bf16.msra.mxu0 %v1772
    %2265 = vmatprep.subr.bf16.mxu0 %v1765
    %2266 = vmatpush1.bf16.msra.mxu0 %v1764
    %2267 = vmatprep.subr.bf16.mxu0 %v1757
    %2268 = vmatpush1.bf16.msra.mxu0 %v1756
    %2269 = vmatprep.subr.bf16.mxu0 %v1749
    %2270 = vmatpush1.bf16.msra.mxu0 %v1748
    %2271 = vmatprep.subr.bf16.mxu0 %v1741
    %2272 = vmatpush1.bf16.msra.mxu0 %v1740
    %2273 = vmatprep.subr.bf16.mxu0 %v1733
    %2274 = vmatpush1.bf16.msra.mxu0 %v1732
    %2275 = vmatprep.subr.bf16.mxu0 %v1853
    %2276 = vmatpush2.bf16.msra.mxu0 %v1852
    %2277 = vmatprep.subr.bf16.mxu0 %v1845
    %2278 = vmatpush2.bf16.msra.mxu0 %v1844
    %2279 = vmatprep.subr.bf16.mxu0 %v1837
    %2280 = vmatpush2.bf16.msra.mxu0 %v1836
    %2281 = vmatprep.subr.bf16.mxu0 %v1829
    %2282 = vmatpush2.bf16.msra.mxu0 %v1828
    %2283 = vmatprep.subr.bf16.mxu0 %v1821
    %2284 = vmatpush2.bf16.msra.mxu0 %v1820
    %2285 = vmatprep.subr.bf16.mxu0 %v1813
    %2286 = vmatpush2.bf16.msra.mxu0 %v1812
    %2287 = vmatprep.subr.bf16.mxu0 %v1805
    %2288 = vmatpush2.bf16.msra.mxu0 %v1804
    %2289 = vmatprep.subr.bf16.mxu0 %v1797
    %2290 = vmatpush2.bf16.msra.mxu0 %v1796
    %2291 = vmatprep.mubr.bf16.mxu0 %v1129
    %2292 = vmatmul.mubr.bf16.gmra.mxu0 %v1128
    %v2293 = vpop.f32.mrf.mxu0
    %v2294 = vadd.f32 %v1317, %v2293
    %v2295 = vpop.f32.mrf.mxu0
    %v2296 = vadd.f32 %v1321, %v2295
    %v2297 = vpop.f32.mrf.mxu0
    %v2298 = vadd.f32 %v1317, %v2297
    %v2299 = vpop.f32.mrf.mxu0
    %v2300 = vadd.f32 %v1321, %v2299
    %2301 = vmatprep.mubr.bf16.mxu0 %v1131
    %2302 = vmatmul.mubr.bf16.gmra.mxu0 %v1130
    %v2303 = vpop.f32.mrf.mxu0
    %v2304 = vadd.f32 %v1317, %v2303
    %v2305 = vpop.f32.mrf.mxu0
    %v2306 = vadd.f32 %v1321, %v2305
    %v2307 = vpop.f32.mrf.mxu0
    %v2308 = vadd.f32 %v1317, %v2307
    %v2309 = vpop.f32.mrf.mxu0
    %v2310 = vadd.f32 %v1321, %v2309
    %2311 = vmatprep.mubr.bf16.mxu0 %v1133
    %2312 = vmatmul.mubr.bf16.gmra.mxu0 %v1132
    %v2313 = vpop.f32.mrf.mxu0
    %v2314 = vadd.f32 %v1317, %v2313
    %v2315 = vpop.f32.mrf.mxu0
    %v2316 = vadd.f32 %v1321, %v2315
    %v2317 = vpop.f32.mrf.mxu0
    %v2318 = vadd.f32 %v1317, %v2317
    %v2319 = vpop.f32.mrf.mxu0
    %v2320 = vadd.f32 %v1321, %v2319
    %2321 = vmatprep.mubr.bf16.mxu0 %v1135
    %2322 = vmatmul.mubr.bf16.gmra.mxu0 %v1134
    %v2323 = vpop.f32.mrf.mxu0
    %v2324 = vadd.f32 %v1317, %v2323
    %v2325 = vpop.f32.mrf.mxu0
    %v2326 = vadd.f32 %v1321, %v2325
    %v2327 = vpop.f32.mrf.mxu0
    %v2328 = vadd.f32 %v1317, %v2327
    %v2329 = vpop.f32.mrf.mxu0
    %v2330 = vadd.f32 %v1321, %v2329
    %2331 = vmatprep.mubr.bf16.mxu0 %v1137
    %2332 = vmatmul.mubr.bf16.gmra.mxu0 %v1136
    %v2333 = vpop.f32.mrf.mxu0
    %v2334 = vadd.f32 %v1317, %v2333
    %v2335 = vpop.f32.mrf.mxu0
    %v2336 = vadd.f32 %v1321, %v2335
    %v2337 = vpop.f32.mrf.mxu0
    %v2338 = vadd.f32 %v1317, %v2337
    %v2339 = vpop.f32.mrf.mxu0
    %v2340 = vadd.f32 %v1321, %v2339
    %2341 = vmatprep.mubr.bf16.mxu0 %v1139
    %2342 = vmatmul.mubr.bf16.gmra.mxu0 %v1138
    %v2343 = vpop.f32.mrf.mxu0
    %v2344 = vadd.f32 %v1317, %v2343
    %v2345 = vpop.f32.mrf.mxu0
    %v2346 = vadd.f32 %v1321, %v2345
    %v2347 = vpop.f32.mrf.mxu0
    %v2348 = vadd.f32 %v1317, %v2347
    %v2349 = vpop.f32.mrf.mxu0
    %v2350 = vadd.f32 %v1321, %v2349
    %2351 = vmatprep.mubr.bf16.mxu0 %v1141
    %2352 = vmatmul.mubr.bf16.gmra.mxu0 %v1140
    %v2353 = vpop.f32.mrf.mxu0
    %v2354 = vadd.f32 %v1317, %v2353
    %v2355 = vpop.f32.mrf.mxu0
    %v2356 = vadd.f32 %v1321, %v2355
    %v2357 = vpop.f32.mrf.mxu0
    %v2358 = vadd.f32 %v1317, %v2357
    %v2359 = vpop.f32.mrf.mxu0
    %v2360 = vadd.f32 %v1321, %v2359
    %2361 = vmatprep.mubr.bf16.mxu0 %v1143
    %2362 = vmatmul.mubr.bf16.gmra.mxu0 %v1142
    %v2363 = vpop.f32.mrf.mxu0
    %v2364 = vadd.f32 %v1317, %v2363
    %v2365 = vpop.f32.mrf.mxu0
    %v2366 = vadd.f32 %v1321, %v2365
    %v2367 = vpop.f32.mrf.mxu0
    %v2368 = vadd.f32 %v1317, %v2367
    %v2369 = vpop.f32.mrf.mxu0
    %v2370 = vadd.f32 %v1321, %v2369
    %2371 = vmatprep.mubr.bf16.mxu0 %v1145
    %2372 = vmatmul.mubr.bf16.gmra.mxu0 %v1144
    %v2373 = vpop.f32.mrf.mxu0
    %v2374 = vadd.f32 %v1317, %v2373
    %v2375 = vpop.f32.mrf.mxu0
    %v2376 = vadd.f32 %v1321, %v2375
    %v2377 = vpop.f32.mrf.mxu0
    %v2378 = vadd.f32 %v1317, %v2377
    %v2379 = vpop.f32.mrf.mxu0
    %v2380 = vadd.f32 %v1321, %v2379
    %2381 = vmatprep.mubr.bf16.mxu0 %v1147
    %2382 = vmatmul.mubr.bf16.gmra.mxu0 %v1146
    %v2383 = vpop.f32.mrf.mxu0
    %v2384 = vadd.f32 %v1317, %v2383
    %v2385 = vpop.f32.mrf.mxu0
    %v2386 = vadd.f32 %v1321, %v2385
    %v2387 = vpop.f32.mrf.mxu0
    %v2388 = vadd.f32 %v1317, %v2387
    %v2389 = vpop.f32.mrf.mxu0
    %v2390 = vadd.f32 %v1321, %v2389
    %2391 = vmatprep.mubr.bf16.mxu0 %v1149
    %2392 = vmatmul.mubr.bf16.gmra.mxu0 %v1148
    %v2393 = vpop.f32.mrf.mxu0
    %v2394 = vadd.f32 %v1317, %v2393
    %v2395 = vpop.f32.mrf.mxu0
    %v2396 = vadd.f32 %v1321, %v2395
    %v2397 = vpop.f32.mrf.mxu0
    %v2398 = vadd.f32 %v1317, %v2397
    %v2399 = vpop.f32.mrf.mxu0
    %v2400 = vadd.f32 %v1321, %v2399
    %2401 = vmatprep.mubr.bf16.mxu0 %v1151
    %2402 = vmatmul.mubr.bf16.gmra.mxu0 %v1150
    %v2403 = vpop.f32.mrf.mxu0
    %v2404 = vadd.f32 %v1317, %v2403
    %v2405 = vpop.f32.mrf.mxu0
    %v2406 = vadd.f32 %v1321, %v2405
    %v2407 = vpop.f32.mrf.mxu0
    %v2408 = vadd.f32 %v1317, %v2407
    %v2409 = vpop.f32.mrf.mxu0
    %v2410 = vadd.f32 %v1321, %v2409
    %2411 = vmatprep.mubr.bf16.mxu0 %v1153
    %2412 = vmatmul.mubr.bf16.gmra.mxu0 %v1152
    %v2413 = vpop.f32.mrf.mxu0
    %v2414 = vadd.f32 %v1317, %v2413
    %v2415 = vpop.f32.mrf.mxu0
    %v2416 = vadd.f32 %v1321, %v2415
    %v2417 = vpop.f32.mrf.mxu0
    %v2418 = vadd.f32 %v1317, %v2417
    %v2419 = vpop.f32.mrf.mxu0
    %v2420 = vadd.f32 %v1321, %v2419
    %2421 = vmatprep.mubr.bf16.mxu0 %v1155
    %2422 = vmatmul.mubr.bf16.gmra.mxu0 %v1154
    %v2423 = vpop.f32.mrf.mxu0
    %v2424 = vadd.f32 %v1317, %v2423
    %v2425 = vpop.f32.mrf.mxu0
    %v2426 = vadd.f32 %v1321, %v2425
    %v2427 = vpop.f32.mrf.mxu0
    %v2428 = vadd.f32 %v1317, %v2427
    %v2429 = vpop.f32.mrf.mxu0
    %v2430 = vadd.f32 %v1321, %v2429
    %2431 = vmatprep.mubr.bf16.mxu0 %v1157
    %2432 = vmatmul.mubr.bf16.gmra.mxu0 %v1156
    %v2433 = vpop.f32.mrf.mxu0
    %v2434 = vadd.f32 %v1317, %v2433
    %v2435 = vpop.f32.mrf.mxu0
    %v2436 = vadd.f32 %v1321, %v2435
    %v2437 = vpop.f32.mrf.mxu0
    %v2438 = vadd.f32 %v1317, %v2437
    %v2439 = vpop.f32.mrf.mxu0
    %v2440 = vadd.f32 %v1321, %v2439
    %2441 = vmatprep.mubr.bf16.mxu0 %v1159
    %2442 = vmatmul.mubr.bf16.gmra.mxu0 %v1158
    %v2443 = vpop.f32.mrf.mxu0
    %v2444 = vadd.f32 %v1317, %v2443
    %v2445 = vpop.f32.mrf.mxu0
    %v2446 = vadd.f32 %v1321, %v2445
    %v2447 = vpop.f32.mrf.mxu0
    %v2448 = vadd.f32 %v1317, %v2447
    %v2449 = vpop.f32.mrf.mxu0
    %v2450 = vadd.f32 %v1321, %v2449
    %2451 = vmatprep.mubr.bf16.mxu0 %v1161
    %2452 = vmatmul.mubr.bf16.gmra.mxu0 %v1160
    %v2453 = vpop.f32.mrf.mxu0
    %v2454 = vadd.f32 %v1317, %v2453
    %v2455 = vpop.f32.mrf.mxu0
    %v2456 = vadd.f32 %v1321, %v2455
    %v2457 = vpop.f32.mrf.mxu0
    %v2458 = vadd.f32 %v1317, %v2457
    %v2459 = vpop.f32.mrf.mxu0
    %v2460 = vadd.f32 %v1321, %v2459
    %2461 = vmatprep.mubr.bf16.mxu0 %v1163
    %2462 = vmatmul.mubr.bf16.gmra.mxu0 %v1162
    %v2463 = vpop.f32.mrf.mxu0
    %v2464 = vadd.f32 %v1317, %v2463
    %v2465 = vpop.f32.mrf.mxu0
    %v2466 = vadd.f32 %v1321, %v2465
    %v2467 = vpop.f32.mrf.mxu0
    %v2468 = vadd.f32 %v1317, %v2467
    %v2469 = vpop.f32.mrf.mxu0
    %v2470 = vadd.f32 %v1321, %v2469
    %2471 = vmatprep.mubr.bf16.mxu0 %v1165
    %2472 = vmatmul.mubr.bf16.gmra.mxu0 %v1164
    %v2473 = vpop.f32.mrf.mxu0
    %v2474 = vadd.f32 %v1317, %v2473
    %v2475 = vpop.f32.mrf.mxu0
    %v2476 = vadd.f32 %v1321, %v2475
    %v2477 = vpop.f32.mrf.mxu0
    %v2478 = vadd.f32 %v1317, %v2477
    %v2479 = vpop.f32.mrf.mxu0
    %v2480 = vadd.f32 %v1321, %v2479
    %2481 = vmatprep.mubr.bf16.mxu0 %v1167
    %2482 = vmatmul.mubr.bf16.gmra.mxu0 %v1166
    %v2483 = vpop.f32.mrf.mxu0
    %v2484 = vadd.f32 %v1317, %v2483
    %v2485 = vpop.f32.mrf.mxu0
    %v2486 = vadd.f32 %v1321, %v2485
    %v2487 = vpop.f32.mrf.mxu0
    %v2488 = vadd.f32 %v1317, %v2487
    %v2489 = vpop.f32.mrf.mxu0
    %v2490 = vadd.f32 %v1321, %v2489
    %2491 = vmatprep.mubr.bf16.mxu0 %v1169
    %2492 = vmatmul.mubr.bf16.gmra.mxu0 %v1168
    %v2493 = vpop.f32.mrf.mxu0
    %v2494 = vadd.f32 %v1317, %v2493
    %v2495 = vpop.f32.mrf.mxu0
    %v2496 = vadd.f32 %v1321, %v2495
    %v2497 = vpop.f32.mrf.mxu0
    %v2498 = vadd.f32 %v1317, %v2497
    %v2499 = vpop.f32.mrf.mxu0
    %v2500 = vadd.f32 %v1321, %v2499
    %2501 = vmatprep.mubr.bf16.mxu0 %v1171
    %2502 = vmatmul.mubr.bf16.gmra.mxu0 %v1170
    %v2503 = vpop.f32.mrf.mxu0
    %v2504 = vadd.f32 %v1317, %v2503
    %v2505 = vpop.f32.mrf.mxu0
    %v2506 = vadd.f32 %v1321, %v2505
    %v2507 = vpop.f32.mrf.mxu0
    %v2508 = vadd.f32 %v1317, %v2507
    %v2509 = vpop.f32.mrf.mxu0
    %v2510 = vadd.f32 %v1321, %v2509
    %2511 = vmatprep.mubr.bf16.mxu0 %v1173
    %2512 = vmatmul.mubr.bf16.gmra.mxu0 %v1172
    %v2513 = vpop.f32.mrf.mxu0
    %v2514 = vadd.f32 %v1317, %v2513
    %v2515 = vpop.f32.mrf.mxu0
    %v2516 = vadd.f32 %v1321, %v2515
    %v2517 = vpop.f32.mrf.mxu0
    %v2518 = vadd.f32 %v1317, %v2517
    %v2519 = vpop.f32.mrf.mxu0
    %v2520 = vadd.f32 %v1321, %v2519
    %2521 = vmatprep.mubr.bf16.mxu0 %v1175
    %2522 = vmatmul.mubr.bf16.gmra.mxu0 %v1174
    %v2523 = vpop.f32.mrf.mxu0
    %v2524 = vadd.f32 %v1317, %v2523
    %v2525 = vpop.f32.mrf.mxu0
    %v2526 = vadd.f32 %v1321, %v2525
    %v2527 = vpop.f32.mrf.mxu0
    %v2528 = vadd.f32 %v1317, %v2527
    %v2529 = vpop.f32.mrf.mxu0
    %v2530 = vadd.f32 %v1321, %v2529
    %2531 = vdwg.mxu0
    %2532 = vmatprep.subr.bf16.mxu0 %v1791
    %2533 = vmatpush1.bf16.msra.mxu0 %v1790
    %2534 = vmatprep.subr.bf16.mxu0 %v1783
    %2535 = vmatpush1.bf16.msra.mxu0 %v1782
    %2536 = vmatprep.subr.bf16.mxu0 %v1775
    %2537 = vmatpush1.bf16.msra.mxu0 %v1774
    %2538 = vmatprep.subr.bf16.mxu0 %v1767
    %2539 = vmatpush1.bf16.msra.mxu0 %v1766
    %2540 = vmatprep.subr.bf16.mxu0 %v1759
    %2541 = vmatpush1.bf16.msra.mxu0 %v1758
    %2542 = vmatprep.subr.bf16.mxu0 %v1751
    %2543 = vmatpush1.bf16.msra.mxu0 %v1750
    %2544 = vmatprep.subr.bf16.mxu0 %v1743
    %2545 = vmatpush1.bf16.msra.mxu0 %v1742
    %2546 = vmatprep.subr.bf16.mxu0 %v1735
    %2547 = vmatpush1.bf16.msra.mxu0 %v1734
    %2548 = vmatprep.subr.bf16.mxu0 %v1855
    %2549 = vmatpush2.bf16.msra.mxu0 %v1854
    %2550 = vmatprep.subr.bf16.mxu0 %v1847
    %2551 = vmatpush2.bf16.msra.mxu0 %v1846
    %2552 = vmatprep.subr.bf16.mxu0 %v1839
    %2553 = vmatpush2.bf16.msra.mxu0 %v1838
    %2554 = vmatprep.subr.bf16.mxu0 %v1831
    %2555 = vmatpush2.bf16.msra.mxu0 %v1830
    %2556 = vmatprep.subr.bf16.mxu0 %v1823
    %2557 = vmatpush2.bf16.msra.mxu0 %v1822
    %2558 = vmatprep.subr.bf16.mxu0 %v1815
    %2559 = vmatpush2.bf16.msra.mxu0 %v1814
    %2560 = vmatprep.subr.bf16.mxu0 %v1807
    %2561 = vmatpush2.bf16.msra.mxu0 %v1806
    %2562 = vmatprep.subr.bf16.mxu0 %v1799
    %2563 = vmatpush2.bf16.msra.mxu0 %v1798
    %2564 = vmatprep.mubr.bf16.mxu0 %v1129
    %2565 = vmatmul.mubr.bf16.gmra.mxu0 %v1128
    %v2566 = vpop.f32.mrf.mxu0
    %v2567 = vadd.f32 %v1325, %v2566
    %v2568 = vpop.f32.mrf.mxu0
    %v2569 = vadd.f32 %v1329, %v2568
    %v2570 = vpop.f32.mrf.mxu0
    %v2571 = vadd.f32 %v1325, %v2570
    %v2572 = vpop.f32.mrf.mxu0
    %v2573 = vadd.f32 %v1329, %v2572
    %2574 = vmatprep.mubr.bf16.mxu0 %v1131
    %2575 = vmatmul.mubr.bf16.gmra.mxu0 %v1130
    %v2576 = vpop.f32.mrf.mxu0
    %v2577 = vadd.f32 %v1325, %v2576
    %v2578 = vpop.f32.mrf.mxu0
    %v2579 = vadd.f32 %v1329, %v2578
    %v2580 = vpop.f32.mrf.mxu0
    %v2581 = vadd.f32 %v1325, %v2580
    %v2582 = vpop.f32.mrf.mxu0
    %v2583 = vadd.f32 %v1329, %v2582
    %2584 = vmatprep.mubr.bf16.mxu0 %v1133
    %2585 = vmatmul.mubr.bf16.gmra.mxu0 %v1132
    %v2586 = vpop.f32.mrf.mxu0
    %v2587 = vadd.f32 %v1325, %v2586
    %v2588 = vpop.f32.mrf.mxu0
    %v2589 = vadd.f32 %v1329, %v2588
    %v2590 = vpop.f32.mrf.mxu0
    %v2591 = vadd.f32 %v1325, %v2590
    %v2592 = vpop.f32.mrf.mxu0
    %v2593 = vadd.f32 %v1329, %v2592
    %2594 = vmatprep.mubr.bf16.mxu0 %v1135
    %2595 = vmatmul.mubr.bf16.gmra.mxu0 %v1134
    %v2596 = vpop.f32.mrf.mxu0
    %v2597 = vadd.f32 %v1325, %v2596
    %v2598 = vpop.f32.mrf.mxu0
    %v2599 = vadd.f32 %v1329, %v2598
    %v2600 = vpop.f32.mrf.mxu0
    %v2601 = vadd.f32 %v1325, %v2600
    %v2602 = vpop.f32.mrf.mxu0
    %v2603 = vadd.f32 %v1329, %v2602
    %2604 = vmatprep.mubr.bf16.mxu0 %v1137
    %2605 = vmatmul.mubr.bf16.gmra.mxu0 %v1136
    %v2606 = vpop.f32.mrf.mxu0
    %v2607 = vadd.f32 %v1325, %v2606
    %v2608 = vpop.f32.mrf.mxu0
    %v2609 = vadd.f32 %v1329, %v2608
    %v2610 = vpop.f32.mrf.mxu0
    %v2611 = vadd.f32 %v1325, %v2610
    %v2612 = vpop.f32.mrf.mxu0
    %v2613 = vadd.f32 %v1329, %v2612
    %2614 = vmatprep.mubr.bf16.mxu0 %v1139
    %2615 = vmatmul.mubr.bf16.gmra.mxu0 %v1138
    %v2616 = vpop.f32.mrf.mxu0
    %v2617 = vadd.f32 %v1325, %v2616
    %v2618 = vpop.f32.mrf.mxu0
    %v2619 = vadd.f32 %v1329, %v2618
    %v2620 = vpop.f32.mrf.mxu0
    %v2621 = vadd.f32 %v1325, %v2620
    %v2622 = vpop.f32.mrf.mxu0
    %v2623 = vadd.f32 %v1329, %v2622
    %2624 = vmatprep.mubr.bf16.mxu0 %v1141
    %2625 = vmatmul.mubr.bf16.gmra.mxu0 %v1140
    %v2626 = vpop.f32.mrf.mxu0
    %v2627 = vadd.f32 %v1325, %v2626
    %v2628 = vpop.f32.mrf.mxu0
    %v2629 = vadd.f32 %v1329, %v2628
    %v2630 = vpop.f32.mrf.mxu0
    %v2631 = vadd.f32 %v1325, %v2630
    %v2632 = vpop.f32.mrf.mxu0
    %v2633 = vadd.f32 %v1329, %v2632
    %2634 = vmatprep.mubr.bf16.mxu0 %v1143
    %2635 = vmatmul.mubr.bf16.gmra.mxu0 %v1142
    %v2636 = vpop.f32.mrf.mxu0
    %v2637 = vadd.f32 %v1325, %v2636
    %v2638 = vpop.f32.mrf.mxu0
    %v2639 = vadd.f32 %v1329, %v2638
    %v2640 = vpop.f32.mrf.mxu0
    %v2641 = vadd.f32 %v1325, %v2640
    %v2642 = vpop.f32.mrf.mxu0
    %v2643 = vadd.f32 %v1329, %v2642
    %2644 = vmatprep.mubr.bf16.mxu0 %v1145
    %2645 = vmatmul.mubr.bf16.gmra.mxu0 %v1144
    %v2646 = vpop.f32.mrf.mxu0
    %v2647 = vadd.f32 %v1325, %v2646
    %v2648 = vpop.f32.mrf.mxu0
    %v2649 = vadd.f32 %v1329, %v2648
    %v2650 = vpop.f32.mrf.mxu0
    %v2651 = vadd.f32 %v1325, %v2650
    %v2652 = vpop.f32.mrf.mxu0
    %v2653 = vadd.f32 %v1329, %v2652
    %2654 = vmatprep.mubr.bf16.mxu0 %v1147
    %2655 = vmatmul.mubr.bf16.gmra.mxu0 %v1146
    %v2656 = vpop.f32.mrf.mxu0
    %v2657 = vadd.f32 %v1325, %v2656
    %v2658 = vpop.f32.mrf.mxu0
    %v2659 = vadd.f32 %v1329, %v2658
    %v2660 = vpop.f32.mrf.mxu0
    %v2661 = vadd.f32 %v1325, %v2660
    %v2662 = vpop.f32.mrf.mxu0
    %v2663 = vadd.f32 %v1329, %v2662
    %2664 = vmatprep.mubr.bf16.mxu0 %v1149
    %2665 = vmatmul.mubr.bf16.gmra.mxu0 %v1148
    %v2666 = vpop.f32.mrf.mxu0
    %v2667 = vadd.f32 %v1325, %v2666
    %v2668 = vpop.f32.mrf.mxu0
    %v2669 = vadd.f32 %v1329, %v2668
    %v2670 = vpop.f32.mrf.mxu0
    %v2671 = vadd.f32 %v1325, %v2670
    %v2672 = vpop.f32.mrf.mxu0
    %v2673 = vadd.f32 %v1329, %v2672
    %2674 = vmatprep.mubr.bf16.mxu0 %v1151
    %2675 = vmatmul.mubr.bf16.gmra.mxu0 %v1150
    %v2676 = vpop.f32.mrf.mxu0
    %v2677 = vadd.f32 %v1325, %v2676
    %v2678 = vpop.f32.mrf.mxu0
    %v2679 = vadd.f32 %v1329, %v2678
    %v2680 = vpop.f32.mrf.mxu0
    %v2681 = vadd.f32 %v1325, %v2680
    %v2682 = vpop.f32.mrf.mxu0
    %v2683 = vadd.f32 %v1329, %v2682
    %2684 = vmatprep.mubr.bf16.mxu0 %v1153
    %2685 = vmatmul.mubr.bf16.gmra.mxu0 %v1152
    %v2686 = vpop.f32.mrf.mxu0
    %v2687 = vadd.f32 %v1325, %v2686
    %v2688 = vpop.f32.mrf.mxu0
    %v2689 = vadd.f32 %v1329, %v2688
    %v2690 = vpop.f32.mrf.mxu0
    %v2691 = vadd.f32 %v1325, %v2690
    %v2692 = vpop.f32.mrf.mxu0
    %v2693 = vadd.f32 %v1329, %v2692
    %2694 = vmatprep.mubr.bf16.mxu0 %v1155
    %2695 = vmatmul.mubr.bf16.gmra.mxu0 %v1154
    %v2696 = vpop.f32.mrf.mxu0
    %v2697 = vadd.f32 %v1325, %v2696
    %v2698 = vpop.f32.mrf.mxu0
    %v2699 = vadd.f32 %v1329, %v2698
    %v2700 = vpop.f32.mrf.mxu0
    %v2701 = vadd.f32 %v1325, %v2700
    %v2702 = vpop.f32.mrf.mxu0
    %v2703 = vadd.f32 %v1329, %v2702
    %2704 = vmatprep.mubr.bf16.mxu0 %v1157
    %2705 = vmatmul.mubr.bf16.gmra.mxu0 %v1156
    %v2706 = vpop.f32.mrf.mxu0
    %v2707 = vadd.f32 %v1325, %v2706
    %v2708 = vpop.f32.mrf.mxu0
    %v2709 = vadd.f32 %v1329, %v2708
    %v2710 = vpop.f32.mrf.mxu0
    %v2711 = vadd.f32 %v1325, %v2710
    %v2712 = vpop.f32.mrf.mxu0
    %v2713 = vadd.f32 %v1329, %v2712
    %2714 = vmatprep.mubr.bf16.mxu0 %v1159
    %2715 = vmatmul.mubr.bf16.gmra.mxu0 %v1158
    %v2716 = vpop.f32.mrf.mxu0
    %v2717 = vadd.f32 %v1325, %v2716
    %v2718 = vpop.f32.mrf.mxu0
    %v2719 = vadd.f32 %v1329, %v2718
    %v2720 = vpop.f32.mrf.mxu0
    %v2721 = vadd.f32 %v1325, %v2720
    %v2722 = vpop.f32.mrf.mxu0
    %v2723 = vadd.f32 %v1329, %v2722
    %2724 = vmatprep.mubr.bf16.mxu0 %v1161
    %2725 = vmatmul.mubr.bf16.gmra.mxu0 %v1160
    %v2726 = vpop.f32.mrf.mxu0
    %v2727 = vadd.f32 %v1325, %v2726
    %v2728 = vpop.f32.mrf.mxu0
    %v2729 = vadd.f32 %v1329, %v2728
    %v2730 = vpop.f32.mrf.mxu0
    %v2731 = vadd.f32 %v1325, %v2730
    %v2732 = vpop.f32.mrf.mxu0
    %v2733 = vadd.f32 %v1329, %v2732
    %2734 = vmatprep.mubr.bf16.mxu0 %v1163
    %2735 = vmatmul.mubr.bf16.gmra.mxu0 %v1162
    %v2736 = vpop.f32.mrf.mxu0
    %v2737 = vadd.f32 %v1325, %v2736
    %v2738 = vpop.f32.mrf.mxu0
    %v2739 = vadd.f32 %v1329, %v2738
    %v2740 = vpop.f32.mrf.mxu0
    %v2741 = vadd.f32 %v1325, %v2740
    %v2742 = vpop.f32.mrf.mxu0
    %v2743 = vadd.f32 %v1329, %v2742
    %2744 = vmatprep.mubr.bf16.mxu0 %v1165
    %2745 = vmatmul.mubr.bf16.gmra.mxu0 %v1164
    %v2746 = vpop.f32.mrf.mxu0
    %v2747 = vadd.f32 %v1325, %v2746
    %v2748 = vpop.f32.mrf.mxu0
    %v2749 = vadd.f32 %v1329, %v2748
    %v2750 = vpop.f32.mrf.mxu0
    %v2751 = vadd.f32 %v1325, %v2750
    %v2752 = vpop.f32.mrf.mxu0
    %v2753 = vadd.f32 %v1329, %v2752
    %2754 = vmatprep.mubr.bf16.mxu0 %v1167
    %2755 = vmatmul.mubr.bf16.gmra.mxu0 %v1166
    %v2756 = vpop.f32.mrf.mxu0
    %v2757 = vadd.f32 %v1325, %v2756
    %v2758 = vpop.f32.mrf.mxu0
    %v2759 = vadd.f32 %v1329, %v2758
    %v2760 = vpop.f32.mrf.mxu0
    %v2761 = vadd.f32 %v1325, %v2760
    %v2762 = vpop.f32.mrf.mxu0
    %v2763 = vadd.f32 %v1329, %v2762
    %2764 = vmatprep.mubr.bf16.mxu0 %v1169
    %2765 = vmatmul.mubr.bf16.gmra.mxu0 %v1168
    %v2766 = vpop.f32.mrf.mxu0
    %v2767 = vadd.f32 %v1325, %v2766
    %v2768 = vpop.f32.mrf.mxu0
    %v2769 = vadd.f32 %v1329, %v2768
    %v2770 = vpop.f32.mrf.mxu0
    %v2771 = vadd.f32 %v1325, %v2770
    %v2772 = vpop.f32.mrf.mxu0
    %v2773 = vadd.f32 %v1329, %v2772
    %2774 = vmatprep.mubr.bf16.mxu0 %v1171
    %2775 = vmatmul.mubr.bf16.gmra.mxu0 %v1170
    %v2776 = vpop.f32.mrf.mxu0
    %v2777 = vadd.f32 %v1325, %v2776
    %v2778 = vpop.f32.mrf.mxu0
    %v2779 = vadd.f32 %v1329, %v2778
    %v2780 = vpop.f32.mrf.mxu0
    %v2781 = vadd.f32 %v1325, %v2780
    %v2782 = vpop.f32.mrf.mxu0
    %v2783 = vadd.f32 %v1329, %v2782
    %2784 = vmatprep.mubr.bf16.mxu0 %v1173
    %2785 = vmatmul.mubr.bf16.gmra.mxu0 %v1172
    %v2786 = vpop.f32.mrf.mxu0
    %v2787 = vadd.f32 %v1325, %v2786
    %v2788 = vpop.f32.mrf.mxu0
    %v2789 = vadd.f32 %v1329, %v2788
    %v2790 = vpop.f32.mrf.mxu0
    %v2791 = vadd.f32 %v1325, %v2790
    %v2792 = vpop.f32.mrf.mxu0
    %v2793 = vadd.f32 %v1329, %v2792
    %2794 = vmatprep.mubr.bf16.mxu0 %v1175
    %2795 = vmatmul.mubr.bf16.gmra.mxu0 %v1174
    %v2796 = vpop.f32.mrf.mxu0
    %v2797 = vadd.f32 %v1325, %v2796
    %v2798 = vpop.f32.mrf.mxu0
    %v2799 = vadd.f32 %v1329, %v2798
    %v2800 = vpop.f32.mrf.mxu0
    %v2801 = vadd.f32 %v1325, %v2800
    %v2802 = vpop.f32.mrf.mxu0
    %v2803 = vadd.f32 %v1329, %v2802
    %2804 = vdwg.mxu0
    %2805 = vmatprep.subr.bf16.mxu0 %v1793
    %2806 = vmatpush1.bf16.msra.mxu0 %v1792
    %2807 = vmatprep.subr.bf16.mxu0 %v1785
    %2808 = vmatpush1.bf16.msra.mxu0 %v1784
    %2809 = vmatprep.subr.bf16.mxu0 %v1777
    %2810 = vmatpush1.bf16.msra.mxu0 %v1776
    %2811 = vmatprep.subr.bf16.mxu0 %v1769
    %2812 = vmatpush1.bf16.msra.mxu0 %v1768
    %2813 = vmatprep.subr.bf16.mxu0 %v1761
    %2814 = vmatpush1.bf16.msra.mxu0 %v1760
    %2815 = vmatprep.subr.bf16.mxu0 %v1753
    %2816 = vmatpush1.bf16.msra.mxu0 %v1752
    %2817 = vmatprep.subr.bf16.mxu0 %v1745
    %2818 = vmatpush1.bf16.msra.mxu0 %v1744
    %2819 = vmatprep.subr.bf16.mxu0 %v1737
    %2820 = vmatpush1.bf16.msra.mxu0 %v1736
    %2821 = vmatprep.subr.bf16.mxu0 %v1857
    %2822 = vmatpush2.bf16.msra.mxu0 %v1856
    %2823 = vmatprep.subr.bf16.mxu0 %v1849
    %2824 = vmatpush2.bf16.msra.mxu0 %v1848
    %2825 = vmatprep.subr.bf16.mxu0 %v1841
    %2826 = vmatpush2.bf16.msra.mxu0 %v1840
    %2827 = vmatprep.subr.bf16.mxu0 %v1833
    %2828 = vmatpush2.bf16.msra.mxu0 %v1832
    %2829 = vmatprep.subr.bf16.mxu0 %v1825
    %2830 = vmatpush2.bf16.msra.mxu0 %v1824
    %2831 = vmatprep.subr.bf16.mxu0 %v1817
    %2832 = vmatpush2.bf16.msra.mxu0 %v1816
    %2833 = vmatprep.subr.bf16.mxu0 %v1809
    %2834 = vmatpush2.bf16.msra.mxu0 %v1808
    %2835 = vmatprep.subr.bf16.mxu0 %v1801
    %2836 = vmatpush2.bf16.msra.mxu0 %v1800
    %2837 = vmatprep.mubr.bf16.mxu0 %v1129
    %2838 = vmatmul.mubr.bf16.gmra.mxu0 %v1128
    %v2839 = vpop.f32.mrf.mxu0
    %v2840 = vadd.f32 %v1333, %v2839
    %v2841 = vpop.f32.mrf.mxu0
    %v2842 = vadd.f32 %v1337, %v2841
    %v2843 = vpop.f32.mrf.mxu0
    %v2844 = vadd.f32 %v1333, %v2843
    %v2845 = vpop.f32.mrf.mxu0
    %v2846 = vadd.f32 %v1337, %v2845
    %2847 = vmatprep.mubr.bf16.mxu0 %v1131
    %2848 = vmatmul.mubr.bf16.gmra.mxu0 %v1130
    %v2849 = vpop.f32.mrf.mxu0
    %v2850 = vadd.f32 %v1333, %v2849
    %v2851 = vpop.f32.mrf.mxu0
    %v2852 = vadd.f32 %v1337, %v2851
    %v2853 = vpop.f32.mrf.mxu0
    %v2854 = vadd.f32 %v1333, %v2853
    %v2855 = vpop.f32.mrf.mxu0
    %v2856 = vadd.f32 %v1337, %v2855
    %2857 = vmatprep.mubr.bf16.mxu0 %v1133
    %2858 = vmatmul.mubr.bf16.gmra.mxu0 %v1132
    %v2859 = vpop.f32.mrf.mxu0
    %v2860 = vadd.f32 %v1333, %v2859
    %v2861 = vpop.f32.mrf.mxu0
    %v2862 = vadd.f32 %v1337, %v2861
    %v2863 = vpop.f32.mrf.mxu0
    %v2864 = vadd.f32 %v1333, %v2863
    %v2865 = vpop.f32.mrf.mxu0
    %v2866 = vadd.f32 %v1337, %v2865
    %2867 = vmatprep.mubr.bf16.mxu0 %v1135
    %2868 = vmatmul.mubr.bf16.gmra.mxu0 %v1134
    %v2869 = vpop.f32.mrf.mxu0
    %v2870 = vadd.f32 %v1333, %v2869
    %v2871 = vpop.f32.mrf.mxu0
    %v2872 = vadd.f32 %v1337, %v2871
    %v2873 = vpop.f32.mrf.mxu0
    %v2874 = vadd.f32 %v1333, %v2873
    %v2875 = vpop.f32.mrf.mxu0
    %v2876 = vadd.f32 %v1337, %v2875
    %2877 = vmatprep.mubr.bf16.mxu0 %v1137
    %2878 = vmatmul.mubr.bf16.gmra.mxu0 %v1136
    %v2879 = vpop.f32.mrf.mxu0
    %v2880 = vadd.f32 %v1333, %v2879
    %v2881 = vpop.f32.mrf.mxu0
    %v2882 = vadd.f32 %v1337, %v2881
    %v2883 = vpop.f32.mrf.mxu0
    %v2884 = vadd.f32 %v1333, %v2883
    %v2885 = vpop.f32.mrf.mxu0
    %v2886 = vadd.f32 %v1337, %v2885
    %2887 = vmatprep.mubr.bf16.mxu0 %v1139
    %2888 = vmatmul.mubr.bf16.gmra.mxu0 %v1138
    %v2889 = vpop.f32.mrf.mxu0
    %v2890 = vadd.f32 %v1333, %v2889
    %v2891 = vpop.f32.mrf.mxu0
    %v2892 = vadd.f32 %v1337, %v2891
    %v2893 = vpop.f32.mrf.mxu0
    %v2894 = vadd.f32 %v1333, %v2893
    %v2895 = vpop.f32.mrf.mxu0
    %v2896 = vadd.f32 %v1337, %v2895
    %2897 = vmatprep.mubr.bf16.mxu0 %v1141
    %2898 = vmatmul.mubr.bf16.gmra.mxu0 %v1140
    %v2899 = vpop.f32.mrf.mxu0
    %v2900 = vadd.f32 %v1333, %v2899
    %v2901 = vpop.f32.mrf.mxu0
    %v2902 = vadd.f32 %v1337, %v2901
    %v2903 = vpop.f32.mrf.mxu0
    %v2904 = vadd.f32 %v1333, %v2903
    %v2905 = vpop.f32.mrf.mxu0
    %v2906 = vadd.f32 %v1337, %v2905
    %2907 = vmatprep.mubr.bf16.mxu0 %v1143
    %2908 = vmatmul.mubr.bf16.gmra.mxu0 %v1142
    %v2909 = vpop.f32.mrf.mxu0
    %v2910 = vadd.f32 %v1333, %v2909
    %v2911 = vpop.f32.mrf.mxu0
    %v2912 = vadd.f32 %v1337, %v2911
    %v2913 = vpop.f32.mrf.mxu0
    %v2914 = vadd.f32 %v1333, %v2913
    %v2915 = vpop.f32.mrf.mxu0
    %v2916 = vadd.f32 %v1337, %v2915
    %2917 = vmatprep.mubr.bf16.mxu0 %v1145
    %2918 = vmatmul.mubr.bf16.gmra.mxu0 %v1144
    %v2919 = vpop.f32.mrf.mxu0
    %v2920 = vadd.f32 %v1333, %v2919
    %v2921 = vpop.f32.mrf.mxu0
    %v2922 = vadd.f32 %v1337, %v2921
    %v2923 = vpop.f32.mrf.mxu0
    %v2924 = vadd.f32 %v1333, %v2923
    %v2925 = vpop.f32.mrf.mxu0
    %v2926 = vadd.f32 %v1337, %v2925
    %2927 = vmatprep.mubr.bf16.mxu0 %v1147
    %2928 = vmatmul.mubr.bf16.gmra.mxu0 %v1146
    %v2929 = vpop.f32.mrf.mxu0
    %v2930 = vadd.f32 %v1333, %v2929
    %v2931 = vpop.f32.mrf.mxu0
    %v2932 = vadd.f32 %v1337, %v2931
    %v2933 = vpop.f32.mrf.mxu0
    %v2934 = vadd.f32 %v1333, %v2933
    %v2935 = vpop.f32.mrf.mxu0
    %v2936 = vadd.f32 %v1337, %v2935
    %2937 = vmatprep.mubr.bf16.mxu0 %v1149
    %2938 = vmatmul.mubr.bf16.gmra.mxu0 %v1148
    %v2939 = vpop.f32.mrf.mxu0
    %v2940 = vadd.f32 %v1333, %v2939
    %v2941 = vpop.f32.mrf.mxu0
    %v2942 = vadd.f32 %v1337, %v2941
    %v2943 = vpop.f32.mrf.mxu0
    %v2944 = vadd.f32 %v1333, %v2943
    %v2945 = vpop.f32.mrf.mxu0
    %v2946 = vadd.f32 %v1337, %v2945
    %2947 = vmatprep.mubr.bf16.mxu0 %v1151
    %2948 = vmatmul.mubr.bf16.gmra.mxu0 %v1150
    %v2949 = vpop.f32.mrf.mxu0
    %v2950 = vadd.f32 %v1333, %v2949
    %v2951 = vpop.f32.mrf.mxu0
    %v2952 = vadd.f32 %v1337, %v2951
    %v2953 = vpop.f32.mrf.mxu0
    %v2954 = vadd.f32 %v1333, %v2953
    %v2955 = vpop.f32.mrf.mxu0
    %v2956 = vadd.f32 %v1337, %v2955
    %2957 = vmatprep.mubr.bf16.mxu0 %v1153
    %2958 = vmatmul.mubr.bf16.gmra.mxu0 %v1152
    %v2959 = vpop.f32.mrf.mxu0
    %v2960 = vadd.f32 %v1333, %v2959
    %v2961 = vpop.f32.mrf.mxu0
    %v2962 = vadd.f32 %v1337, %v2961
    %v2963 = vpop.f32.mrf.mxu0
    %v2964 = vadd.f32 %v1333, %v2963
    %v2965 = vpop.f32.mrf.mxu0
    %v2966 = vadd.f32 %v1337, %v2965
    %2967 = vmatprep.mubr.bf16.mxu0 %v1155
    %2968 = vmatmul.mubr.bf16.gmra.mxu0 %v1154
    %v2969 = vpop.f32.mrf.mxu0
    %v2970 = vadd.f32 %v1333, %v2969
    %v2971 = vpop.f32.mrf.mxu0
    %v2972 = vadd.f32 %v1337, %v2971
    %v2973 = vpop.f32.mrf.mxu0
    %v2974 = vadd.f32 %v1333, %v2973
    %v2975 = vpop.f32.mrf.mxu0
    %v2976 = vadd.f32 %v1337, %v2975
    %2977 = vmatprep.mubr.bf16.mxu0 %v1157
    %2978 = vmatmul.mubr.bf16.gmra.mxu0 %v1156
    %v2979 = vpop.f32.mrf.mxu0
    %v2980 = vadd.f32 %v1333, %v2979
    %v2981 = vpop.f32.mrf.mxu0
    %v2982 = vadd.f32 %v1337, %v2981
    %v2983 = vpop.f32.mrf.mxu0
    %v2984 = vadd.f32 %v1333, %v2983
    %v2985 = vpop.f32.mrf.mxu0
    %v2986 = vadd.f32 %v1337, %v2985
    %2987 = vmatprep.mubr.bf16.mxu0 %v1159
    %2988 = vmatmul.mubr.bf16.gmra.mxu0 %v1158
    %v2989 = vpop.f32.mrf.mxu0
    %v2990 = vadd.f32 %v1333, %v2989
    %v2991 = vpop.f32.mrf.mxu0
    %v2992 = vadd.f32 %v1337, %v2991
    %v2993 = vpop.f32.mrf.mxu0
    %v2994 = vadd.f32 %v1333, %v2993
    %v2995 = vpop.f32.mrf.mxu0
    %v2996 = vadd.f32 %v1337, %v2995
    %2997 = vmatprep.mubr.bf16.mxu0 %v1161
    %2998 = vmatmul.mubr.bf16.gmra.mxu0 %v1160
    %v2999 = vpop.f32.mrf.mxu0
    %v3000 = vadd.f32 %v1333, %v2999
    %v3001 = vpop.f32.mrf.mxu0
    %v3002 = vadd.f32 %v1337, %v3001
    %v3003 = vpop.f32.mrf.mxu0
    %v3004 = vadd.f32 %v1333, %v3003
    %v3005 = vpop.f32.mrf.mxu0
    %v3006 = vadd.f32 %v1337, %v3005
    %3007 = vmatprep.mubr.bf16.mxu0 %v1163
    %3008 = vmatmul.mubr.bf16.gmra.mxu0 %v1162
    %v3009 = vpop.f32.mrf.mxu0
    %v3010 = vadd.f32 %v1333, %v3009
    %v3011 = vpop.f32.mrf.mxu0
    %v3012 = vadd.f32 %v1337, %v3011
    %v3013 = vpop.f32.mrf.mxu0
    %v3014 = vadd.f32 %v1333, %v3013
    %v3015 = vpop.f32.mrf.mxu0
    %v3016 = vadd.f32 %v1337, %v3015
    %3017 = vmatprep.mubr.bf16.mxu0 %v1165
    %3018 = vmatmul.mubr.bf16.gmra.mxu0 %v1164
    %v3019 = vpop.f32.mrf.mxu0
    %v3020 = vadd.f32 %v1333, %v3019
    %v3021 = vpop.f32.mrf.mxu0
    %v3022 = vadd.f32 %v1337, %v3021
    %v3023 = vpop.f32.mrf.mxu0
    %v3024 = vadd.f32 %v1333, %v3023
    %v3025 = vpop.f32.mrf.mxu0
    %v3026 = vadd.f32 %v1337, %v3025
    %3027 = vmatprep.mubr.bf16.mxu0 %v1167
    %3028 = vmatmul.mubr.bf16.gmra.mxu0 %v1166
    %v3029 = vpop.f32.mrf.mxu0
    %v3030 = vadd.f32 %v1333, %v3029
    %v3031 = vpop.f32.mrf.mxu0
    %v3032 = vadd.f32 %v1337, %v3031
    %v3033 = vpop.f32.mrf.mxu0
    %v3034 = vadd.f32 %v1333, %v3033
    %v3035 = vpop.f32.mrf.mxu0
    %v3036 = vadd.f32 %v1337, %v3035
    %3037 = vmatprep.mubr.bf16.mxu0 %v1169
    %3038 = vmatmul.mubr.bf16.gmra.mxu0 %v1168
    %v3039 = vpop.f32.mrf.mxu0
    %v3040 = vadd.f32 %v1333, %v3039
    %v3041 = vpop.f32.mrf.mxu0
    %v3042 = vadd.f32 %v1337, %v3041
    %v3043 = vpop.f32.mrf.mxu0
    %v3044 = vadd.f32 %v1333, %v3043
    %v3045 = vpop.f32.mrf.mxu0
    %v3046 = vadd.f32 %v1337, %v3045
    %3047 = vmatprep.mubr.bf16.mxu0 %v1171
    %3048 = vmatmul.mubr.bf16.gmra.mxu0 %v1170
    %v3049 = vpop.f32.mrf.mxu0
    %v3050 = vadd.f32 %v1333, %v3049
    %v3051 = vpop.f32.mrf.mxu0
    %v3052 = vadd.f32 %v1337, %v3051
    %v3053 = vpop.f32.mrf.mxu0
    %v3054 = vadd.f32 %v1333, %v3053
    %v3055 = vpop.f32.mrf.mxu0
    %v3056 = vadd.f32 %v1337, %v3055
    %3057 = vmatprep.mubr.bf16.mxu0 %v1173
    %3058 = vmatmul.mubr.bf16.gmra.mxu0 %v1172
    %v3059 = vpop.f32.mrf.mxu0
    %v3060 = vadd.f32 %v1333, %v3059
    %v3061 = vpop.f32.mrf.mxu0
    %v3062 = vadd.f32 %v1337, %v3061
    %v3063 = vpop.f32.mrf.mxu0
    %v3064 = vadd.f32 %v1333, %v3063
    %v3065 = vpop.f32.mrf.mxu0
    %v3066 = vadd.f32 %v1337, %v3065
    %3067 = vmatprep.mubr.bf16.mxu0 %v1175
    %3068 = vmatmul.mubr.bf16.gmra.mxu0 %v1174
    %v3069 = vpop.f32.mrf.mxu0
    %v3070 = vadd.f32 %v1333, %v3069
    %v3071 = vpop.f32.mrf.mxu0
    %v3072 = vadd.f32 %v1337, %v3071
    %v3073 = vpop.f32.mrf.mxu0
    %v3074 = vadd.f32 %v1333, %v3073
    %v3075 = vpop.f32.mrf.mxu0
    %v3076 = vadd.f32 %v1337, %v3075
    %3077 = vdwg.mxu0
    %v3078 = vmul.f32 %v2021, 0.5
    %v3079 = vmul.f32 %v2023, 0.5
    %v3080 = vmul.f32 %v2294, 0.5
    %v3081 = vmul.f32 %v2296, 0.5
    %v3082 = vmul.f32 %v2567, 0.5
    %v3083 = vmul.f32 %v2569, 0.5
    %v3084 = vmul.f32 %v2840, 0.5
    %v3085 = vmul.f32 %v2842, 0.5
    %v3086 = vmul.f32 %v2025, 0.5
    %v3087 = vmul.f32 %v2027, 0.5
    %v3088 = vmul.f32 %v2298, 0.5
    %v3089 = vmul.f32 %v2300, 0.5
    %v3090 = vmul.f32 %v2571, 0.5
    %v3091 = vmul.f32 %v2573, 0.5
    %v3092 = vmul.f32 %v2844, 0.5
    %v3093 = vmul.f32 %v2846, 0.5
    %v3094 = vmul.f32 %v2031, 0.5
    %v3095 = vmul.f32 %v2033, 0.5
    %v3096 = vmul.f32 %v2304, 0.5
    %v3097 = vmul.f32 %v2306, 0.5
    %v3098 = vmul.f32 %v2577, 0.5
    %v3099 = vmul.f32 %v2579, 0.5
    %v3100 = vmul.f32 %v2850, 0.5
    %v3101 = vmul.f32 %v2852, 0.5
    %v3102 = vmul.f32 %v2035, 0.5
    %v3103 = vmul.f32 %v2037, 0.5
    %v3104 = vmul.f32 %v2308, 0.5
    %v3105 = vmul.f32 %v2310, 0.5
    %v3106 = vmul.f32 %v2581, 0.5
    %v3107 = vmul.f32 %v2583, 0.5
    %v3108 = vmul.f32 %v2854, 0.5
    %v3109 = vmul.f32 %v2856, 0.5
    %v3110 = vmul.f32 %v2041, 0.5
    %v3111 = vmul.f32 %v2043, 0.5
    %v3112 = vmul.f32 %v2314, 0.5
    %v3113 = vmul.f32 %v2316, 0.5
    %v3114 = vmul.f32 %v2587, 0.5
    %v3115 = vmul.f32 %v2589, 0.5
    %v3116 = vmul.f32 %v2860, 0.5
    %v3117 = vmul.f32 %v2862, 0.5
    %v3118 = vmul.f32 %v2045, 0.5
    %v3119 = vmul.f32 %v2047, 0.5
    %v3120 = vmul.f32 %v2318, 0.5
    %v3121 = vmul.f32 %v2320, 0.5
    %v3122 = vmul.f32 %v2591, 0.5
    %v3123 = vmul.f32 %v2593, 0.5
    %v3124 = vmul.f32 %v2864, 0.5
    %v3125 = vmul.f32 %v2866, 0.5
    %v3126 = vmul.f32 %v2051, 0.5
    %v3127 = vmul.f32 %v2053, 0.5
    %v3128 = vmul.f32 %v2324, 0.5
    %v3129 = vmul.f32 %v2326, 0.5
    %v3130 = vmul.f32 %v2597, 0.5
    %v3131 = vmul.f32 %v2599, 0.5
    %v3132 = vmul.f32 %v2870, 0.5
    %v3133 = vmul.f32 %v2872, 0.5
    %v3134 = vmul.f32 %v2055, 0.5
    %v3135 = vmul.f32 %v2057, 0.5
    %v3136 = vmul.f32 %v2328, 0.5
    %v3137 = vmul.f32 %v2330, 0.5
    %v3138 = vmul.f32 %v2601, 0.5
    %v3139 = vmul.f32 %v2603, 0.5
    %v3140 = vmul.f32 %v2874, 0.5
    %v3141 = vmul.f32 %v2876, 0.5
    %v3142 = vmul.f32 %v2061, 0.5
    %v3143 = vmul.f32 %v2063, 0.5
    %v3144 = vmul.f32 %v2334, 0.5
    %v3145 = vmul.f32 %v2336, 0.5
    %v3146 = vmul.f32 %v2607, 0.5
    %v3147 = vmul.f32 %v2609, 0.5
    %v3148 = vmul.f32 %v2880, 0.5
    %v3149 = vmul.f32 %v2882, 0.5
    %v3150 = vmul.f32 %v2065, 0.5
    %v3151 = vmul.f32 %v2067, 0.5
    %v3152 = vmul.f32 %v2338, 0.5
    %v3153 = vmul.f32 %v2340, 0.5
    %v3154 = vmul.f32 %v2611, 0.5
    %v3155 = vmul.f32 %v2613, 0.5
    %v3156 = vmul.f32 %v2884, 0.5
    %v3157 = vmul.f32 %v2886, 0.5
    %v3158 = vmul.f32 %v2071, 0.5
    %v3159 = vmul.f32 %v2073, 0.5
    %v3160 = vmul.f32 %v2344, 0.5
    %v3161 = vmul.f32 %v2346, 0.5
    %v3162 = vmul.f32 %v2617, 0.5
    %v3163 = vmul.f32 %v2619, 0.5
    %v3164 = vmul.f32 %v2890, 0.5
    %v3165 = vmul.f32 %v2892, 0.5
    %v3166 = vmul.f32 %v2075, 0.5
    %v3167 = vmul.f32 %v2077, 0.5
    %v3168 = vmul.f32 %v2348, 0.5
    %v3169 = vmul.f32 %v2350, 0.5
    %v3170 = vmul.f32 %v2621, 0.5
    %v3171 = vmul.f32 %v2623, 0.5
    %v3172 = vmul.f32 %v2894, 0.5
    %v3173 = vmul.f32 %v2896, 0.5
    %v3174 = vmul.f32 %v2081, 0.5
    %v3175 = vmul.f32 %v2083, 0.5
    %v3176 = vmul.f32 %v2354, 0.5
    %v3177 = vmul.f32 %v2356, 0.5
    %v3178 = vmul.f32 %v2627, 0.5
    %v3179 = vmul.f32 %v2629, 0.5
    %v3180 = vmul.f32 %v2900, 0.5
    %v3181 = vmul.f32 %v2902, 0.5
    %v3182 = vmul.f32 %v2085, 0.5
    %v3183 = vmul.f32 %v2087, 0.5
    %v3184 = vmul.f32 %v2358, 0.5
    %v3185 = vmul.f32 %v2360, 0.5
    %v3186 = vmul.f32 %v2631, 0.5
    %v3187 = vmul.f32 %v2633, 0.5
    %v3188 = vmul.f32 %v2904, 0.5
    %v3189 = vmul.f32 %v2906, 0.5
    %v3190 = vmul.f32 %v2091, 0.5
    %v3191 = vmul.f32 %v2093, 0.5
    %v3192 = vmul.f32 %v2364, 0.5
    %v3193 = vmul.f32 %v2366, 0.5
    %v3194 = vmul.f32 %v2637, 0.5
    %v3195 = vmul.f32 %v2639, 0.5
    %v3196 = vmul.f32 %v2910, 0.5
    %v3197 = vmul.f32 %v2912, 0.5
    %v3198 = vmul.f32 %v2095, 0.5
    %v3199 = vmul.f32 %v2097, 0.5
    %v3200 = vmul.f32 %v2368, 0.5
    %v3201 = vmul.f32 %v2370, 0.5
    %v3202 = vmul.f32 %v2641, 0.5
    %v3203 = vmul.f32 %v2643, 0.5
    %v3204 = vmul.f32 %v2914, 0.5
    %v3205 = vmul.f32 %v2916, 0.5
    %v3206 = vmul.f32 %v2101, 0.5
    %v3207 = vmul.f32 %v2103, 0.5
    %v3208 = vmul.f32 %v2374, 0.5
    %v3209 = vmul.f32 %v2376, 0.5
    %v3210 = vmul.f32 %v2647, 0.5
    %v3211 = vmul.f32 %v2649, 0.5
    %v3212 = vmul.f32 %v2920, 0.5
    %v3213 = vmul.f32 %v2922, 0.5
    %v3214 = vmul.f32 %v2105, 0.5
    %v3215 = vmul.f32 %v2107, 0.5
    %v3216 = vmul.f32 %v2378, 0.5
    %v3217 = vmul.f32 %v2380, 0.5
    %v3218 = vmul.f32 %v2651, 0.5
    %v3219 = vmul.f32 %v2653, 0.5
    %v3220 = vmul.f32 %v2924, 0.5
    %v3221 = vmul.f32 %v2926, 0.5
    %v3222 = vmul.f32 %v2111, 0.5
    %v3223 = vmul.f32 %v2113, 0.5
    %v3224 = vmul.f32 %v2384, 0.5
    %v3225 = vmul.f32 %v2386, 0.5
    %v3226 = vmul.f32 %v2657, 0.5
    %v3227 = vmul.f32 %v2659, 0.5
    %v3228 = vmul.f32 %v2930, 0.5
    %v3229 = vmul.f32 %v2932, 0.5
    %v3230 = vmul.f32 %v2115, 0.5
    %v3231 = vmul.f32 %v2117, 0.5
    %v3232 = vmul.f32 %v2388, 0.5
    %v3233 = vmul.f32 %v2390, 0.5
    %v3234 = vmul.f32 %v2661, 0.5
    %v3235 = vmul.f32 %v2663, 0.5
    %v3236 = vmul.f32 %v2934, 0.5
    %v3237 = vmul.f32 %v2936, 0.5
    %v3238 = vmul.f32 %v2121, 0.5
    %v3239 = vmul.f32 %v2123, 0.5
    %v3240 = vmul.f32 %v2394, 0.5
    %v3241 = vmul.f32 %v2396, 0.5
    %v3242 = vmul.f32 %v2667, 0.5
    %v3243 = vmul.f32 %v2669, 0.5
    %v3244 = vmul.f32 %v2940, 0.5
    %v3245 = vmul.f32 %v2942, 0.5
    %v3246 = vmul.f32 %v2125, 0.5
    %v3247 = vmul.f32 %v2127, 0.5
    %v3248 = vmul.f32 %v2398, 0.5
    %v3249 = vmul.f32 %v2400, 0.5
    %v3250 = vmul.f32 %v2671, 0.5
    %v3251 = vmul.f32 %v2673, 0.5
    %v3252 = vmul.f32 %v2944, 0.5
    %v3253 = vmul.f32 %v2946, 0.5
    %v3254 = vmul.f32 %v2131, 0.5
    %v3255 = vmul.f32 %v2133, 0.5
    %v3256 = vmul.f32 %v2404, 0.5
    %v3257 = vmul.f32 %v2406, 0.5
    %v3258 = vmul.f32 %v2677, 0.5
    %v3259 = vmul.f32 %v2679, 0.5
    %v3260 = vmul.f32 %v2950, 0.5
    %v3261 = vmul.f32 %v2952, 0.5
    %v3262 = vmul.f32 %v2135, 0.5
    %v3263 = vmul.f32 %v2137, 0.5
    %v3264 = vmul.f32 %v2408, 0.5
    %v3265 = vmul.f32 %v2410, 0.5
    %v3266 = vmul.f32 %v2681, 0.5
    %v3267 = vmul.f32 %v2683, 0.5
    %v3268 = vmul.f32 %v2954, 0.5
    %v3269 = vmul.f32 %v2956, 0.5
    %v3270 = vmul.f32 %v2141, 0.5
    %v3271 = vmul.f32 %v2143, 0.5
    %v3272 = vmul.f32 %v2414, 0.5
    %v3273 = vmul.f32 %v2416, 0.5
    %v3274 = vmul.f32 %v2687, 0.5
    %v3275 = vmul.f32 %v2689, 0.5
    %v3276 = vmul.f32 %v2960, 0.5
    %v3277 = vmul.f32 %v2962, 0.5
    %v3278 = vmul.f32 %v2145, 0.5
    %v3279 = vmul.f32 %v2147, 0.5
    %v3280 = vmul.f32 %v2418, 0.5
    %v3281 = vmul.f32 %v2420, 0.5
    %v3282 = vmul.f32 %v2691, 0.5
    %v3283 = vmul.f32 %v2693, 0.5
    %v3284 = vmul.f32 %v2964, 0.5
    %v3285 = vmul.f32 %v2966, 0.5
    %v3286 = vmul.f32 %v2151, 0.5
    %v3287 = vmul.f32 %v2153, 0.5
    %v3288 = vmul.f32 %v2424, 0.5
    %v3289 = vmul.f32 %v2426, 0.5
    %v3290 = vmul.f32 %v2697, 0.5
    %v3291 = vmul.f32 %v2699, 0.5
    %v3292 = vmul.f32 %v2970, 0.5
    %v3293 = vmul.f32 %v2972, 0.5
    %v3294 = vmul.f32 %v2155, 0.5
    %v3295 = vmul.f32 %v2157, 0.5
    %v3296 = vmul.f32 %v2428, 0.5
    %v3297 = vmul.f32 %v2430, 0.5
    %v3298 = vmul.f32 %v2701, 0.5
    %v3299 = vmul.f32 %v2703, 0.5
    %v3300 = vmul.f32 %v2974, 0.5
    %v3301 = vmul.f32 %v2976, 0.5
    %v3302 = vmul.f32 %v2161, 0.5
    %v3303 = vmul.f32 %v2163, 0.5
    %v3304 = vmul.f32 %v2434, 0.5
    %v3305 = vmul.f32 %v2436, 0.5
    %v3306 = vmul.f32 %v2707, 0.5
    %v3307 = vmul.f32 %v2709, 0.5
    %v3308 = vmul.f32 %v2980, 0.5
    %v3309 = vmul.f32 %v2982, 0.5
    %v3310 = vmul.f32 %v2165, 0.5
    %v3311 = vmul.f32 %v2167, 0.5
    %v3312 = vmul.f32 %v2438, 0.5
    %v3313 = vmul.f32 %v2440, 0.5
    %v3314 = vmul.f32 %v2711, 0.5
    %v3315 = vmul.f32 %v2713, 0.5
    %v3316 = vmul.f32 %v2984, 0.5
    %v3317 = vmul.f32 %v2986, 0.5
    %v3318 = vmul.f32 %v2171, 0.5
    %v3319 = vmul.f32 %v2173, 0.5
    %v3320 = vmul.f32 %v2444, 0.5
    %v3321 = vmul.f32 %v2446, 0.5
    %v3322 = vmul.f32 %v2717, 0.5
    %v3323 = vmul.f32 %v2719, 0.5
    %v3324 = vmul.f32 %v2990, 0.5
    %v3325 = vmul.f32 %v2992, 0.5
    %v3326 = vmul.f32 %v2175, 0.5
    %v3327 = vmul.f32 %v2177, 0.5
    %v3328 = vmul.f32 %v2448, 0.5
    %v3329 = vmul.f32 %v2450, 0.5
    %v3330 = vmul.f32 %v2721, 0.5
    %v3331 = vmul.f32 %v2723, 0.5
    %v3332 = vmul.f32 %v2994, 0.5
    %v3333 = vmul.f32 %v2996, 0.5
    %v3334 = vmul.f32 %v2181, 0.5
    %v3335 = vmul.f32 %v2183, 0.5
    %v3336 = vmul.f32 %v2454, 0.5
    %v3337 = vmul.f32 %v2456, 0.5
    %v3338 = vmul.f32 %v2727, 0.5
    %v3339 = vmul.f32 %v2729, 0.5
    %v3340 = vmul.f32 %v3000, 0.5
    %v3341 = vmul.f32 %v3002, 0.5
    %v3342 = vmul.f32 %v2185, 0.5
    %v3343 = vmul.f32 %v2187, 0.5
    %v3344 = vmul.f32 %v2458, 0.5
    %v3345 = vmul.f32 %v2460, 0.5
    %v3346 = vmul.f32 %v2731, 0.5
    %v3347 = vmul.f32 %v2733, 0.5
    %v3348 = vmul.f32 %v3004, 0.5
    %v3349 = vmul.f32 %v3006, 0.5
    %v3350 = vmul.f32 %v2191, 0.5
    %v3351 = vmul.f32 %v2193, 0.5
    %v3352 = vmul.f32 %v2464, 0.5
    %v3353 = vmul.f32 %v2466, 0.5
    %v3354 = vmul.f32 %v2737, 0.5
    %v3355 = vmul.f32 %v2739, 0.5
    %v3356 = vmul.f32 %v3010, 0.5
    %v3357 = vmul.f32 %v3012, 0.5
    %v3358 = vmul.f32 %v2195, 0.5
    %v3359 = vmul.f32 %v2197, 0.5
    %v3360 = vmul.f32 %v2468, 0.5
    %v3361 = vmul.f32 %v2470, 0.5
    %v3362 = vmul.f32 %v2741, 0.5
    %v3363 = vmul.f32 %v2743, 0.5
    %v3364 = vmul.f32 %v3014, 0.5
    %v3365 = vmul.f32 %v3016, 0.5
    %v3366 = vmul.f32 %v2201, 0.5
    %v3367 = vmul.f32 %v2203, 0.5
    %v3368 = vmul.f32 %v2474, 0.5
    %v3369 = vmul.f32 %v2476, 0.5
    %v3370 = vmul.f32 %v2747, 0.5
    %v3371 = vmul.f32 %v2749, 0.5
    %v3372 = vmul.f32 %v3020, 0.5
    %v3373 = vmul.f32 %v3022, 0.5
    %v3374 = vmul.f32 %v2205, 0.5
    %v3375 = vmul.f32 %v2207, 0.5
    %v3376 = vmul.f32 %v2478, 0.5
    %v3377 = vmul.f32 %v2480, 0.5
    %v3378 = vmul.f32 %v2751, 0.5
    %v3379 = vmul.f32 %v2753, 0.5
    %v3380 = vmul.f32 %v3024, 0.5
    %v3381 = vmul.f32 %v3026, 0.5
    %v3382 = vmul.f32 %v2211, 0.5
    %v3383 = vmul.f32 %v2213, 0.5
    %v3384 = vmul.f32 %v2484, 0.5
    %v3385 = vmul.f32 %v2486, 0.5
    %v3386 = vmul.f32 %v2757, 0.5
    %v3387 = vmul.f32 %v2759, 0.5
    %v3388 = vmul.f32 %v3030, 0.5
    %v3389 = vmul.f32 %v3032, 0.5
    %v3390 = vmul.f32 %v2215, 0.5
    %v3391 = vmul.f32 %v2217, 0.5
    %v3392 = vmul.f32 %v2488, 0.5
    %v3393 = vmul.f32 %v2490, 0.5
    %v3394 = vmul.f32 %v2761, 0.5
    %v3395 = vmul.f32 %v2763, 0.5
    %v3396 = vmul.f32 %v3034, 0.5
    %v3397 = vmul.f32 %v3036, 0.5
    %v3398 = vmul.f32 %v2221, 0.5
    %v3399 = vmul.f32 %v2223, 0.5
    %v3400 = vmul.f32 %v2494, 0.5
    %v3401 = vmul.f32 %v2496, 0.5
    %v3402 = vmul.f32 %v2767, 0.5
    %v3403 = vmul.f32 %v2769, 0.5
    %v3404 = vmul.f32 %v3040, 0.5
    %v3405 = vmul.f32 %v3042, 0.5
    %v3406 = vmul.f32 %v2225, 0.5
    %v3407 = vmul.f32 %v2227, 0.5
    %v3408 = vmul.f32 %v2498, 0.5
    %v3409 = vmul.f32 %v2500, 0.5
    %v3410 = vmul.f32 %v2771, 0.5
    %v3411 = vmul.f32 %v2773, 0.5
    %v3412 = vmul.f32 %v3044, 0.5
    %v3413 = vmul.f32 %v3046, 0.5
    %v3414 = vmul.f32 %v2231, 0.5
    %v3415 = vmul.f32 %v2233, 0.5
    %v3416 = vmul.f32 %v2504, 0.5
    %v3417 = vmul.f32 %v2506, 0.5
    %v3418 = vmul.f32 %v2777, 0.5
    %v3419 = vmul.f32 %v2779, 0.5
    %v3420 = vmul.f32 %v3050, 0.5
    %v3421 = vmul.f32 %v3052, 0.5
    %v3422 = vmul.f32 %v2235, 0.5
    %v3423 = vmul.f32 %v2237, 0.5
    %v3424 = vmul.f32 %v2508, 0.5
    %v3425 = vmul.f32 %v2510, 0.5
    %v3426 = vmul.f32 %v2781, 0.5
    %v3427 = vmul.f32 %v2783, 0.5
    %v3428 = vmul.f32 %v3054, 0.5
    %v3429 = vmul.f32 %v3056, 0.5
    %v3430 = vmul.f32 %v2241, 0.5
    %v3431 = vmul.f32 %v2243, 0.5
    %v3432 = vmul.f32 %v2514, 0.5
    %v3433 = vmul.f32 %v2516, 0.5
    %v3434 = vmul.f32 %v2787, 0.5
    %v3435 = vmul.f32 %v2789, 0.5
    %v3436 = vmul.f32 %v3060, 0.5
    %v3437 = vmul.f32 %v3062, 0.5
    %v3438 = vmul.f32 %v2245, 0.5
    %v3439 = vmul.f32 %v2247, 0.5
    %v3440 = vmul.f32 %v2518, 0.5
    %v3441 = vmul.f32 %v2520, 0.5
    %v3442 = vmul.f32 %v2791, 0.5
    %v3443 = vmul.f32 %v2793, 0.5
    %v3444 = vmul.f32 %v3064, 0.5
    %v3445 = vmul.f32 %v3066, 0.5
    %v3446 = vmul.f32 %v2251, 0.5
    %v3447 = vmul.f32 %v2253, 0.5
    %v3448 = vmul.f32 %v2524, 0.5
    %v3449 = vmul.f32 %v2526, 0.5
    %v3450 = vmul.f32 %v2797, 0.5
    %v3451 = vmul.f32 %v2799, 0.5
    %v3452 = vmul.f32 %v3070, 0.5
    %v3453 = vmul.f32 %v3072, 0.5
    %v3454 = vmul.f32 %v2255, 0.5
    %v3455 = vmul.f32 %v2257, 0.5
    %v3456 = vmul.f32 %v2528, 0.5
    %v3457 = vmul.f32 %v2530, 0.5
    %v3458 = vmul.f32 %v2801, 0.5
    %v3459 = vmul.f32 %v2803, 0.5
    %v3460 = vmul.f32 %v3074, 0.5
    %v3461 = vmul.f32 %v3076, 0.5
    %v3462 = vmul.f32 %v2021, 0.70710677
    %v3463 = vmul.f32 %v2023, 0.70710677
    %v3464 = vmul.f32 %v2294, 0.70710677
    %v3465 = vmul.f32 %v2296, 0.70710677
    %v3466 = vmul.f32 %v2567, 0.70710677
    %v3467 = vmul.f32 %v2569, 0.70710677
    %v3468 = vmul.f32 %v2840, 0.70710677
    %v3469 = vmul.f32 %v2842, 0.70710677
    %v3470 = vmul.f32 %v2025, 0.70710677
    %v3471 = vmul.f32 %v2027, 0.70710677
    %v3472 = vmul.f32 %v2298, 0.70710677
    %v3473 = vmul.f32 %v2300, 0.70710677
    %v3474 = vmul.f32 %v2571, 0.70710677
    %v3475 = vmul.f32 %v2573, 0.70710677
    %v3476 = vmul.f32 %v2844, 0.70710677
    %v3477 = vmul.f32 %v2846, 0.70710677
    %v3478 = vmul.f32 %v2031, 0.70710677
    %v3479 = vmul.f32 %v2033, 0.70710677
    %v3480 = vmul.f32 %v2304, 0.70710677
    %v3481 = vmul.f32 %v2306, 0.70710677
    %v3482 = vmul.f32 %v2577, 0.70710677
    %v3483 = vmul.f32 %v2579, 0.70710677
    %v3484 = vmul.f32 %v2850, 0.70710677
    %v3485 = vmul.f32 %v2852, 0.70710677
    %v3486 = vmul.f32 %v2035, 0.70710677
    %v3487 = vmul.f32 %v2037, 0.70710677
    %v3488 = vmul.f32 %v2308, 0.70710677
    %v3489 = vmul.f32 %v2310, 0.70710677
    %v3490 = vmul.f32 %v2581, 0.70710677
    %v3491 = vmul.f32 %v2583, 0.70710677
    %v3492 = vmul.f32 %v2854, 0.70710677
    %v3493 = vmul.f32 %v2856, 0.70710677
    %v3494 = vmul.f32 %v2041, 0.70710677
    %v3495 = vmul.f32 %v2043, 0.70710677
    %v3496 = vmul.f32 %v2314, 0.70710677
    %v3497 = vmul.f32 %v2316, 0.70710677
    %v3498 = vmul.f32 %v2587, 0.70710677
    %v3499 = vmul.f32 %v2589, 0.70710677
    %v3500 = vmul.f32 %v2860, 0.70710677
    %v3501 = vmul.f32 %v2862, 0.70710677
    %v3502 = vmul.f32 %v2045, 0.70710677
    %v3503 = vmul.f32 %v2047, 0.70710677
    %v3504 = vmul.f32 %v2318, 0.70710677
    %v3505 = vmul.f32 %v2320, 0.70710677
    %v3506 = vmul.f32 %v2591, 0.70710677
    %v3507 = vmul.f32 %v2593, 0.70710677
    %v3508 = vmul.f32 %v2864, 0.70710677
    %v3509 = vmul.f32 %v2866, 0.70710677
    %v3510 = vmul.f32 %v2051, 0.70710677
    %v3511 = vmul.f32 %v2053, 0.70710677
    %v3512 = vmul.f32 %v2324, 0.70710677
    %v3513 = vmul.f32 %v2326, 0.70710677
    %v3514 = vmul.f32 %v2597, 0.70710677
    %v3515 = vmul.f32 %v2599, 0.70710677
    %v3516 = vmul.f32 %v2870, 0.70710677
    %v3517 = vmul.f32 %v2872, 0.70710677
    %v3518 = vmul.f32 %v2055, 0.70710677
    %v3519 = vmul.f32 %v2057, 0.70710677
    %v3520 = vmul.f32 %v2328, 0.70710677
    %v3521 = vmul.f32 %v2330, 0.70710677
    %v3522 = vmul.f32 %v2601, 0.70710677
    %v3523 = vmul.f32 %v2603, 0.70710677
    %v3524 = vmul.f32 %v2874, 0.70710677
    %v3525 = vmul.f32 %v2876, 0.70710677
    %v3526 = vmul.f32 %v2061, 0.70710677
    %v3527 = vmul.f32 %v2063, 0.70710677
    %v3528 = vmul.f32 %v2334, 0.70710677
    %v3529 = vmul.f32 %v2336, 0.70710677
    %v3530 = vmul.f32 %v2607, 0.70710677
    %v3531 = vmul.f32 %v2609, 0.70710677
    %v3532 = vmul.f32 %v2880, 0.70710677
    %v3533 = vmul.f32 %v2882, 0.70710677
    %v3534 = vmul.f32 %v2065, 0.70710677
    %v3535 = vmul.f32 %v2067, 0.70710677
    %v3536 = vmul.f32 %v2338, 0.70710677
    %v3537 = vmul.f32 %v2340, 0.70710677
    %v3538 = vmul.f32 %v2611, 0.70710677
    %v3539 = vmul.f32 %v2613, 0.70710677
    %v3540 = vmul.f32 %v2884, 0.70710677
    %v3541 = vmul.f32 %v2886, 0.70710677
    %v3542 = vmul.f32 %v2071, 0.70710677
    %v3543 = vmul.f32 %v2073, 0.70710677
    %v3544 = vmul.f32 %v2344, 0.70710677
    %v3545 = vmul.f32 %v2346, 0.70710677
    %v3546 = vmul.f32 %v2617, 0.70710677
    %v3547 = vmul.f32 %v2619, 0.70710677
    %v3548 = vmul.f32 %v2890, 0.70710677
    %v3549 = vmul.f32 %v2892, 0.70710677
    %v3550 = vmul.f32 %v2075, 0.70710677
    %v3551 = vmul.f32 %v2077, 0.70710677
    %v3552 = vmul.f32 %v2348, 0.70710677
    %v3553 = vmul.f32 %v2350, 0.70710677
    %v3554 = vmul.f32 %v2621, 0.70710677
    %v3555 = vmul.f32 %v2623, 0.70710677
    %v3556 = vmul.f32 %v2894, 0.70710677
    %v3557 = vmul.f32 %v2896, 0.70710677
    %v3558 = vmul.f32 %v2081, 0.70710677
    %v3559 = vmul.f32 %v2083, 0.70710677
    %v3560 = vmul.f32 %v2354, 0.70710677
    %v3561 = vmul.f32 %v2356, 0.70710677
    %v3562 = vmul.f32 %v2627, 0.70710677
    %v3563 = vmul.f32 %v2629, 0.70710677
    %v3564 = vmul.f32 %v2900, 0.70710677
    %v3565 = vmul.f32 %v2902, 0.70710677
    %v3566 = vmul.f32 %v2085, 0.70710677
    %v3567 = vmul.f32 %v2087, 0.70710677
    %v3568 = vmul.f32 %v2358, 0.70710677
    %v3569 = vmul.f32 %v2360, 0.70710677
    %v3570 = vmul.f32 %v2631, 0.70710677
    %v3571 = vmul.f32 %v2633, 0.70710677
    %v3572 = vmul.f32 %v2904, 0.70710677
    %v3573 = vmul.f32 %v2906, 0.70710677
    %v3574 = vmul.f32 %v2091, 0.70710677
    %v3575 = vmul.f32 %v2093, 0.70710677
    %v3576 = vmul.f32 %v2364, 0.70710677
    %v3577 = vmul.f32 %v2366, 0.70710677
    %v3578 = vmul.f32 %v2637, 0.70710677
    %v3579 = vmul.f32 %v2639, 0.70710677
    %v3580 = vmul.f32 %v2910, 0.70710677
    %v3581 = vmul.f32 %v2912, 0.70710677
    %v3582 = vmul.f32 %v2095, 0.70710677
    %v3583 = vmul.f32 %v2097, 0.70710677
    %v3584 = vmul.f32 %v2368, 0.70710677
    %v3585 = vmul.f32 %v2370, 0.70710677
    %v3586 = vmul.f32 %v2641, 0.70710677
    %v3587 = vmul.f32 %v2643, 0.70710677
    %v3588 = vmul.f32 %v2914, 0.70710677
    %v3589 = vmul.f32 %v2916, 0.70710677
    %v3590 = vmul.f32 %v2101, 0.70710677
    %v3591 = vmul.f32 %v2103, 0.70710677
    %v3592 = vmul.f32 %v2374, 0.70710677
    %v3593 = vmul.f32 %v2376, 0.70710677
    %v3594 = vmul.f32 %v2647, 0.70710677
    %v3595 = vmul.f32 %v2649, 0.70710677
    %v3596 = vmul.f32 %v2920, 0.70710677
    %v3597 = vmul.f32 %v2922, 0.70710677
    %v3598 = vmul.f32 %v2105, 0.70710677
    %v3599 = vmul.f32 %v2107, 0.70710677
    %v3600 = vmul.f32 %v2378, 0.70710677
    %v3601 = vmul.f32 %v2380, 0.70710677
    %v3602 = vmul.f32 %v2651, 0.70710677
    %v3603 = vmul.f32 %v2653, 0.70710677
    %v3604 = vmul.f32 %v2924, 0.70710677
    %v3605 = vmul.f32 %v2926, 0.70710677
    %v3606 = vmul.f32 %v2111, 0.70710677
    %v3607 = vmul.f32 %v2113, 0.70710677
    %v3608 = vmul.f32 %v2384, 0.70710677
    %v3609 = vmul.f32 %v2386, 0.70710677
    %v3610 = vmul.f32 %v2657, 0.70710677
    %v3611 = vmul.f32 %v2659, 0.70710677
    %v3612 = vmul.f32 %v2930, 0.70710677
    %v3613 = vmul.f32 %v2932, 0.70710677
    %v3614 = vmul.f32 %v2115, 0.70710677
    %v3615 = vmul.f32 %v2117, 0.70710677
    %v3616 = vmul.f32 %v2388, 0.70710677
    %v3617 = vmul.f32 %v2390, 0.70710677
    %v3618 = vmul.f32 %v2661, 0.70710677
    %v3619 = vmul.f32 %v2663, 0.70710677
    %v3620 = vmul.f32 %v2934, 0.70710677
    %v3621 = vmul.f32 %v2936, 0.70710677
    %v3622 = vmul.f32 %v2121, 0.70710677
    %v3623 = vmul.f32 %v2123, 0.70710677
    %v3624 = vmul.f32 %v2394, 0.70710677
    %v3625 = vmul.f32 %v2396, 0.70710677
    %v3626 = vmul.f32 %v2667, 0.70710677
    %v3627 = vmul.f32 %v2669, 0.70710677
    %v3628 = vmul.f32 %v2940, 0.70710677
    %v3629 = vmul.f32 %v2942, 0.70710677
    %v3630 = vmul.f32 %v2125, 0.70710677
    %v3631 = vmul.f32 %v2127, 0.70710677
    %v3632 = vmul.f32 %v2398, 0.70710677
    %v3633 = vmul.f32 %v2400, 0.70710677
    %v3634 = vmul.f32 %v2671, 0.70710677
    %v3635 = vmul.f32 %v2673, 0.70710677
    %v3636 = vmul.f32 %v2944, 0.70710677
    %v3637 = vmul.f32 %v2946, 0.70710677
    %v3638 = vmul.f32 %v2131, 0.70710677
    %v3639 = vmul.f32 %v2133, 0.70710677
    %v3640 = vmul.f32 %v2404, 0.70710677
    %v3641 = vmul.f32 %v2406, 0.70710677
    %v3642 = vmul.f32 %v2677, 0.70710677
    %v3643 = vmul.f32 %v2679, 0.70710677
    %v3644 = vmul.f32 %v2950, 0.70710677
    %v3645 = vmul.f32 %v2952, 0.70710677
    %v3646 = vmul.f32 %v2135, 0.70710677
    %v3647 = vmul.f32 %v2137, 0.70710677
    %v3648 = vmul.f32 %v2408, 0.70710677
    %v3649 = vmul.f32 %v2410, 0.70710677
    %v3650 = vmul.f32 %v2681, 0.70710677
    %v3651 = vmul.f32 %v2683, 0.70710677
    %v3652 = vmul.f32 %v2954, 0.70710677
    %v3653 = vmul.f32 %v2956, 0.70710677
    %v3654 = vmul.f32 %v2141, 0.70710677
    %v3655 = vmul.f32 %v2143, 0.70710677
    %v3656 = vmul.f32 %v2414, 0.70710677
    %v3657 = vmul.f32 %v2416, 0.70710677
    %v3658 = vmul.f32 %v2687, 0.70710677
    %v3659 = vmul.f32 %v2689, 0.70710677
    %v3660 = vmul.f32 %v2960, 0.70710677
    %v3661 = vmul.f32 %v2962, 0.70710677
    %v3662 = vmul.f32 %v2145, 0.70710677
    %v3663 = vmul.f32 %v2147, 0.70710677
    %v3664 = vmul.f32 %v2418, 0.70710677
    %v3665 = vmul.f32 %v2420, 0.70710677
    %v3666 = vmul.f32 %v2691, 0.70710677
    %v3667 = vmul.f32 %v2693, 0.70710677
    %v3668 = vmul.f32 %v2964, 0.70710677
    %v3669 = vmul.f32 %v2966, 0.70710677
    %v3670 = vmul.f32 %v2151, 0.70710677
    %v3671 = vmul.f32 %v2153, 0.70710677
    %v3672 = vmul.f32 %v2424, 0.70710677
    %v3673 = vmul.f32 %v2426, 0.70710677
    %v3674 = vmul.f32 %v2697, 0.70710677
    %v3675 = vmul.f32 %v2699, 0.70710677
    %v3676 = vmul.f32 %v2970, 0.70710677
    %v3677 = vmul.f32 %v2972, 0.70710677
    %v3678 = vmul.f32 %v2155, 0.70710677
    %v3679 = vmul.f32 %v2157, 0.70710677
    %v3680 = vmul.f32 %v2428, 0.70710677
    %v3681 = vmul.f32 %v2430, 0.70710677
    %v3682 = vmul.f32 %v2701, 0.70710677
    %v3683 = vmul.f32 %v2703, 0.70710677
    %v3684 = vmul.f32 %v2974, 0.70710677
    %v3685 = vmul.f32 %v2976, 0.70710677
    %v3686 = vmul.f32 %v2161, 0.70710677
    %v3687 = vmul.f32 %v2163, 0.70710677
    %v3688 = vmul.f32 %v2434, 0.70710677
    %v3689 = vmul.f32 %v2436, 0.70710677
    %v3690 = vmul.f32 %v2707, 0.70710677
    %v3691 = vmul.f32 %v2709, 0.70710677
    %v3692 = vmul.f32 %v2980, 0.70710677
    %v3693 = vmul.f32 %v2982, 0.70710677
    %v3694 = vmul.f32 %v2165, 0.70710677
    %v3695 = vmul.f32 %v2167, 0.70710677
    %v3696 = vmul.f32 %v2438, 0.70710677
    %v3697 = vmul.f32 %v2440, 0.70710677
    %v3698 = vmul.f32 %v2711, 0.70710677
    %v3699 = vmul.f32 %v2713, 0.70710677
    %v3700 = vmul.f32 %v2984, 0.70710677
    %v3701 = vmul.f32 %v2986, 0.70710677
    %v3702 = vmul.f32 %v2171, 0.70710677
    %v3703 = vmul.f32 %v2173, 0.70710677
    %v3704 = vmul.f32 %v2444, 0.70710677
    %v3705 = vmul.f32 %v2446, 0.70710677
    %v3706 = vmul.f32 %v2717, 0.70710677
    %v3707 = vmul.f32 %v2719, 0.70710677
    %v3708 = vmul.f32 %v2990, 0.70710677
    %v3709 = vmul.f32 %v2992, 0.70710677
    %v3710 = vmul.f32 %v2175, 0.70710677
    %v3711 = vmul.f32 %v2177, 0.70710677
    %v3712 = vmul.f32 %v2448, 0.70710677
    %v3713 = vmul.f32 %v2450, 0.70710677
    %v3714 = vmul.f32 %v2721, 0.70710677
    %v3715 = vmul.f32 %v2723, 0.70710677
    %v3716 = vmul.f32 %v2994, 0.70710677
    %v3717 = vmul.f32 %v2996, 0.70710677
    %v3718 = vmul.f32 %v2181, 0.70710677
    %v3719 = vmul.f32 %v2183, 0.70710677
    %v3720 = vmul.f32 %v2454, 0.70710677
    %v3721 = vmul.f32 %v2456, 0.70710677
    %v3722 = vmul.f32 %v2727, 0.70710677
    %v3723 = vmul.f32 %v2729, 0.70710677
    %v3724 = vmul.f32 %v3000, 0.70710677
    %v3725 = vmul.f32 %v3002, 0.70710677
    %v3726 = vmul.f32 %v2185, 0.70710677
    %v3727 = vmul.f32 %v2187, 0.70710677
    %v3728 = vmul.f32 %v2458, 0.70710677
    %v3729 = vmul.f32 %v2460, 0.70710677
    %v3730 = vmul.f32 %v2731, 0.70710677
    %v3731 = vmul.f32 %v2733, 0.70710677
    %v3732 = vmul.f32 %v3004, 0.70710677
    %v3733 = vmul.f32 %v3006, 0.70710677
    %v3734 = vmul.f32 %v2191, 0.70710677
    %v3735 = vmul.f32 %v2193, 0.70710677
    %v3736 = vmul.f32 %v2464, 0.70710677
    %v3737 = vmul.f32 %v2466, 0.70710677
    %v3738 = vmul.f32 %v2737, 0.70710677
    %v3739 = vmul.f32 %v2739, 0.70710677
    %v3740 = vmul.f32 %v3010, 0.70710677
    %v3741 = vmul.f32 %v3012, 0.70710677
    %v3742 = vmul.f32 %v2195, 0.70710677
    %v3743 = vmul.f32 %v2197, 0.70710677
    %v3744 = vmul.f32 %v2468, 0.70710677
    %v3745 = vmul.f32 %v2470, 0.70710677
    %v3746 = vmul.f32 %v2741, 0.70710677
    %v3747 = vmul.f32 %v2743, 0.70710677
    %v3748 = vmul.f32 %v3014, 0.70710677
    %v3749 = vmul.f32 %v3016, 0.70710677
    %v3750 = vmul.f32 %v2201, 0.70710677
    %v3751 = vmul.f32 %v2203, 0.70710677
    %v3752 = vmul.f32 %v2474, 0.70710677
    %v3753 = vmul.f32 %v2476, 0.70710677
    %v3754 = vmul.f32 %v2747, 0.70710677
    %v3755 = vmul.f32 %v2749, 0.70710677
    %v3756 = vmul.f32 %v3020, 0.70710677
    %v3757 = vmul.f32 %v3022, 0.70710677
    %v3758 = vmul.f32 %v2205, 0.70710677
    %v3759 = vmul.f32 %v2207, 0.70710677
    %v3760 = vmul.f32 %v2478, 0.70710677
    %v3761 = vmul.f32 %v2480, 0.70710677
    %v3762 = vmul.f32 %v2751, 0.70710677
    %v3763 = vmul.f32 %v2753, 0.70710677
    %v3764 = vmul.f32 %v3024, 0.70710677
    %v3765 = vmul.f32 %v3026, 0.70710677
    %v3766 = vmul.f32 %v2211, 0.70710677
    %v3767 = vmul.f32 %v2213, 0.70710677
    %v3768 = vmul.f32 %v2484, 0.70710677
    %v3769 = vmul.f32 %v2486, 0.70710677
    %v3770 = vmul.f32 %v2757, 0.70710677
    %v3771 = vmul.f32 %v2759, 0.70710677
    %v3772 = vmul.f32 %v3030, 0.70710677
    %v3773 = vmul.f32 %v3032, 0.70710677
    %v3774 = vmul.f32 %v2215, 0.70710677
    %v3775 = vmul.f32 %v2217, 0.70710677
    %v3776 = vmul.f32 %v2488, 0.70710677
    %v3777 = vmul.f32 %v2490, 0.70710677
    %v3778 = vmul.f32 %v2761, 0.70710677
    %v3779 = vmul.f32 %v2763, 0.70710677
    %v3780 = vmul.f32 %v3034, 0.70710677
    %v3781 = vmul.f32 %v3036, 0.70710677
    %v3782 = vmul.f32 %v2221, 0.70710677
    %v3783 = vmul.f32 %v2223, 0.70710677
    %v3784 = vmul.f32 %v2494, 0.70710677
    %v3785 = vmul.f32 %v2496, 0.70710677
    %v3786 = vmul.f32 %v2767, 0.70710677
    %v3787 = vmul.f32 %v2769, 0.70710677
    %v3788 = vmul.f32 %v3040, 0.70710677
    %v3789 = vmul.f32 %v3042, 0.70710677
    %v3790 = vmul.f32 %v2225, 0.70710677
    %v3791 = vmul.f32 %v2227, 0.70710677
    %v3792 = vmul.f32 %v2498, 0.70710677
    %v3793 = vmul.f32 %v2500, 0.70710677
    %v3794 = vmul.f32 %v2771, 0.70710677
    %v3795 = vmul.f32 %v2773, 0.70710677
    %v3796 = vmul.f32 %v3044, 0.70710677
    %v3797 = vmul.f32 %v3046, 0.70710677
    %v3798 = vmul.f32 %v2231, 0.70710677
    %v3799 = vmul.f32 %v2233, 0.70710677
    %v3800 = vmul.f32 %v2504, 0.70710677
    %v3801 = vmul.f32 %v2506, 0.70710677
    %v3802 = vmul.f32 %v2777, 0.70710677
    %v3803 = vmul.f32 %v2779, 0.70710677
    %v3804 = vmul.f32 %v3050, 0.70710677
    %v3805 = vmul.f32 %v3052, 0.70710677
    %v3806 = vmul.f32 %v2235, 0.70710677
    %v3807 = vmul.f32 %v2237, 0.70710677
    %v3808 = vmul.f32 %v2508, 0.70710677
    %v3809 = vmul.f32 %v2510, 0.70710677
    %v3810 = vmul.f32 %v2781, 0.70710677
    %v3811 = vmul.f32 %v2783, 0.70710677
    %v3812 = vmul.f32 %v3054, 0.70710677
    %v3813 = vmul.f32 %v3056, 0.70710677
    %v3814 = vmul.f32 %v2241, 0.70710677
    %v3815 = vmul.f32 %v2243, 0.70710677
    %v3816 = vmul.f32 %v2514, 0.70710677
    %v3817 = vmul.f32 %v2516, 0.70710677
    %v3818 = vmul.f32 %v2787, 0.70710677
    %v3819 = vmul.f32 %v2789, 0.70710677
    %v3820 = vmul.f32 %v3060, 0.70710677
    %v3821 = vmul.f32 %v3062, 0.70710677
    %v3822 = vmul.f32 %v2245, 0.70710677
    %v3823 = vmul.f32 %v2247, 0.70710677
    %v3824 = vmul.f32 %v2518, 0.70710677
    %v3825 = vmul.f32 %v2520, 0.70710677
    %v3826 = vmul.f32 %v2791, 0.70710677
    %v3827 = vmul.f32 %v2793, 0.70710677
    %v3828 = vmul.f32 %v3064, 0.70710677
    %v3829 = vmul.f32 %v3066, 0.70710677
    %v3830 = vmul.f32 %v2251, 0.70710677
    %v3831 = vmul.f32 %v2253, 0.70710677
    %v3832 = vmul.f32 %v2524, 0.70710677
    %v3833 = vmul.f32 %v2526, 0.70710677
    %v3834 = vmul.f32 %v2797, 0.70710677
    %v3835 = vmul.f32 %v2799, 0.70710677
    %v3836 = vmul.f32 %v3070, 0.70710677
    %v3837 = vmul.f32 %v3072, 0.70710677
    %v3838 = vmul.f32 %v2255, 0.70710677
    %v3839 = vmul.f32 %v2257, 0.70710677
    %v3840 = vmul.f32 %v2528, 0.70710677
    %v3841 = vmul.f32 %v2530, 0.70710677
    %v3842 = vmul.f32 %v2801, 0.70710677
    %v3843 = vmul.f32 %v2803, 0.70710677
    %v3844 = vmul.f32 %v3074, 0.70710677
    %v3845 = vmul.f32 %v3076, 0.70710677
    %v3846 = verf.f32.pop %v3462
    %v3847 = verf.f32.pop %v3463
    %v3848 = verf.f32.pop %v3464
    %v3849 = verf.f32.pop %v3465
    %v3850 = verf.f32.pop %v3466
    %v3851 = verf.f32.pop %v3467
    %v3852 = verf.f32.pop %v3468
    %v3853 = verf.f32.pop %v3469
    %v3854 = verf.f32.pop %v3470
    %v3855 = verf.f32.pop %v3471
    %v3856 = verf.f32.pop %v3472
    %v3857 = verf.f32.pop %v3473
    %v3858 = verf.f32.pop %v3474
    %v3859 = verf.f32.pop %v3475
    %v3860 = verf.f32.pop %v3476
    %v3861 = verf.f32.pop %v3477
    %v3862 = verf.f32.pop %v3478
    %v3863 = verf.f32.pop %v3479
    %v3864 = verf.f32.pop %v3480
    %v3865 = verf.f32.pop %v3481
    %v3866 = verf.f32.pop %v3482
    %v3867 = verf.f32.pop %v3483
    %v3868 = verf.f32.pop %v3484
    %v3869 = verf.f32.pop %v3485
    %v3870 = verf.f32.pop %v3486
    %v3871 = verf.f32.pop %v3487
    %v3872 = verf.f32.pop %v3488
    %v3873 = verf.f32.pop %v3489
    %v3874 = verf.f32.pop %v3490
    %v3875 = verf.f32.pop %v3491
    %v3876 = verf.f32.pop %v3492
    %v3877 = verf.f32.pop %v3493
    %v3878 = verf.f32.pop %v3494
    %v3879 = verf.f32.pop %v3495
    %v3880 = verf.f32.pop %v3496
    %v3881 = verf.f32.pop %v3497
    %v3882 = verf.f32.pop %v3498
    %v3883 = verf.f32.pop %v3499
    %v3884 = verf.f32.pop %v3500
    %v3885 = verf.f32.pop %v3501
    %v3886 = verf.f32.pop %v3502
    %v3887 = verf.f32.pop %v3503
    %v3888 = verf.f32.pop %v3504
    %v3889 = verf.f32.pop %v3505
    %v3890 = verf.f32.pop %v3506
    %v3891 = verf.f32.pop %v3507
    %v3892 = verf.f32.pop %v3508
    %v3893 = verf.f32.pop %v3509
    %v3894 = verf.f32.pop %v3510
    %v3895 = verf.f32.pop %v3511
    %v3896 = verf.f32.pop %v3512
    %v3897 = verf.f32.pop %v3513
    %v3898 = verf.f32.pop %v3514
    %v3899 = verf.f32.pop %v3515
    %v3900 = verf.f32.pop %v3516
    %v3901 = verf.f32.pop %v3517
    %v3902 = verf.f32.pop %v3518
    %v3903 = verf.f32.pop %v3519
    %v3904 = verf.f32.pop %v3520
    %v3905 = verf.f32.pop %v3521
    %v3906 = verf.f32.pop %v3522
    %v3907 = verf.f32.pop %v3523
    %v3908 = verf.f32.pop %v3524
    %v3909 = verf.f32.pop %v3525
    %v3910 = verf.f32.pop %v3526
    %v3911 = verf.f32.pop %v3527
    %v3912 = verf.f32.pop %v3528
    %v3913 = verf.f32.pop %v3529
    %v3914 = verf.f32.pop %v3530
    %v3915 = verf.f32.pop %v3531
    %v3916 = verf.f32.pop %v3532
    %v3917 = verf.f32.pop %v3533
    %v3918 = verf.f32.pop %v3534
    %v3919 = verf.f32.pop %v3535
    %v3920 = verf.f32.pop %v3536
    %v3921 = verf.f32.pop %v3537
    %v3922 = verf.f32.pop %v3538
    %v3923 = verf.f32.pop %v3539
    %v3924 = verf.f32.pop %v3540
    %v3925 = verf.f32.pop %v3541
    %v3926 = verf.f32.pop %v3542
    %v3927 = verf.f32.pop %v3543
    %v3928 = verf.f32.pop %v3544
    %v3929 = verf.f32.pop %v3545
    %v3930 = verf.f32.pop %v3546
    %v3931 = verf.f32.pop %v3547
    %v3932 = verf.f32.pop %v3548
    %v3933 = verf.f32.pop %v3549
    %v3934 = verf.f32.pop %v3550
    %v3935 = verf.f32.pop %v3551
    %v3936 = verf.f32.pop %v3552
    %v3937 = verf.f32.pop %v3553
    %v3938 = verf.f32.pop %v3554
    %v3939 = verf.f32.pop %v3555
    %v3940 = verf.f32.pop %v3556
    %v3941 = verf.f32.pop %v3557
    %v3942 = verf.f32.pop %v3558
    %v3943 = verf.f32.pop %v3559
    %v3944 = verf.f32.pop %v3560
    %v3945 = verf.f32.pop %v3561
    %v3946 = verf.f32.pop %v3562
    %v3947 = verf.f32.pop %v3563
    %v3948 = verf.f32.pop %v3564
    %v3949 = verf.f32.pop %v3565
    %v3950 = verf.f32.pop %v3566
    %v3951 = verf.f32.pop %v3567
    %v3952 = verf.f32.pop %v3568
    %v3953 = verf.f32.pop %v3569
    %v3954 = verf.f32.pop %v3570
    %v3955 = verf.f32.pop %v3571
    %v3956 = verf.f32.pop %v3572
    %v3957 = verf.f32.pop %v3573
    %v3958 = verf.f32.pop %v3574
    %v3959 = verf.f32.pop %v3575
    %v3960 = verf.f32.pop %v3576
    %v3961 = verf.f32.pop %v3577
    %v3962 = verf.f32.pop %v3578
    %v3963 = verf.f32.pop %v3579
    %v3964 = verf.f32.pop %v3580
    %v3965 = verf.f32.pop %v3581
    %v3966 = verf.f32.pop %v3582
    %v3967 = verf.f32.pop %v3583
    %v3968 = verf.f32.pop %v3584
    %v3969 = verf.f32.pop %v3585
    %v3970 = verf.f32.pop %v3586
    %v3971 = verf.f32.pop %v3587
    %v3972 = verf.f32.pop %v3588
    %v3973 = verf.f32.pop %v3589
    %v3974 = verf.f32.pop %v3590
    %v3975 = verf.f32.pop %v3591
    %v3976 = verf.f32.pop %v3592
    %v3977 = verf.f32.pop %v3593
    %v3978 = verf.f32.pop %v3594
    %v3979 = verf.f32.pop %v3595
    %v3980 = verf.f32.pop %v3596
    %v3981 = verf.f32.pop %v3597
    %v3982 = verf.f32.pop %v3598
    %v3983 = verf.f32.pop %v3599
    %v3984 = verf.f32.pop %v3600
    %v3985 = verf.f32.pop %v3601
    %v3986 = verf.f32.pop %v3602
    %v3987 = verf.f32.pop %v3603
    %v3988 = verf.f32.pop %v3604
    %v3989 = verf.f32.pop %v3605
    %v3990 = verf.f32.pop %v3606
    %v3991 = verf.f32.pop %v3607
    %v3992 = verf.f32.pop %v3608
    %v3993 = verf.f32.pop %v3609
    %v3994 = verf.f32.pop %v3610
    %v3995 = verf.f32.pop %v3611
    %v3996 = verf.f32.pop %v3612
    %v3997 = verf.f32.pop %v3613
    %v3998 = verf.f32.pop %v3614
    %v3999 = verf.f32.pop %v3615
    %v4000 = verf.f32.pop %v3616
    %v4001 = verf.f32.pop %v3617
    %v4002 = verf.f32.pop %v3618
    %v4003 = verf.f32.pop %v3619
    %v4004 = verf.f32.pop %v3620
    %v4005 = verf.f32.pop %v3621
    %v4006 = verf.f32.pop %v3622
    %v4007 = verf.f32.pop %v3623
    %v4008 = verf.f32.pop %v3624
    %v4009 = verf.f32.pop %v3625
    %v4010 = verf.f32.pop %v3626
    %v4011 = verf.f32.pop %v3627
    %v4012 = verf.f32.pop %v3628
    %v4013 = verf.f32.pop %v3629
    %v4014 = verf.f32.pop %v3630
    %v4015 = verf.f32.pop %v3631
    %v4016 = verf.f32.pop %v3632
    %v4017 = verf.f32.pop %v3633
    %v4018 = verf.f32.pop %v3634
    %v4019 = verf.f32.pop %v3635
    %v4020 = verf.f32.pop %v3636
    %v4021 = verf.f32.pop %v3637
    %v4022 = verf.f32.pop %v3638
    %v4023 = verf.f32.pop %v3639
    %v4024 = verf.f32.pop %v3640
    %v4025 = verf.f32.pop %v3641
    %v4026 = verf.f32.pop %v3642
    %v4027 = verf.f32.pop %v3643
    %v4028 = verf.f32.pop %v3644
    %v4029 = verf.f32.pop %v3645
    %v4030 = verf.f32.pop %v3646
    %v4031 = verf.f32.pop %v3647
    %v4032 = verf.f32.pop %v3648
    %v4033 = verf.f32.pop %v3649
    %v4034 = verf.f32.pop %v3650
    %v4035 = verf.f32.pop %v3651
    %v4036 = verf.f32.pop %v3652
    %v4037 = verf.f32.pop %v3653
    %v4038 = verf.f32.pop %v3654
    %v4039 = verf.f32.pop %v3655
    %v4040 = verf.f32.pop %v3656
    %v4041 = verf.f32.pop %v3657
    %v4042 = verf.f32.pop %v3658
    %v4043 = verf.f32.pop %v3659
    %v4044 = verf.f32.pop %v3660
    %v4045 = verf.f32.pop %v3661
    %v4046 = verf.f32.pop %v3662
    %v4047 = verf.f32.pop %v3663
    %v4048 = verf.f32.pop %v3664
    %v4049 = verf.f32.pop %v3665
    %v4050 = verf.f32.pop %v3666
    %v4051 = verf.f32.pop %v3667
    %v4052 = verf.f32.pop %v3668
    %v4053 = verf.f32.pop %v3669
    %v4054 = verf.f32.pop %v3670
    %v4055 = verf.f32.pop %v3671
    %v4056 = verf.f32.pop %v3672
    %v4057 = verf.f32.pop %v3673
    %v4058 = verf.f32.pop %v3674
    %v4059 = verf.f32.pop %v3675
    %v4060 = verf.f32.pop %v3676
    %v4061 = verf.f32.pop %v3677
    %v4062 = verf.f32.pop %v3678
    %v4063 = verf.f32.pop %v3679
    %v4064 = verf.f32.pop %v3680
    %v4065 = verf.f32.pop %v3681
    %v4066 = verf.f32.pop %v3682
    %v4067 = verf.f32.pop %v3683
    %v4068 = verf.f32.pop %v3684
    %v4069 = verf.f32.pop %v3685
    %v4070 = verf.f32.pop %v3686
    %v4071 = verf.f32.pop %v3687
    %v4072 = verf.f32.pop %v3688
    %v4073 = verf.f32.pop %v3689
    %v4074 = verf.f32.pop %v3690
    %v4075 = verf.f32.pop %v3691
    %v4076 = verf.f32.pop %v3692
    %v4077 = verf.f32.pop %v3693
    %v4078 = verf.f32.pop %v3694
    %v4079 = verf.f32.pop %v3695
    %v4080 = verf.f32.pop %v3696
    %v4081 = verf.f32.pop %v3697
    %v4082 = verf.f32.pop %v3698
    %v4083 = verf.f32.pop %v3699
    %v4084 = verf.f32.pop %v3700
    %v4085 = verf.f32.pop %v3701
    %v4086 = verf.f32.pop %v3702
    %v4087 = verf.f32.pop %v3703
    %v4088 = verf.f32.pop %v3704
    %v4089 = verf.f32.pop %v3705
    %v4090 = verf.f32.pop %v3706
    %v4091 = verf.f32.pop %v3707
    %v4092 = verf.f32.pop %v3708
    %v4093 = verf.f32.pop %v3709
    %v4094 = verf.f32.pop %v3710
    %v4095 = verf.f32.pop %v3711
    %v4096 = verf.f32.pop %v3712
    %v4097 = verf.f32.pop %v3713
    %v4098 = verf.f32.pop %v3714
    %v4099 = verf.f32.pop %v3715
    %v4100 = verf.f32.pop %v3716
    %v4101 = verf.f32.pop %v3717
    %v4102 = verf.f32.pop %v3718
    %v4103 = verf.f32.pop %v3719
    %v4104 = verf.f32.pop %v3720
    %v4105 = verf.f32.pop %v3721
    %v4106 = verf.f32.pop %v3722
    %v4107 = verf.f32.pop %v3723
    %v4108 = verf.f32.pop %v3724
    %v4109 = verf.f32.pop %v3725
    %v4110 = verf.f32.pop %v3726
    %v4111 = verf.f32.pop %v3727
    %v4112 = verf.f32.pop %v3728
    %v4113 = verf.f32.pop %v3729
    %v4114 = verf.f32.pop %v3730
    %v4115 = verf.f32.pop %v3731
    %v4116 = verf.f32.pop %v3732
    %v4117 = verf.f32.pop %v3733
    %v4118 = verf.f32.pop %v3734
    %v4119 = verf.f32.pop %v3735
    %v4120 = verf.f32.pop %v3736
    %v4121 = verf.f32.pop %v3737
    %v4122 = verf.f32.pop %v3738
    %v4123 = verf.f32.pop %v3739
    %v4124 = verf.f32.pop %v3740
    %v4125 = verf.f32.pop %v3741
    %v4126 = verf.f32.pop %v3742
    %v4127 = verf.f32.pop %v3743
    %v4128 = verf.f32.pop %v3744
    %v4129 = verf.f32.pop %v3745
    %v4130 = verf.f32.pop %v3746
    %v4131 = verf.f32.pop %v3747
    %v4132 = verf.f32.pop %v3748
    %v4133 = verf.f32.pop %v3749
    %v4134 = verf.f32.pop %v3750
    %v4135 = verf.f32.pop %v3751
    %v4136 = verf.f32.pop %v3752
    %v4137 = verf.f32.pop %v3753
    %v4138 = verf.f32.pop %v3754
    %v4139 = verf.f32.pop %v3755
    %v4140 = verf.f32.pop %v3756
    %v4141 = verf.f32.pop %v3757
    %v4142 = verf.f32.pop %v3758
    %v4143 = verf.f32.pop %v3759
    %v4144 = verf.f32.pop %v3760
    %v4145 = verf.f32.pop %v3761
    %v4146 = verf.f32.pop %v3762
    %v4147 = verf.f32.pop %v3763
    %v4148 = verf.f32.pop %v3764
    %v4149 = verf.f32.pop %v3765
    %v4150 = verf.f32.pop %v3766
    %v4151 = verf.f32.pop %v3767
    %v4152 = verf.f32.pop %v3768
    %v4153 = verf.f32.pop %v3769
    %v4154 = verf.f32.pop %v3770
    %v4155 = verf.f32.pop %v3771
    %v4156 = verf.f32.pop %v3772
    %v4157 = verf.f32.pop %v3773
    %v4158 = verf.f32.pop %v3774
    %v4159 = verf.f32.pop %v3775
    %v4160 = verf.f32.pop %v3776
    %v4161 = verf.f32.pop %v3777
    %v4162 = verf.f32.pop %v3778
    %v4163 = verf.f32.pop %v3779
    %v4164 = verf.f32.pop %v3780
    %v4165 = verf.f32.pop %v3781
    %v4166 = verf.f32.pop %v3782
    %v4167 = verf.f32.pop %v3783
    %v4168 = verf.f32.pop %v3784
    %v4169 = verf.f32.pop %v3785
    %v4170 = verf.f32.pop %v3786
    %v4171 = verf.f32.pop %v3787
    %v4172 = verf.f32.pop %v3788
    %v4173 = verf.f32.pop %v3789
    %v4174 = verf.f32.pop %v3790
    %v4175 = verf.f32.pop %v3791
    %v4176 = verf.f32.pop %v3792
    %v4177 = verf.f32.pop %v3793
    %v4178 = verf.f32.pop %v3794
    %v4179 = verf.f32.pop %v3795
    %v4180 = verf.f32.pop %v3796
    %v4181 = verf.f32.pop %v3797
    %v4182 = verf.f32.pop %v3798
    %v4183 = verf.f32.pop %v3799
    %v4184 = verf.f32.pop %v3800
    %v4185 = verf.f32.pop %v3801
    %v4186 = verf.f32.pop %v3802
    %v4187 = verf.f32.pop %v3803
    %v4188 = verf.f32.pop %v3804
    %v4189 = verf.f32.pop %v3805
    %v4190 = verf.f32.pop %v3806
    %v4191 = verf.f32.pop %v3807
    %v4192 = verf.f32.pop %v3808
    %v4193 = verf.f32.pop %v3809
    %v4194 = verf.f32.pop %v3810
    %v4195 = verf.f32.pop %v3811
    %v4196 = verf.f32.pop %v3812
    %v4197 = verf.f32.pop %v3813
    %v4198 = verf.f32.pop %v3814
    %v4199 = verf.f32.pop %v3815
    %v4200 = verf.f32.pop %v3816
    %v4201 = verf.f32.pop %v3817
    %v4202 = verf.f32.pop %v3818
    %v4203 = verf.f32.pop %v3819
    %v4204 = verf.f32.pop %v3820
    %v4205 = verf.f32.pop %v3821
    %v4206 = verf.f32.pop %v3822
    %v4207 = verf.f32.pop %v3823
    %v4208 = verf.f32.pop %v3824
    %v4209 = verf.f32.pop %v3825
    %v4210 = verf.f32.pop %v3826
    %v4211 = verf.f32.pop %v3827
    %v4212 = verf.f32.pop %v3828
    %v4213 = verf.f32.pop %v3829
    %v4214 = verf.f32.pop %v3830
    %v4215 = verf.f32.pop %v3831
    %v4216 = verf.f32.pop %v3832
    %v4217 = verf.f32.pop %v3833
    %v4218 = verf.f32.pop %v3834
    %v4219 = verf.f32.pop %v3835
    %v4220 = verf.f32.pop %v3836
    %v4221 = verf.f32.pop %v3837
    %v4222 = verf.f32.pop %v3838
    %v4223 = verf.f32.pop %v3839
    %v4224 = verf.f32.pop %v3840
    %v4225 = verf.f32.pop %v3841
    %v4226 = verf.f32.pop %v3842
    %v4227 = verf.f32.pop %v3843
    %v4228 = verf.f32.pop %v3844
    %v4229 = verf.f32.pop %v3845
    %v4230 = vadd.f32 %v3846, 1.0
    %v4231 = vadd.f32 %v3847, 1.0
    %v4232 = vadd.f32 %v3848, 1.0
    %v4233 = vadd.f32 %v3849, 1.0
    %v4234 = vadd.f32 %v3850, 1.0
    %v4235 = vadd.f32 %v3851, 1.0
    %v4236 = vadd.f32 %v3852, 1.0
    %v4237 = vadd.f32 %v3853, 1.0
    %v4238 = vadd.f32 %v3854, 1.0
    %v4239 = vadd.f32 %v3855, 1.0
    %v4240 = vadd.f32 %v3856, 1.0
    %v4241 = vadd.f32 %v3857, 1.0
    %v4242 = vadd.f32 %v3858, 1.0
    %v4243 = vadd.f32 %v3859, 1.0
    %v4244 = vadd.f32 %v3860, 1.0
    %v4245 = vadd.f32 %v3861, 1.0
    %v4246 = vadd.f32 %v3862, 1.0
    %v4247 = vadd.f32 %v3863, 1.0
    %v4248 = vadd.f32 %v3864, 1.0
    %v4249 = vadd.f32 %v3865, 1.0
    %v4250 = vadd.f32 %v3866, 1.0
    %v4251 = vadd.f32 %v3867, 1.0
    %v4252 = vadd.f32 %v3868, 1.0
    %v4253 = vadd.f32 %v3869, 1.0
    %v4254 = vadd.f32 %v3870, 1.0
    %v4255 = vadd.f32 %v3871, 1.0
    %v4256 = vadd.f32 %v3872, 1.0
    %v4257 = vadd.f32 %v3873, 1.0
    %v4258 = vadd.f32 %v3874, 1.0
    %v4259 = vadd.f32 %v3875, 1.0
    %v4260 = vadd.f32 %v3876, 1.0
    %v4261 = vadd.f32 %v3877, 1.0
    %v4262 = vadd.f32 %v3878, 1.0
    %v4263 = vadd.f32 %v3879, 1.0
    %v4264 = vadd.f32 %v3880, 1.0
    %v4265 = vadd.f32 %v3881, 1.0
    %v4266 = vadd.f32 %v3882, 1.0
    %v4267 = vadd.f32 %v3883, 1.0
    %v4268 = vadd.f32 %v3884, 1.0
    %v4269 = vadd.f32 %v3885, 1.0
    %v4270 = vadd.f32 %v3886, 1.0
    %v4271 = vadd.f32 %v3887, 1.0
    %v4272 = vadd.f32 %v3888, 1.0
    %v4273 = vadd.f32 %v3889, 1.0
    %v4274 = vadd.f32 %v3890, 1.0
    %v4275 = vadd.f32 %v3891, 1.0
    %v4276 = vadd.f32 %v3892, 1.0
    %v4277 = vadd.f32 %v3893, 1.0
    %v4278 = vadd.f32 %v3894, 1.0
    %v4279 = vadd.f32 %v3895, 1.0
    %v4280 = vadd.f32 %v3896, 1.0
    %v4281 = vadd.f32 %v3897, 1.0
    %v4282 = vadd.f32 %v3898, 1.0
    %v4283 = vadd.f32 %v3899, 1.0
    %v4284 = vadd.f32 %v3900, 1.0
    %v4285 = vadd.f32 %v3901, 1.0
    %v4286 = vadd.f32 %v3902, 1.0
    %v4287 = vadd.f32 %v3903, 1.0
    %v4288 = vadd.f32 %v3904, 1.0
    %v4289 = vadd.f32 %v3905, 1.0
    %v4290 = vadd.f32 %v3906, 1.0
    %v4291 = vadd.f32 %v3907, 1.0
    %v4292 = vadd.f32 %v3908, 1.0
    %v4293 = vadd.f32 %v3909, 1.0
    %v4294 = vadd.f32 %v3910, 1.0
    %v4295 = vadd.f32 %v3911, 1.0
    %v4296 = vadd.f32 %v3912, 1.0
    %v4297 = vadd.f32 %v3913, 1.0
    %v4298 = vadd.f32 %v3914, 1.0
    %v4299 = vadd.f32 %v3915, 1.0
    %v4300 = vadd.f32 %v3916, 1.0
    %v4301 = vadd.f32 %v3917, 1.0
    %v4302 = vadd.f32 %v3918, 1.0
    %v4303 = vadd.f32 %v3919, 1.0
    %v4304 = vadd.f32 %v3920, 1.0
    %v4305 = vadd.f32 %v3921, 1.0
    %v4306 = vadd.f32 %v3922, 1.0
    %v4307 = vadd.f32 %v3923, 1.0
    %v4308 = vadd.f32 %v3924, 1.0
    %v4309 = vadd.f32 %v3925, 1.0
    %v4310 = vadd.f32 %v3926, 1.0
    %v4311 = vadd.f32 %v3927, 1.0
    %v4312 = vadd.f32 %v3928, 1.0
    %v4313 = vadd.f32 %v3929, 1.0
    %v4314 = vadd.f32 %v3930, 1.0
    %v4315 = vadd.f32 %v3931, 1.0
    %v4316 = vadd.f32 %v3932, 1.0
    %v4317 = vadd.f32 %v3933, 1.0
    %v4318 = vadd.f32 %v3934, 1.0
    %v4319 = vadd.f32 %v3935, 1.0
    %v4320 = vadd.f32 %v3936, 1.0
    %v4321 = vadd.f32 %v3937, 1.0
    %v4322 = vadd.f32 %v3938, 1.0
    %v4323 = vadd.f32 %v3939, 1.0
    %v4324 = vadd.f32 %v3940, 1.0
    %v4325 = vadd.f32 %v3941, 1.0
    %v4326 = vadd.f32 %v3942, 1.0
    %v4327 = vadd.f32 %v3943, 1.0
    %v4328 = vadd.f32 %v3944, 1.0
    %v4329 = vadd.f32 %v3945, 1.0
    %v4330 = vadd.f32 %v3946, 1.0
    %v4331 = vadd.f32 %v3947, 1.0
    %v4332 = vadd.f32 %v3948, 1.0
    %v4333 = vadd.f32 %v3949, 1.0
    %v4334 = vadd.f32 %v3950, 1.0
    %v4335 = vadd.f32 %v3951, 1.0
    %v4336 = vadd.f32 %v3952, 1.0
    %v4337 = vadd.f32 %v3953, 1.0
    %v4338 = vadd.f32 %v3954, 1.0
    %v4339 = vadd.f32 %v3955, 1.0
    %v4340 = vadd.f32 %v3956, 1.0
    %v4341 = vadd.f32 %v3957, 1.0
    %v4342 = vadd.f32 %v3958, 1.0
    %v4343 = vadd.f32 %v3959, 1.0
    %v4344 = vadd.f32 %v3960, 1.0
    %v4345 = vadd.f32 %v3961, 1.0
    %v4346 = vadd.f32 %v3962, 1.0
    %v4347 = vadd.f32 %v3963, 1.0
    %v4348 = vadd.f32 %v3964, 1.0
    %v4349 = vadd.f32 %v3965, 1.0
    %v4350 = vadd.f32 %v3966, 1.0
    %v4351 = vadd.f32 %v3967, 1.0
    %v4352 = vadd.f32 %v3968, 1.0
    %v4353 = vadd.f32 %v3969, 1.0
    %v4354 = vadd.f32 %v3970, 1.0
    %v4355 = vadd.f32 %v3971, 1.0
    %v4356 = vadd.f32 %v3972, 1.0
    %v4357 = vadd.f32 %v3973, 1.0
    %v4358 = vadd.f32 %v3974, 1.0
    %v4359 = vadd.f32 %v3975, 1.0
    %v4360 = vadd.f32 %v3976, 1.0
    %v4361 = vadd.f32 %v3977, 1.0
    %v4362 = vadd.f32 %v3978, 1.0
    %v4363 = vadd.f32 %v3979, 1.0
    %v4364 = vadd.f32 %v3980, 1.0
    %v4365 = vadd.f32 %v3981, 1.0
    %v4366 = vadd.f32 %v3982, 1.0
    %v4367 = vadd.f32 %v3983, 1.0
    %v4368 = vadd.f32 %v3984, 1.0
    %v4369 = vadd.f32 %v3985, 1.0
    %v4370 = vadd.f32 %v3986, 1.0
    %v4371 = vadd.f32 %v3987, 1.0
    %v4372 = vadd.f32 %v3988, 1.0
    %v4373 = vadd.f32 %v3989, 1.0
    %v4374 = vadd.f32 %v3990, 1.0
    %v4375 = vadd.f32 %v3991, 1.0
    %v4376 = vadd.f32 %v3992, 1.0
    %v4377 = vadd.f32 %v3993, 1.0
    %v4378 = vadd.f32 %v3994, 1.0
    %v4379 = vadd.f32 %v3995, 1.0
    %v4380 = vadd.f32 %v3996, 1.0
    %v4381 = vadd.f32 %v3997, 1.0
    %v4382 = vadd.f32 %v3998, 1.0
    %v4383 = vadd.f32 %v3999, 1.0
    %v4384 = vadd.f32 %v4000, 1.0
    %v4385 = vadd.f32 %v4001, 1.0
    %v4386 = vadd.f32 %v4002, 1.0
    %v4387 = vadd.f32 %v4003, 1.0
    %v4388 = vadd.f32 %v4004, 1.0
    %v4389 = vadd.f32 %v4005, 1.0
    %v4390 = vadd.f32 %v4006, 1.0
    %v4391 = vadd.f32 %v4007, 1.0
    %v4392 = vadd.f32 %v4008, 1.0
    %v4393 = vadd.f32 %v4009, 1.0
    %v4394 = vadd.f32 %v4010, 1.0
    %v4395 = vadd.f32 %v4011, 1.0
    %v4396 = vadd.f32 %v4012, 1.0
    %v4397 = vadd.f32 %v4013, 1.0
    %v4398 = vadd.f32 %v4014, 1.0
    %v4399 = vadd.f32 %v4015, 1.0
    %v4400 = vadd.f32 %v4016, 1.0
    %v4401 = vadd.f32 %v4017, 1.0
    %v4402 = vadd.f32 %v4018, 1.0
    %v4403 = vadd.f32 %v4019, 1.0
    %v4404 = vadd.f32 %v4020, 1.0
    %v4405 = vadd.f32 %v4021, 1.0
    %v4406 = vadd.f32 %v4022, 1.0
    %v4407 = vadd.f32 %v4023, 1.0
    %v4408 = vadd.f32 %v4024, 1.0
    %v4409 = vadd.f32 %v4025, 1.0
    %v4410 = vadd.f32 %v4026, 1.0
    %v4411 = vadd.f32 %v4027, 1.0
    %v4412 = vadd.f32 %v4028, 1.0
    %v4413 = vadd.f32 %v4029, 1.0
    %v4414 = vadd.f32 %v4030, 1.0
    %v4415 = vadd.f32 %v4031, 1.0
    %v4416 = vadd.f32 %v4032, 1.0
    %v4417 = vadd.f32 %v4033, 1.0
    %v4418 = vadd.f32 %v4034, 1.0
    %v4419 = vadd.f32 %v4035, 1.0
    %v4420 = vadd.f32 %v4036, 1.0
    %v4421 = vadd.f32 %v4037, 1.0
    %v4422 = vadd.f32 %v4038, 1.0
    %v4423 = vadd.f32 %v4039, 1.0
    %v4424 = vadd.f32 %v4040, 1.0
    %v4425 = vadd.f32 %v4041, 1.0
    %v4426 = vadd.f32 %v4042, 1.0
    %v4427 = vadd.f32 %v4043, 1.0
    %v4428 = vadd.f32 %v4044, 1.0
    %v4429 = vadd.f32 %v4045, 1.0
    %v4430 = vadd.f32 %v4046, 1.0
    %v4431 = vadd.f32 %v4047, 1.0
    %v4432 = vadd.f32 %v4048, 1.0
    %v4433 = vadd.f32 %v4049, 1.0
    %v4434 = vadd.f32 %v4050, 1.0
    %v4435 = vadd.f32 %v4051, 1.0
    %v4436 = vadd.f32 %v4052, 1.0
    %v4437 = vadd.f32 %v4053, 1.0
    %v4438 = vadd.f32 %v4054, 1.0
    %v4439 = vadd.f32 %v4055, 1.0
    %v4440 = vadd.f32 %v4056, 1.0
    %v4441 = vadd.f32 %v4057, 1.0
    %v4442 = vadd.f32 %v4058, 1.0
    %v4443 = vadd.f32 %v4059, 1.0
    %v4444 = vadd.f32 %v4060, 1.0
    %v4445 = vadd.f32 %v4061, 1.0
    %v4446 = vadd.f32 %v4062, 1.0
    %v4447 = vadd.f32 %v4063, 1.0
    %v4448 = vadd.f32 %v4064, 1.0
    %v4449 = vadd.f32 %v4065, 1.0
    %v4450 = vadd.f32 %v4066, 1.0
    %v4451 = vadd.f32 %v4067, 1.0
    %v4452 = vadd.f32 %v4068, 1.0
    %v4453 = vadd.f32 %v4069, 1.0
    %v4454 = vadd.f32 %v4070, 1.0
    %v4455 = vadd.f32 %v4071, 1.0
    %v4456 = vadd.f32 %v4072, 1.0
    %v4457 = vadd.f32 %v4073, 1.0
    %v4458 = vadd.f32 %v4074, 1.0
    %v4459 = vadd.f32 %v4075, 1.0
    %v4460 = vadd.f32 %v4076, 1.0
    %v4461 = vadd.f32 %v4077, 1.0
    %v4462 = vadd.f32 %v4078, 1.0
    %v4463 = vadd.f32 %v4079, 1.0
    %v4464 = vadd.f32 %v4080, 1.0
    %v4465 = vadd.f32 %v4081, 1.0
    %v4466 = vadd.f32 %v4082, 1.0
    %v4467 = vadd.f32 %v4083, 1.0
    %v4468 = vadd.f32 %v4084, 1.0
    %v4469 = vadd.f32 %v4085, 1.0
    %v4470 = vadd.f32 %v4086, 1.0
    %v4471 = vadd.f32 %v4087, 1.0
    %v4472 = vadd.f32 %v4088, 1.0
    %v4473 = vadd.f32 %v4089, 1.0
    %v4474 = vadd.f32 %v4090, 1.0
    %v4475 = vadd.f32 %v4091, 1.0
    %v4476 = vadd.f32 %v4092, 1.0
    %v4477 = vadd.f32 %v4093, 1.0
    %v4478 = vadd.f32 %v4094, 1.0
    %v4479 = vadd.f32 %v4095, 1.0
    %v4480 = vadd.f32 %v4096, 1.0
    %v4481 = vadd.f32 %v4097, 1.0
    %v4482 = vadd.f32 %v4098, 1.0
    %v4483 = vadd.f32 %v4099, 1.0
    %v4484 = vadd.f32 %v4100, 1.0
    %v4485 = vadd.f32 %v4101, 1.0
    %v4486 = vadd.f32 %v4102, 1.0
    %v4487 = vadd.f32 %v4103, 1.0
    %v4488 = vadd.f32 %v4104, 1.0
    %v4489 = vadd.f32 %v4105, 1.0
    %v4490 = vadd.f32 %v4106, 1.0
    %v4491 = vadd.f32 %v4107, 1.0
    %v4492 = vadd.f32 %v4108, 1.0
    %v4493 = vadd.f32 %v4109, 1.0
    %v4494 = vadd.f32 %v4110, 1.0
    %v4495 = vadd.f32 %v4111, 1.0
    %v4496 = vadd.f32 %v4112, 1.0
    %v4497 = vadd.f32 %v4113, 1.0
    %v4498 = vadd.f32 %v4114, 1.0
    %v4499 = vadd.f32 %v4115, 1.0
    %v4500 = vadd.f32 %v4116, 1.0
    %v4501 = vadd.f32 %v4117, 1.0
    %v4502 = vadd.f32 %v4118, 1.0
    %v4503 = vadd.f32 %v4119, 1.0
    %v4504 = vadd.f32 %v4120, 1.0
    %v4505 = vadd.f32 %v4121, 1.0
    %v4506 = vadd.f32 %v4122, 1.0
    %v4507 = vadd.f32 %v4123, 1.0
    %v4508 = vadd.f32 %v4124, 1.0
    %v4509 = vadd.f32 %v4125, 1.0
    %v4510 = vadd.f32 %v4126, 1.0
    %v4511 = vadd.f32 %v4127, 1.0
    %v4512 = vadd.f32 %v4128, 1.0
    %v4513 = vadd.f32 %v4129, 1.0
    %v4514 = vadd.f32 %v4130, 1.0
    %v4515 = vadd.f32 %v4131, 1.0
    %v4516 = vadd.f32 %v4132, 1.0
    %v4517 = vadd.f32 %v4133, 1.0
    %v4518 = vadd.f32 %v4134, 1.0
    %v4519 = vadd.f32 %v4135, 1.0
    %v4520 = vadd.f32 %v4136, 1.0
    %v4521 = vadd.f32 %v4137, 1.0
    %v4522 = vadd.f32 %v4138, 1.0
    %v4523 = vadd.f32 %v4139, 1.0
    %v4524 = vadd.f32 %v4140, 1.0
    %v4525 = vadd.f32 %v4141, 1.0
    %v4526 = vadd.f32 %v4142, 1.0
    %v4527 = vadd.f32 %v4143, 1.0
    %v4528 = vadd.f32 %v4144, 1.0
    %v4529 = vadd.f32 %v4145, 1.0
    %v4530 = vadd.f32 %v4146, 1.0
    %v4531 = vadd.f32 %v4147, 1.0
    %v4532 = vadd.f32 %v4148, 1.0
    %v4533 = vadd.f32 %v4149, 1.0
    %v4534 = vadd.f32 %v4150, 1.0
    %v4535 = vadd.f32 %v4151, 1.0
    %v4536 = vadd.f32 %v4152, 1.0
    %v4537 = vadd.f32 %v4153, 1.0
    %v4538 = vadd.f32 %v4154, 1.0
    %v4539 = vadd.f32 %v4155, 1.0
    %v4540 = vadd.f32 %v4156, 1.0
    %v4541 = vadd.f32 %v4157, 1.0
    %v4542 = vadd.f32 %v4158, 1.0
    %v4543 = vadd.f32 %v4159, 1.0
    %v4544 = vadd.f32 %v4160, 1.0
    %v4545 = vadd.f32 %v4161, 1.0
    %v4546 = vadd.f32 %v4162, 1.0
    %v4547 = vadd.f32 %v4163, 1.0
    %v4548 = vadd.f32 %v4164, 1.0
    %v4549 = vadd.f32 %v4165, 1.0
    %v4550 = vadd.f32 %v4166, 1.0
    %v4551 = vadd.f32 %v4167, 1.0
    %v4552 = vadd.f32 %v4168, 1.0
    %v4553 = vadd.f32 %v4169, 1.0
    %v4554 = vadd.f32 %v4170, 1.0
    %v4555 = vadd.f32 %v4171, 1.0
    %v4556 = vadd.f32 %v4172, 1.0
    %v4557 = vadd.f32 %v4173, 1.0
    %v4558 = vadd.f32 %v4174, 1.0
    %v4559 = vadd.f32 %v4175, 1.0
    %v4560 = vadd.f32 %v4176, 1.0
    %v4561 = vadd.f32 %v4177, 1.0
    %v4562 = vadd.f32 %v4178, 1.0
    %v4563 = vadd.f32 %v4179, 1.0
    %v4564 = vadd.f32 %v4180, 1.0
    %v4565 = vadd.f32 %v4181, 1.0
    %v4566 = vadd.f32 %v4182, 1.0
    %v4567 = vadd.f32 %v4183, 1.0
    %v4568 = vadd.f32 %v4184, 1.0
    %v4569 = vadd.f32 %v4185, 1.0
    %v4570 = vadd.f32 %v4186, 1.0
    %v4571 = vadd.f32 %v4187, 1.0
    %v4572 = vadd.f32 %v4188, 1.0
    %v4573 = vadd.f32 %v4189, 1.0
    %v4574 = vadd.f32 %v4190, 1.0
    %v4575 = vadd.f32 %v4191, 1.0
    %v4576 = vadd.f32 %v4192, 1.0
    %v4577 = vadd.f32 %v4193, 1.0
    %v4578 = vadd.f32 %v4194, 1.0
    %v4579 = vadd.f32 %v4195, 1.0
    %v4580 = vadd.f32 %v4196, 1.0
    %v4581 = vadd.f32 %v4197, 1.0
    %v4582 = vadd.f32 %v4198, 1.0
    %v4583 = vadd.f32 %v4199, 1.0
    %v4584 = vadd.f32 %v4200, 1.0
    %v4585 = vadd.f32 %v4201, 1.0
    %v4586 = vadd.f32 %v4202, 1.0
    %v4587 = vadd.f32 %v4203, 1.0
    %v4588 = vadd.f32 %v4204, 1.0
    %v4589 = vadd.f32 %v4205, 1.0
    %v4590 = vadd.f32 %v4206, 1.0
    %v4591 = vadd.f32 %v4207, 1.0
    %v4592 = vadd.f32 %v4208, 1.0
    %v4593 = vadd.f32 %v4209, 1.0
    %v4594 = vadd.f32 %v4210, 1.0
    %v4595 = vadd.f32 %v4211, 1.0
    %v4596 = vadd.f32 %v4212, 1.0
    %v4597 = vadd.f32 %v4213, 1.0
    %v4598 = vadd.f32 %v4214, 1.0
    %v4599 = vadd.f32 %v4215, 1.0
    %v4600 = vadd.f32 %v4216, 1.0
    %v4601 = vadd.f32 %v4217, 1.0
    %v4602 = vadd.f32 %v4218, 1.0
    %v4603 = vadd.f32 %v4219, 1.0
    %v4604 = vadd.f32 %v4220, 1.0
    %v4605 = vadd.f32 %v4221, 1.0
    %v4606 = vadd.f32 %v4222, 1.0
    %v4607 = vadd.f32 %v4223, 1.0
    %v4608 = vadd.f32 %v4224, 1.0
    %v4609 = vadd.f32 %v4225, 1.0
    %v4610 = vadd.f32 %v4226, 1.0
    %v4611 = vadd.f32 %v4227, 1.0
    %v4612 = vadd.f32 %v4228, 1.0
    %v4613 = vadd.f32 %v4229, 1.0
    %v4614 = vmul.f32 %v3078, %v4230
    %v4615 = vmul.f32 %v3079, %v4231
    %v4616 = vmul.f32 %v3080, %v4232
    %v4617 = vmul.f32 %v3081, %v4233
    %v4618 = vmul.f32 %v3082, %v4234
    %v4619 = vmul.f32 %v3083, %v4235
    %v4620 = vmul.f32 %v3084, %v4236
    %v4621 = vmul.f32 %v3085, %v4237
    %v4622 = vmul.f32 %v3086, %v4238
    %v4623 = vmul.f32 %v3087, %v4239
    %v4624 = vmul.f32 %v3088, %v4240
    %v4625 = vmul.f32 %v3089, %v4241
    %v4626 = vmul.f32 %v3090, %v4242
    %v4627 = vmul.f32 %v3091, %v4243
    %v4628 = vmul.f32 %v3092, %v4244
    %v4629 = vmul.f32 %v3093, %v4245
    %v4630 = vmul.f32 %v3094, %v4246
    %v4631 = vmul.f32 %v3095, %v4247
    %v4632 = vmul.f32 %v3096, %v4248
    %v4633 = vmul.f32 %v3097, %v4249
    %v4634 = vmul.f32 %v3098, %v4250
    %v4635 = vmul.f32 %v3099, %v4251
    %v4636 = vmul.f32 %v3100, %v4252
    %v4637 = vmul.f32 %v3101, %v4253
    %v4638 = vmul.f32 %v3102, %v4254
    %v4639 = vmul.f32 %v3103, %v4255
    %v4640 = vmul.f32 %v3104, %v4256
    %v4641 = vmul.f32 %v3105, %v4257
    %v4642 = vmul.f32 %v3106, %v4258
    %v4643 = vmul.f32 %v3107, %v4259
    %v4644 = vmul.f32 %v3108, %v4260
    %v4645 = vmul.f32 %v3109, %v4261
    %v4646 = vmul.f32 %v3110, %v4262
    %v4647 = vmul.f32 %v3111, %v4263
    %v4648 = vmul.f32 %v3112, %v4264
    %v4649 = vmul.f32 %v3113, %v4265
    %v4650 = vmul.f32 %v3114, %v4266
    %v4651 = vmul.f32 %v3115, %v4267
    %v4652 = vmul.f32 %v3116, %v4268
    %v4653 = vmul.f32 %v3117, %v4269
    %v4654 = vmul.f32 %v3118, %v4270
    %v4655 = vmul.f32 %v3119, %v4271
    %v4656 = vmul.f32 %v3120, %v4272
    %v4657 = vmul.f32 %v3121, %v4273
    %v4658 = vmul.f32 %v3122, %v4274
    %v4659 = vmul.f32 %v3123, %v4275
    %v4660 = vmul.f32 %v3124, %v4276
    %v4661 = vmul.f32 %v3125, %v4277
    %v4662 = vmul.f32 %v3126, %v4278
    %v4663 = vmul.f32 %v3127, %v4279
    %v4664 = vmul.f32 %v3128, %v4280
    %v4665 = vmul.f32 %v3129, %v4281
    %v4666 = vmul.f32 %v3130, %v4282
    %v4667 = vmul.f32 %v3131, %v4283
    %v4668 = vmul.f32 %v3132, %v4284
    %v4669 = vmul.f32 %v3133, %v4285
    %v4670 = vmul.f32 %v3134, %v4286
    %v4671 = vmul.f32 %v3135, %v4287
    %v4672 = vmul.f32 %v3136, %v4288
    %v4673 = vmul.f32 %v3137, %v4289
    %v4674 = vmul.f32 %v3138, %v4290
    %v4675 = vmul.f32 %v3139, %v4291
    %v4676 = vmul.f32 %v3140, %v4292
    %v4677 = vmul.f32 %v3141, %v4293
    %v4678 = vmul.f32 %v3142, %v4294
    %v4679 = vmul.f32 %v3143, %v4295
    %v4680 = vmul.f32 %v3144, %v4296
    %v4681 = vmul.f32 %v3145, %v4297
    %v4682 = vmul.f32 %v3146, %v4298
    %v4683 = vmul.f32 %v3147, %v4299
    %v4684 = vmul.f32 %v3148, %v4300
    %v4685 = vmul.f32 %v3149, %v4301
    %v4686 = vmul.f32 %v3150, %v4302
    %v4687 = vmul.f32 %v3151, %v4303
    %v4688 = vmul.f32 %v3152, %v4304
    %v4689 = vmul.f32 %v3153, %v4305
    %v4690 = vmul.f32 %v3154, %v4306
    %v4691 = vmul.f32 %v3155, %v4307
    %v4692 = vmul.f32 %v3156, %v4308
    %v4693 = vmul.f32 %v3157, %v4309
    %v4694 = vmul.f32 %v3158, %v4310
    %v4695 = vmul.f32 %v3159, %v4311
    %v4696 = vmul.f32 %v3160, %v4312
    %v4697 = vmul.f32 %v3161, %v4313
    %v4698 = vmul.f32 %v3162, %v4314
    %v4699 = vmul.f32 %v3163, %v4315
    %v4700 = vmul.f32 %v3164, %v4316
    %v4701 = vmul.f32 %v3165, %v4317
    %v4702 = vmul.f32 %v3166, %v4318
    %v4703 = vmul.f32 %v3167, %v4319
    %v4704 = vmul.f32 %v3168, %v4320
    %v4705 = vmul.f32 %v3169, %v4321
    %v4706 = vmul.f32 %v3170, %v4322
    %v4707 = vmul.f32 %v3171, %v4323
    %v4708 = vmul.f32 %v3172, %v4324
    %v4709 = vmul.f32 %v3173, %v4325
    %v4710 = vmul.f32 %v3174, %v4326
    %v4711 = vmul.f32 %v3175, %v4327
    %v4712 = vmul.f32 %v3176, %v4328
    %v4713 = vmul.f32 %v3177, %v4329
    %v4714 = vmul.f32 %v3178, %v4330
    %v4715 = vmul.f32 %v3179, %v4331
    %v4716 = vmul.f32 %v3180, %v4332
    %v4717 = vmul.f32 %v3181, %v4333
    %v4718 = vmul.f32 %v3182, %v4334
    %v4719 = vmul.f32 %v3183, %v4335
    %v4720 = vmul.f32 %v3184, %v4336
    %v4721 = vmul.f32 %v3185, %v4337
    %v4722 = vmul.f32 %v3186, %v4338
    %v4723 = vmul.f32 %v3187, %v4339
    %v4724 = vmul.f32 %v3188, %v4340
    %v4725 = vmul.f32 %v3189, %v4341
    %v4726 = vmul.f32 %v3190, %v4342
    %v4727 = vmul.f32 %v3191, %v4343
    %v4728 = vmul.f32 %v3192, %v4344
    %v4729 = vmul.f32 %v3193, %v4345
    %v4730 = vmul.f32 %v3194, %v4346
    %v4731 = vmul.f32 %v3195, %v4347
    %v4732 = vmul.f32 %v3196, %v4348
    %v4733 = vmul.f32 %v3197, %v4349
    %v4734 = vmul.f32 %v3198, %v4350
    %v4735 = vmul.f32 %v3199, %v4351
    %v4736 = vmul.f32 %v3200, %v4352
    %v4737 = vmul.f32 %v3201, %v4353
    %v4738 = vmul.f32 %v3202, %v4354
    %v4739 = vmul.f32 %v3203, %v4355
    %v4740 = vmul.f32 %v3204, %v4356
    %v4741 = vmul.f32 %v3205, %v4357
    %v4742 = vmul.f32 %v3206, %v4358
    %v4743 = vmul.f32 %v3207, %v4359
    %v4744 = vmul.f32 %v3208, %v4360
    %v4745 = vmul.f32 %v3209, %v4361
    %v4746 = vmul.f32 %v3210, %v4362
    %v4747 = vmul.f32 %v3211, %v4363
    %v4748 = vmul.f32 %v3212, %v4364
    %v4749 = vmul.f32 %v3213, %v4365
    %v4750 = vmul.f32 %v3214, %v4366
    %v4751 = vmul.f32 %v3215, %v4367
    %v4752 = vmul.f32 %v3216, %v4368
    %v4753 = vmul.f32 %v3217, %v4369
    %v4754 = vmul.f32 %v3218, %v4370
    %v4755 = vmul.f32 %v3219, %v4371
    %v4756 = vmul.f32 %v3220, %v4372
    %v4757 = vmul.f32 %v3221, %v4373
    %v4758 = vmul.f32 %v3222, %v4374
    %v4759 = vmul.f32 %v3223, %v4375
    %v4760 = vmul.f32 %v3224, %v4376
    %v4761 = vmul.f32 %v3225, %v4377
    %v4762 = vmul.f32 %v3226, %v4378
    %v4763 = vmul.f32 %v3227, %v4379
    %v4764 = vmul.f32 %v3228, %v4380
    %v4765 = vmul.f32 %v3229, %v4381
    %v4766 = vmul.f32 %v3230, %v4382
    %v4767 = vmul.f32 %v3231, %v4383
    %v4768 = vmul.f32 %v3232, %v4384
    %v4769 = vmul.f32 %v3233, %v4385
    %v4770 = vmul.f32 %v3234, %v4386
    %v4771 = vmul.f32 %v3235, %v4387
    %v4772 = vmul.f32 %v3236, %v4388
    %v4773 = vmul.f32 %v3237, %v4389
    %v4774 = vmul.f32 %v3238, %v4390
    %v4775 = vmul.f32 %v3239, %v4391
    %v4776 = vmul.f32 %v3240, %v4392
    %v4777 = vmul.f32 %v3241, %v4393
    %v4778 = vmul.f32 %v3242, %v4394
    %v4779 = vmul.f32 %v3243, %v4395
    %v4780 = vmul.f32 %v3244, %v4396
    %v4781 = vmul.f32 %v3245, %v4397
    %v4782 = vmul.f32 %v3246, %v4398
    %v4783 = vmul.f32 %v3247, %v4399
    %v4784 = vmul.f32 %v3248, %v4400
    %v4785 = vmul.f32 %v3249, %v4401
    %v4786 = vmul.f32 %v3250, %v4402
    %v4787 = vmul.f32 %v3251, %v4403
    %v4788 = vmul.f32 %v3252, %v4404
    %v4789 = vmul.f32 %v3253, %v4405
    %v4790 = vmul.f32 %v3254, %v4406
    %v4791 = vmul.f32 %v3255, %v4407
    %v4792 = vmul.f32 %v3256, %v4408
    %v4793 = vmul.f32 %v3257, %v4409
    %v4794 = vmul.f32 %v3258, %v4410
    %v4795 = vmul.f32 %v3259, %v4411
    %v4796 = vmul.f32 %v3260, %v4412
    %v4797 = vmul.f32 %v3261, %v4413
    %v4798 = vmul.f32 %v3262, %v4414
    %v4799 = vmul.f32 %v3263, %v4415
    %v4800 = vmul.f32 %v3264, %v4416
    %v4801 = vmul.f32 %v3265, %v4417
    %v4802 = vmul.f32 %v3266, %v4418
    %v4803 = vmul.f32 %v3267, %v4419
    %v4804 = vmul.f32 %v3268, %v4420
    %v4805 = vmul.f32 %v3269, %v4421
    %v4806 = vmul.f32 %v3270, %v4422
    %v4807 = vmul.f32 %v3271, %v4423
    %v4808 = vmul.f32 %v3272, %v4424
    %v4809 = vmul.f32 %v3273, %v4425
    %v4810 = vmul.f32 %v3274, %v4426
    %v4811 = vmul.f32 %v3275, %v4427
    %v4812 = vmul.f32 %v3276, %v4428
    %v4813 = vmul.f32 %v3277, %v4429
    %v4814 = vmul.f32 %v3278, %v4430
    %v4815 = vmul.f32 %v3279, %v4431
    %v4816 = vmul.f32 %v3280, %v4432
    %v4817 = vmul.f32 %v3281, %v4433
    %v4818 = vmul.f32 %v3282, %v4434
    %v4819 = vmul.f32 %v3283, %v4435
    %v4820 = vmul.f32 %v3284, %v4436
    %v4821 = vmul.f32 %v3285, %v4437
    %v4822 = vmul.f32 %v3286, %v4438
    %v4823 = vmul.f32 %v3287, %v4439
    %v4824 = vmul.f32 %v3288, %v4440
    %v4825 = vmul.f32 %v3289, %v4441
    %v4826 = vmul.f32 %v3290, %v4442
    %v4827 = vmul.f32 %v3291, %v4443
    %v4828 = vmul.f32 %v3292, %v4444
    %v4829 = vmul.f32 %v3293, %v4445
    %v4830 = vmul.f32 %v3294, %v4446
    %v4831 = vmul.f32 %v3295, %v4447
    %v4832 = vmul.f32 %v3296, %v4448
    %v4833 = vmul.f32 %v3297, %v4449
    %v4834 = vmul.f32 %v3298, %v4450
    %v4835 = vmul.f32 %v3299, %v4451
    %v4836 = vmul.f32 %v3300, %v4452
    %v4837 = vmul.f32 %v3301, %v4453
    %v4838 = vmul.f32 %v3302, %v4454
    %v4839 = vmul.f32 %v3303, %v4455
    %v4840 = vmul.f32 %v3304, %v4456
    %v4841 = vmul.f32 %v3305, %v4457
    %v4842 = vmul.f32 %v3306, %v4458
    %v4843 = vmul.f32 %v3307, %v4459
    %v4844 = vmul.f32 %v3308, %v4460
    %v4845 = vmul.f32 %v3309, %v4461
    %v4846 = vmul.f32 %v3310, %v4462
    %v4847 = vmul.f32 %v3311, %v4463
    %v4848 = vmul.f32 %v3312, %v4464
    %v4849 = vmul.f32 %v3313, %v4465
    %v4850 = vmul.f32 %v3314, %v4466
    %v4851 = vmul.f32 %v3315, %v4467
    %v4852 = vmul.f32 %v3316, %v4468
    %v4853 = vmul.f32 %v3317, %v4469
    %v4854 = vmul.f32 %v3318, %v4470
    %v4855 = vmul.f32 %v3319, %v4471
    %v4856 = vmul.f32 %v3320, %v4472
    %v4857 = vmul.f32 %v3321, %v4473
    %v4858 = vmul.f32 %v3322, %v4474
    %v4859 = vmul.f32 %v3323, %v4475
    %v4860 = vmul.f32 %v3324, %v4476
    %v4861 = vmul.f32 %v3325, %v4477
    %v4862 = vmul.f32 %v3326, %v4478
    %v4863 = vmul.f32 %v3327, %v4479
    %v4864 = vmul.f32 %v3328, %v4480
    %v4865 = vmul.f32 %v3329, %v4481
    %v4866 = vmul.f32 %v3330, %v4482
    %v4867 = vmul.f32 %v3331, %v4483
    %v4868 = vmul.f32 %v3332, %v4484
    %v4869 = vmul.f32 %v3333, %v4485
    %v4870 = vmul.f32 %v3334, %v4486
    %v4871 = vmul.f32 %v3335, %v4487
    %v4872 = vmul.f32 %v3336, %v4488
    %v4873 = vmul.f32 %v3337, %v4489
    %v4874 = vmul.f32 %v3338, %v4490
    %v4875 = vmul.f32 %v3339, %v4491
    %v4876 = vmul.f32 %v3340, %v4492
    %v4877 = vmul.f32 %v3341, %v4493
    %v4878 = vmul.f32 %v3342, %v4494
    %v4879 = vmul.f32 %v3343, %v4495
    %v4880 = vmul.f32 %v3344, %v4496
    %v4881 = vmul.f32 %v3345, %v4497
    %v4882 = vmul.f32 %v3346, %v4498
    %v4883 = vmul.f32 %v3347, %v4499
    %v4884 = vmul.f32 %v3348, %v4500
    %v4885 = vmul.f32 %v3349, %v4501
    %v4886 = vmul.f32 %v3350, %v4502
    %v4887 = vmul.f32 %v3351, %v4503
    %v4888 = vmul.f32 %v3352, %v4504
    %v4889 = vmul.f32 %v3353, %v4505
    %v4890 = vmul.f32 %v3354, %v4506
    %v4891 = vmul.f32 %v3355, %v4507
    %v4892 = vmul.f32 %v3356, %v4508
    %v4893 = vmul.f32 %v3357, %v4509
    %v4894 = vmul.f32 %v3358, %v4510
    %v4895 = vmul.f32 %v3359, %v4511
    %v4896 = vmul.f32 %v3360, %v4512
    %v4897 = vmul.f32 %v3361, %v4513
    %v4898 = vmul.f32 %v3362, %v4514
    %v4899 = vmul.f32 %v3363, %v4515
    %v4900 = vmul.f32 %v3364, %v4516
    %v4901 = vmul.f32 %v3365, %v4517
    %v4902 = vmul.f32 %v3366, %v4518
    %v4903 = vmul.f32 %v3367, %v4519
    %v4904 = vmul.f32 %v3368, %v4520
    %v4905 = vmul.f32 %v3369, %v4521
    %v4906 = vmul.f32 %v3370, %v4522
    %v4907 = vmul.f32 %v3371, %v4523
    %v4908 = vmul.f32 %v3372, %v4524
    %v4909 = vmul.f32 %v3373, %v4525
    %v4910 = vmul.f32 %v3374, %v4526
    %v4911 = vmul.f32 %v3375, %v4527
    %v4912 = vmul.f32 %v3376, %v4528
    %v4913 = vmul.f32 %v3377, %v4529
    %v4914 = vmul.f32 %v3378, %v4530
    %v4915 = vmul.f32 %v3379, %v4531
    %v4916 = vmul.f32 %v3380, %v4532
    %v4917 = vmul.f32 %v3381, %v4533
    %v4918 = vmul.f32 %v3382, %v4534
    %v4919 = vmul.f32 %v3383, %v4535
    %v4920 = vmul.f32 %v3384, %v4536
    %v4921 = vmul.f32 %v3385, %v4537
    %v4922 = vmul.f32 %v3386, %v4538
    %v4923 = vmul.f32 %v3387, %v4539
    %v4924 = vmul.f32 %v3388, %v4540
    %v4925 = vmul.f32 %v3389, %v4541
    %v4926 = vmul.f32 %v3390, %v4542
    %v4927 = vmul.f32 %v3391, %v4543
    %v4928 = vmul.f32 %v3392, %v4544
    %v4929 = vmul.f32 %v3393, %v4545
    %v4930 = vmul.f32 %v3394, %v4546
    %v4931 = vmul.f32 %v3395, %v4547
    %v4932 = vmul.f32 %v3396, %v4548
    %v4933 = vmul.f32 %v3397, %v4549
    %v4934 = vmul.f32 %v3398, %v4550
    %v4935 = vmul.f32 %v3399, %v4551
    %v4936 = vmul.f32 %v3400, %v4552
    %v4937 = vmul.f32 %v3401, %v4553
    %v4938 = vmul.f32 %v3402, %v4554
    %v4939 = vmul.f32 %v3403, %v4555
    %v4940 = vmul.f32 %v3404, %v4556
    %v4941 = vmul.f32 %v3405, %v4557
    %v4942 = vmul.f32 %v3406, %v4558
    %v4943 = vmul.f32 %v3407, %v4559
    %v4944 = vmul.f32 %v3408, %v4560
    %v4945 = vmul.f32 %v3409, %v4561
    %v4946 = vmul.f32 %v3410, %v4562
    %v4947 = vmul.f32 %v3411, %v4563
    %v4948 = vmul.f32 %v3412, %v4564
    %v4949 = vmul.f32 %v3413, %v4565
    %v4950 = vmul.f32 %v3414, %v4566
    %v4951 = vmul.f32 %v3415, %v4567
    %v4952 = vmul.f32 %v3416, %v4568
    %v4953 = vmul.f32 %v3417, %v4569
    %v4954 = vmul.f32 %v3418, %v4570
    %v4955 = vmul.f32 %v3419, %v4571
    %v4956 = vmul.f32 %v3420, %v4572
    %v4957 = vmul.f32 %v3421, %v4573
    %v4958 = vmul.f32 %v3422, %v4574
    %v4959 = vmul.f32 %v3423, %v4575
    %v4960 = vmul.f32 %v3424, %v4576
    %v4961 = vmul.f32 %v3425, %v4577
    %v4962 = vmul.f32 %v3426, %v4578
    %v4963 = vmul.f32 %v3427, %v4579
    %v4964 = vmul.f32 %v3428, %v4580
    %v4965 = vmul.f32 %v3429, %v4581
    %v4966 = vmul.f32 %v3430, %v4582
    %v4967 = vmul.f32 %v3431, %v4583
    %v4968 = vmul.f32 %v3432, %v4584
    %v4969 = vmul.f32 %v3433, %v4585
    %v4970 = vmul.f32 %v3434, %v4586
    %v4971 = vmul.f32 %v3435, %v4587
    %v4972 = vmul.f32 %v3436, %v4588
    %v4973 = vmul.f32 %v3437, %v4589
    %v4974 = vmul.f32 %v3438, %v4590
    %v4975 = vmul.f32 %v3439, %v4591
    %v4976 = vmul.f32 %v3440, %v4592
    %v4977 = vmul.f32 %v3441, %v4593
    %v4978 = vmul.f32 %v3442, %v4594
    %v4979 = vmul.f32 %v3443, %v4595
    %v4980 = vmul.f32 %v3444, %v4596
    %v4981 = vmul.f32 %v3445, %v4597
    %v4982 = vmul.f32 %v3446, %v4598
    %v4983 = vmul.f32 %v3447, %v4599
    %v4984 = vmul.f32 %v3448, %v4600
    %v4985 = vmul.f32 %v3449, %v4601
    %v4986 = vmul.f32 %v3450, %v4602
    %v4987 = vmul.f32 %v3451, %v4603
    %v4988 = vmul.f32 %v3452, %v4604
    %v4989 = vmul.f32 %v3453, %v4605
    %v4990 = vmul.f32 %v3454, %v4606
    %v4991 = vmul.f32 %v3455, %v4607
    %v4992 = vmul.f32 %v3456, %v4608
    %v4993 = vmul.f32 %v3457, %v4609
    %v4994 = vmul.f32 %v3458, %v4610
    %v4995 = vmul.f32 %v3459, %v4611
    %v4996 = vmul.f32 %v3460, %v4612
    %v4997 = vmul.f32 %v3461, %v4613
    %4998 = vst [vmem:[#allocation10] sm:$0xff] %v4614
    %4999 = vst [vmem:[#allocation10 + $0x8] sm:$0xff] %v4615
    %5000 = vst [vmem:[#allocation10 + $0x10] sm:$0xff] %v4616
    %5001 = vst [vmem:[#allocation10 + $0x18] sm:$0xff] %v4617
    %5002 = vst [vmem:[#allocation10 + $0x20] sm:$0xff] %v4618
    %5003 = vst [vmem:[#allocation10 + $0x28] sm:$0xff] %v4619
    %5004 = vst [vmem:[#allocation10 + $0x30] sm:$0xff] %v4620
    %5005 = vst [vmem:[#allocation10 + $0x38] sm:$0xff] %v4621
    %5006 = vst [vmem:[#allocation10 + $0x40] sm:$0xff] %v4622
    %5007 = vst [vmem:[#allocation10 + $0x48] sm:$0xff] %v4623
    %5008 = vst [vmem:[#allocation10 + $0x50] sm:$0xff] %v4624
    %5009 = vst [vmem:[#allocation10 + $0x58] sm:$0xff] %v4625
    %5010 = vst [vmem:[#allocation10 + $0x60] sm:$0xff] %v4626
    %5011 = vst [vmem:[#allocation10 + $0x68] sm:$0xff] %v4627
    %5012 = vst [vmem:[#allocation10 + $0x70] sm:$0xff] %v4628
    %5013 = vst [vmem:[#allocation10 + $0x78] sm:$0xff] %v4629
    %5014 = vst [vmem:[#allocation10 + $0x80] sm:$0xff] %v4630
    %5015 = vst [vmem:[#allocation10 + $0x88] sm:$0xff] %v4631
    %5016 = vst [vmem:[#allocation10 + $0x90] sm:$0xff] %v4632
    %5017 = vst [vmem:[#allocation10 + $0x98] sm:$0xff] %v4633
    %5018 = vst [vmem:[#allocation10 + $0xa0] sm:$0xff] %v4634
    %5019 = vst [vmem:[#allocation10 + $0xa8] sm:$0xff] %v4635
    %5020 = vst [vmem:[#allocation10 + $0xb0] sm:$0xff] %v4636
    %5021 = vst [vmem:[#allocation10 + $0xb8] sm:$0xff] %v4637
    %5022 = vst [vmem:[#allocation10 + $0xc0] sm:$0xff] %v4638
    %5023 = vst [vmem:[#allocation10 + $0xc8] sm:$0xff] %v4639
    %5024 = vst [vmem:[#allocation10 + $0xd0] sm:$0xff] %v4640
    %5025 = vst [vmem:[#allocation10 + $0xd8] sm:$0xff] %v4641
    %5026 = vst [vmem:[#allocation10 + $0xe0] sm:$0xff] %v4642
    %5027 = vst [vmem:[#allocation10 + $0xe8] sm:$0xff] %v4643
    %5028 = vst [vmem:[#allocation10 + $0xf0] sm:$0xff] %v4644
    %5029 = vst [vmem:[#allocation10 + $0xf8] sm:$0xff] %v4645
    %5030 = vst [vmem:[#allocation10 + $0x100] sm:$0xff] %v4646
    %5031 = vst [vmem:[#allocation10 + $0x108] sm:$0xff] %v4647
    %5032 = vst [vmem:[#allocation10 + $0x110] sm:$0xff] %v4648
    %5033 = vst [vmem:[#allocation10 + $0x118] sm:$0xff] %v4649
    %5034 = vst [vmem:[#allocation10 + $0x120] sm:$0xff] %v4650
    %5035 = vst [vmem:[#allocation10 + $0x128] sm:$0xff] %v4651
    %5036 = vst [vmem:[#allocation10 + $0x130] sm:$0xff] %v4652
    %5037 = vst [vmem:[#allocation10 + $0x138] sm:$0xff] %v4653
    %5038 = vst [vmem:[#allocation10 + $0x140] sm:$0xff] %v4654
    %5039 = vst [vmem:[#allocation10 + $0x148] sm:$0xff] %v4655
    %5040 = vst [vmem:[#allocation10 + $0x150] sm:$0xff] %v4656
    %5041 = vst [vmem:[#allocation10 + $0x158] sm:$0xff] %v4657
    %5042 = vst [vmem:[#allocation10 + $0x160] sm:$0xff] %v4658
    %5043 = vst [vmem:[#allocation10 + $0x168] sm:$0xff] %v4659
    %5044 = vst [vmem:[#allocation10 + $0x170] sm:$0xff] %v4660
    %5045 = vst [vmem:[#allocation10 + $0x178] sm:$0xff] %v4661
    %5046 = vst [vmem:[#allocation10 + $0x180] sm:$0xff] %v4662
    %5047 = vst [vmem:[#allocation10 + $0x188] sm:$0xff] %v4663
    %5048 = vst [vmem:[#allocation10 + $0x190] sm:$0xff] %v4664
    %5049 = vst [vmem:[#allocation10 + $0x198] sm:$0xff] %v4665
    %5050 = vst [vmem:[#allocation10 + $0x1a0] sm:$0xff] %v4666
    %5051 = vst [vmem:[#allocation10 + $0x1a8] sm:$0xff] %v4667
    %5052 = vst [vmem:[#allocation10 + $0x1b0] sm:$0xff] %v4668
    %5053 = vst [vmem:[#allocation10 + $0x1b8] sm:$0xff] %v4669
    %5054 = vst [vmem:[#allocation10 + $0x1c0] sm:$0xff] %v4670
    %5055 = vst [vmem:[#allocation10 + $0x1c8] sm:$0xff] %v4671
    %5056 = vst [vmem:[#allocation10 + $0x1d0] sm:$0xff] %v4672
    %5057 = vst [vmem:[#allocation10 + $0x1d8] sm:$0xff] %v4673
    %5058 = vst [vmem:[#allocation10 + $0x1e0] sm:$0xff] %v4674
    %5059 = vst [vmem:[#allocation10 + $0x1e8] sm:$0xff] %v4675
    %5060 = vst [vmem:[#allocation10 + $0x1f0] sm:$0xff] %v4676
    %5061 = vst [vmem:[#allocation10 + $0x1f8] sm:$0xff] %v4677
    %5062 = vst [vmem:[#allocation10 + $0x200] sm:$0xff] %v4678
    %5063 = vst [vmem:[#allocation10 + $0x208] sm:$0xff] %v4679
    %5064 = vst [vmem:[#allocation10 + $0x210] sm:$0xff] %v4680
    %5065 = vst [vmem:[#allocation10 + $0x218] sm:$0xff] %v4681
    %5066 = vst [vmem:[#allocation10 + $0x220] sm:$0xff] %v4682
    %5067 = vst [vmem:[#allocation10 + $0x228] sm:$0xff] %v4683
    %5068 = vst [vmem:[#allocation10 + $0x230] sm:$0xff] %v4684
    %5069 = vst [vmem:[#allocation10 + $0x238] sm:$0xff] %v4685
    %5070 = vst [vmem:[#allocation10 + $0x240] sm:$0xff] %v4686
    %5071 = vst [vmem:[#allocation10 + $0x248] sm:$0xff] %v4687
    %5072 = vst [vmem:[#allocation10 + $0x250] sm:$0xff] %v4688
    %5073 = vst [vmem:[#allocation10 + $0x258] sm:$0xff] %v4689
    %5074 = vst [vmem:[#allocation10 + $0x260] sm:$0xff] %v4690
    %5075 = vst [vmem:[#allocation10 + $0x268] sm:$0xff] %v4691
    %5076 = vst [vmem:[#allocation10 + $0x270] sm:$0xff] %v4692
    %5077 = vst [vmem:[#allocation10 + $0x278] sm:$0xff] %v4693
    %5078 = vst [vmem:[#allocation10 + $0x280] sm:$0xff] %v4694
    %5079 = vst [vmem:[#allocation10 + $0x288] sm:$0xff] %v4695
    %5080 = vst [vmem:[#allocation10 + $0x290] sm:$0xff] %v4696
    %5081 = vst [vmem:[#allocation10 + $0x298] sm:$0xff] %v4697
    %5082 = vst [vmem:[#allocation10 + $0x2a0] sm:$0xff] %v4698
    %5083 = vst [vmem:[#allocation10 + $0x2a8] sm:$0xff] %v4699
    %5084 = vst [vmem:[#allocation10 + $0x2b0] sm:$0xff] %v4700
    %5085 = vst [vmem:[#allocation10 + $0x2b8] sm:$0xff] %v4701
    %5086 = vst [vmem:[#allocation10 + $0x2c0] sm:$0xff] %v4702
    %5087 = vst [vmem:[#allocation10 + $0x2c8] sm:$0xff] %v4703
    %5088 = vst [vmem:[#allocation10 + $0x2d0] sm:$0xff] %v4704
    %5089 = vst [vmem:[#allocation10 + $0x2d8] sm:$0xff] %v4705
    %5090 = vst [vmem:[#allocation10 + $0x2e0] sm:$0xff] %v4706
    %5091 = vst [vmem:[#allocation10 + $0x2e8] sm:$0xff] %v4707
    %5092 = vst [vmem:[#allocation10 + $0x2f0] sm:$0xff] %v4708
    %5093 = vst [vmem:[#allocation10 + $0x2f8] sm:$0xff] %v4709
    %5094 = vst [vmem:[#allocation10 + $0x300] sm:$0xff] %v4710
    %5095 = vst [vmem:[#allocation10 + $0x308] sm:$0xff] %v4711
    %5096 = vst [vmem:[#allocation10 + $0x310] sm:$0xff] %v4712
    %5097 = vst [vmem:[#allocation10 + $0x318] sm:$0xff] %v4713
    %5098 = vst [vmem:[#allocation10 + $0x320] sm:$0xff] %v4714
    %5099 = vst [vmem:[#allocation10 + $0x328] sm:$0xff] %v4715
    %5100 = vst [vmem:[#allocation10 + $0x330] sm:$0xff] %v4716
    %5101 = vst [vmem:[#allocation10 + $0x338] sm:$0xff] %v4717
    %5102 = vst [vmem:[#allocation10 + $0x340] sm:$0xff] %v4718
    %5103 = vst [vmem:[#allocation10 + $0x348] sm:$0xff] %v4719
    %5104 = vst [vmem:[#allocation10 + $0x350] sm:$0xff] %v4720
    %5105 = vst [vmem:[#allocation10 + $0x358] sm:$0xff] %v4721
    %5106 = vst [vmem:[#allocation10 + $0x360] sm:$0xff] %v4722
    %5107 = vst [vmem:[#allocation10 + $0x368] sm:$0xff] %v4723
    %5108 = vst [vmem:[#allocation10 + $0x370] sm:$0xff] %v4724
    %5109 = vst [vmem:[#allocation10 + $0x378] sm:$0xff] %v4725
    %5110 = vst [vmem:[#allocation10 + $0x380] sm:$0xff] %v4726
    %5111 = vst [vmem:[#allocation10 + $0x388] sm:$0xff] %v4727
    %5112 = vst [vmem:[#allocation10 + $0x390] sm:$0xff] %v4728
    %5113 = vst [vmem:[#allocation10 + $0x398] sm:$0xff] %v4729
    %5114 = vst [vmem:[#allocation10 + $0x3a0] sm:$0xff] %v4730
    %5115 = vst [vmem:[#allocation10 + $0x3a8] sm:$0xff] %v4731
    %5116 = vst [vmem:[#allocation10 + $0x3b0] sm:$0xff] %v4732
    %5117 = vst [vmem:[#allocation10 + $0x3b8] sm:$0xff] %v4733
    %5118 = vst [vmem:[#allocation10 + $0x3c0] sm:$0xff] %v4734
    %5119 = vst [vmem:[#allocation10 + $0x3c8] sm:$0xff] %v4735
    %5120 = vst [vmem:[#allocation10 + $0x3d0] sm:$0xff] %v4736
    %5121 = vst [vmem:[#allocation10 + $0x3d8] sm:$0xff] %v4737
    %5122 = vst [vmem:[#allocation10 + $0x3e0] sm:$0xff] %v4738
    %5123 = vst [vmem:[#allocation10 + $0x3e8] sm:$0xff] %v4739
    %5124 = vst [vmem:[#allocation10 + $0x3f0] sm:$0xff] %v4740
    %5125 = vst [vmem:[#allocation10 + $0x3f8] sm:$0xff] %v4741
    %5126 = vst [vmem:[#allocation10 + $0x400] sm:$0xff] %v4742
    %5127 = vst [vmem:[#allocation10 + $0x408] sm:$0xff] %v4743
    %5128 = vst [vmem:[#allocation10 + $0x410] sm:$0xff] %v4744
    %5129 = vst [vmem:[#allocation10 + $0x418] sm:$0xff] %v4745
    %5130 = vst [vmem:[#allocation10 + $0x420] sm:$0xff] %v4746
    %5131 = vst [vmem:[#allocation10 + $0x428] sm:$0xff] %v4747
    %5132 = vst [vmem:[#allocation10 + $0x430] sm:$0xff] %v4748
    %5133 = vst [vmem:[#allocation10 + $0x438] sm:$0xff] %v4749
    %5134 = vst [vmem:[#allocation10 + $0x440] sm:$0xff] %v4750
    %5135 = vst [vmem:[#allocation10 + $0x448] sm:$0xff] %v4751
    %5136 = vst [vmem:[#allocation10 + $0x450] sm:$0xff] %v4752
    %5137 = vst [vmem:[#allocation10 + $0x458] sm:$0xff] %v4753
    %5138 = vst [vmem:[#allocation10 + $0x460] sm:$0xff] %v4754
    %5139 = vst [vmem:[#allocation10 + $0x468] sm:$0xff] %v4755
    %5140 = vst [vmem:[#allocation10 + $0x470] sm:$0xff] %v4756
    %5141 = vst [vmem:[#allocation10 + $0x478] sm:$0xff] %v4757
    %5142 = vst [vmem:[#allocation10 + $0x480] sm:$0xff] %v4758
    %5143 = vst [vmem:[#allocation10 + $0x488] sm:$0xff] %v4759
    %5144 = vst [vmem:[#allocation10 + $0x490] sm:$0xff] %v4760
    %5145 = vst [vmem:[#allocation10 + $0x498] sm:$0xff] %v4761
    %5146 = vst [vmem:[#allocation10 + $0x4a0] sm:$0xff] %v4762
    %5147 = vst [vmem:[#allocation10 + $0x4a8] sm:$0xff] %v4763
    %5148 = vst [vmem:[#allocation10 + $0x4b0] sm:$0xff] %v4764
    %5149 = vst [vmem:[#allocation10 + $0x4b8] sm:$0xff] %v4765
    %5150 = vst [vmem:[#allocation10 + $0x4c0] sm:$0xff] %v4766
    %5151 = vst [vmem:[#allocation10 + $0x4c8] sm:$0xff] %v4767
    %5152 = vst [vmem:[#allocation10 + $0x4d0] sm:$0xff] %v4768
    %5153 = vst [vmem:[#allocation10 + $0x4d8] sm:$0xff] %v4769
    %5154 = vst [vmem:[#allocation10 + $0x4e0] sm:$0xff] %v4770
    %5155 = vst [vmem:[#allocation10 + $0x4e8] sm:$0xff] %v4771
    %5156 = vst [vmem:[#allocation10 + $0x4f0] sm:$0xff] %v4772
    %5157 = vst [vmem:[#allocation10 + $0x4f8] sm:$0xff] %v4773
    %5158 = vst [vmem:[#allocation10 + $0x500] sm:$0xff] %v4774
    %5159 = vst [vmem:[#allocation10 + $0x508] sm:$0xff] %v4775
    %5160 = vst [vmem:[#allocation10 + $0x510] sm:$0xff] %v4776
    %5161 = vst [vmem:[#allocation10 + $0x518] sm:$0xff] %v4777
    %5162 = vst [vmem:[#allocation10 + $0x520] sm:$0xff] %v4778
    %5163 = vst [vmem:[#allocation10 + $0x528] sm:$0xff] %v4779
    %5164 = vst [vmem:[#allocation10 + $0x530] sm:$0xff] %v4780
    %5165 = vst [vmem:[#allocation10 + $0x538] sm:$0xff] %v4781
    %5166 = vst [vmem:[#allocation10 + $0x540] sm:$0xff] %v4782
    %5167 = vst [vmem:[#allocation10 + $0x548] sm:$0xff] %v4783
    %5168 = vst [vmem:[#allocation10 + $0x550] sm:$0xff] %v4784
    %5169 = vst [vmem:[#allocation10 + $0x558] sm:$0xff] %v4785
    %5170 = vst [vmem:[#allocation10 + $0x560] sm:$0xff] %v4786
    %5171 = vst [vmem:[#allocation10 + $0x568] sm:$0xff] %v4787
    %5172 = vst [vmem:[#allocation10 + $0x570] sm:$0xff] %v4788
    %5173 = vst [vmem:[#allocation10 + $0x578] sm:$0xff] %v4789
    %5174 = vst [vmem:[#allocation10 + $0x580] sm:$0xff] %v4790
    %5175 = vst [vmem:[#allocation10 + $0x588] sm:$0xff] %v4791
    %5176 = vst [vmem:[#allocation10 + $0x590] sm:$0xff] %v4792
    %5177 = vst [vmem:[#allocation10 + $0x598] sm:$0xff] %v4793
    %5178 = vst [vmem:[#allocation10 + $0x5a0] sm:$0xff] %v4794
    %5179 = vst [vmem:[#allocation10 + $0x5a8] sm:$0xff] %v4795
    %5180 = vst [vmem:[#allocation10 + $0x5b0] sm:$0xff] %v4796
    %5181 = vst [vmem:[#allocation10 + $0x5b8] sm:$0xff] %v4797
    %5182 = vst [vmem:[#allocation10 + $0x5c0] sm:$0xff] %v4798
    %5183 = vst [vmem:[#allocation10 + $0x5c8] sm:$0xff] %v4799
    %5184 = vst [vmem:[#allocation10 + $0x5d0] sm:$0xff] %v4800
    %5185 = vst [vmem:[#allocation10 + $0x5d8] sm:$0xff] %v4801
    %5186 = vst [vmem:[#allocation10 + $0x5e0] sm:$0xff] %v4802
    %5187 = vst [vmem:[#allocation10 + $0x5e8] sm:$0xff] %v4803
    %5188 = vst [vmem:[#allocation10 + $0x5f0] sm:$0xff] %v4804
    %5189 = vst [vmem:[#allocation10 + $0x5f8] sm:$0xff] %v4805
    %5190 = vst [vmem:[#allocation10 + $0x600] sm:$0xff] %v4806
    %5191 = vst [vmem:[#allocation10 + $0x608] sm:$0xff] %v4807
    %5192 = vst [vmem:[#allocation10 + $0x610] sm:$0xff] %v4808
    %5193 = vst [vmem:[#allocation10 + $0x618] sm:$0xff] %v4809
    %5194 = vst [vmem:[#allocation10 + $0x620] sm:$0xff] %v4810
    %5195 = vst [vmem:[#allocation10 + $0x628] sm:$0xff] %v4811
    %5196 = vst [vmem:[#allocation10 + $0x630] sm:$0xff] %v4812
    %5197 = vst [vmem:[#allocation10 + $0x638] sm:$0xff] %v4813
    %5198 = vst [vmem:[#allocation10 + $0x640] sm:$0xff] %v4814
    %5199 = vst [vmem:[#allocation10 + $0x648] sm:$0xff] %v4815
    %5200 = vst [vmem:[#allocation10 + $0x650] sm:$0xff] %v4816
    %5201 = vst [vmem:[#allocation10 + $0x658] sm:$0xff] %v4817
    %5202 = vst [vmem:[#allocation10 + $0x660] sm:$0xff] %v4818
    %5203 = vst [vmem:[#allocation10 + $0x668] sm:$0xff] %v4819
    %5204 = vst [vmem:[#allocation10 + $0x670] sm:$0xff] %v4820
    %5205 = vst [vmem:[#allocation10 + $0x678] sm:$0xff] %v4821
    %5206 = vst [vmem:[#allocation10 + $0x680] sm:$0xff] %v4822
    %5207 = vst [vmem:[#allocation10 + $0x688] sm:$0xff] %v4823
    %5208 = vst [vmem:[#allocation10 + $0x690] sm:$0xff] %v4824
    %5209 = vst [vmem:[#allocation10 + $0x698] sm:$0xff] %v4825
    %5210 = vst [vmem:[#allocation10 + $0x6a0] sm:$0xff] %v4826
    %5211 = vst [vmem:[#allocation10 + $0x6a8] sm:$0xff] %v4827
    %5212 = vst [vmem:[#allocation10 + $0x6b0] sm:$0xff] %v4828
    %5213 = vst [vmem:[#allocation10 + $0x6b8] sm:$0xff] %v4829
    %5214 = vst [vmem:[#allocation10 + $0x6c0] sm:$0xff] %v4830
    %5215 = vst [vmem:[#allocation10 + $0x6c8] sm:$0xff] %v4831
    %5216 = vst [vmem:[#allocation10 + $0x6d0] sm:$0xff] %v4832
    %5217 = vst [vmem:[#allocation10 + $0x6d8] sm:$0xff] %v4833
    %5218 = vst [vmem:[#allocation10 + $0x6e0] sm:$0xff] %v4834
    %5219 = vst [vmem:[#allocation10 + $0x6e8] sm:$0xff] %v4835
    %5220 = vst [vmem:[#allocation10 + $0x6f0] sm:$0xff] %v4836
    %5221 = vst [vmem:[#allocation10 + $0x6f8] sm:$0xff] %v4837
    %5222 = vst [vmem:[#allocation10 + $0x700] sm:$0xff] %v4838
    %5223 = vst [vmem:[#allocation10 + $0x708] sm:$0xff] %v4839
    %5224 = vst [vmem:[#allocation10 + $0x710] sm:$0xff] %v4840
    %5225 = vst [vmem:[#allocation10 + $0x718] sm:$0xff] %v4841
    %5226 = vst [vmem:[#allocation10 + $0x720] sm:$0xff] %v4842
    %5227 = vst [vmem:[#allocation10 + $0x728] sm:$0xff] %v4843
    %5228 = vst [vmem:[#allocation10 + $0x730] sm:$0xff] %v4844
    %5229 = vst [vmem:[#allocation10 + $0x738] sm:$0xff] %v4845
    %5230 = vst [vmem:[#allocation10 + $0x740] sm:$0xff] %v4846
    %5231 = vst [vmem:[#allocation10 + $0x748] sm:$0xff] %v4847
    %5232 = vst [vmem:[#allocation10 + $0x750] sm:$0xff] %v4848
    %5233 = vst [vmem:[#allocation10 + $0x758] sm:$0xff] %v4849
    %5234 = vst [vmem:[#allocation10 + $0x760] sm:$0xff] %v4850
    %5235 = vst [vmem:[#allocation10 + $0x768] sm:$0xff] %v4851
    %5236 = vst [vmem:[#allocation10 + $0x770] sm:$0xff] %v4852
    %5237 = vst [vmem:[#allocation10 + $0x778] sm:$0xff] %v4853
    %5238 = vst [vmem:[#allocation10 + $0x780] sm:$0xff] %v4854
    %5239 = vst [vmem:[#allocation10 + $0x788] sm:$0xff] %v4855
    %5240 = vst [vmem:[#allocation10 + $0x790] sm:$0xff] %v4856
    %5241 = vst [vmem:[#allocation10 + $0x798] sm:$0xff] %v4857
    %5242 = vst [vmem:[#allocation10 + $0x7a0] sm:$0xff] %v4858
    %5243 = vst [vmem:[#allocation10 + $0x7a8] sm:$0xff] %v4859
    %5244 = vst [vmem:[#allocation10 + $0x7b0] sm:$0xff] %v4860
    %5245 = vst [vmem:[#allocation10 + $0x7b8] sm:$0xff] %v4861
    %5246 = vst [vmem:[#allocation10 + $0x7c0] sm:$0xff] %v4862
    %5247 = vst [vmem:[#allocation10 + $0x7c8] sm:$0xff] %v4863
    %5248 = vst [vmem:[#allocation10 + $0x7d0] sm:$0xff] %v4864
    %5249 = vst [vmem:[#allocation10 + $0x7d8] sm:$0xff] %v4865
    %5250 = vst [vmem:[#allocation10 + $0x7e0] sm:$0xff] %v4866
    %5251 = vst [vmem:[#allocation10 + $0x7e8] sm:$0xff] %v4867
    %5252 = vst [vmem:[#allocation10 + $0x7f0] sm:$0xff] %v4868
    %5253 = vst [vmem:[#allocation10 + $0x7f8] sm:$0xff] %v4869
    %5254 = vst [vmem:[#allocation10 + $0x800] sm:$0xff] %v4870
    %5255 = vst [vmem:[#allocation10 + $0x808] sm:$0xff] %v4871
    %5256 = vst [vmem:[#allocation10 + $0x810] sm:$0xff] %v4872
    %5257 = vst [vmem:[#allocation10 + $0x818] sm:$0xff] %v4873
    %5258 = vst [vmem:[#allocation10 + $0x820] sm:$0xff] %v4874
    %5259 = vst [vmem:[#allocation10 + $0x828] sm:$0xff] %v4875
    %5260 = vst [vmem:[#allocation10 + $0x830] sm:$0xff] %v4876
    %5261 = vst [vmem:[#allocation10 + $0x838] sm:$0xff] %v4877
    %5262 = vst [vmem:[#allocation10 + $0x840] sm:$0xff] %v4878
    %5263 = vst [vmem:[#allocation10 + $0x848] sm:$0xff] %v4879
    %5264 = vst [vmem:[#allocation10 + $0x850] sm:$0xff] %v4880
    %5265 = vst [vmem:[#allocation10 + $0x858] sm:$0xff] %v4881
    %5266 = vst [vmem:[#allocation10 + $0x860] sm:$0xff] %v4882
    %5267 = vst [vmem:[#allocation10 + $0x868] sm:$0xff] %v4883
    %5268 = vst [vmem:[#allocation10 + $0x870] sm:$0xff] %v4884
    %5269 = vst [vmem:[#allocation10 + $0x878] sm:$0xff] %v4885
    %5270 = vst [vmem:[#allocation10 + $0x880] sm:$0xff] %v4886
    %5271 = vst [vmem:[#allocation10 + $0x888] sm:$0xff] %v4887
    %5272 = vst [vmem:[#allocation10 + $0x890] sm:$0xff] %v4888
    %5273 = vst [vmem:[#allocation10 + $0x898] sm:$0xff] %v4889
    %5274 = vst [vmem:[#allocation10 + $0x8a0] sm:$0xff] %v4890
    %5275 = vst [vmem:[#allocation10 + $0x8a8] sm:$0xff] %v4891
    %5276 = vst [vmem:[#allocation10 + $0x8b0] sm:$0xff] %v4892
    %5277 = vst [vmem:[#allocation10 + $0x8b8] sm:$0xff] %v4893
    %5278 = vst [vmem:[#allocation10 + $0x8c0] sm:$0xff] %v4894
    %5279 = vst [vmem:[#allocation10 + $0x8c8] sm:$0xff] %v4895
    %5280 = vst [vmem:[#allocation10 + $0x8d0] sm:$0xff] %v4896
    %5281 = vst [vmem:[#allocation10 + $0x8d8] sm:$0xff] %v4897
    %5282 = vst [vmem:[#allocation10 + $0x8e0] sm:$0xff] %v4898
    %5283 = vst [vmem:[#allocation10 + $0x8e8] sm:$0xff] %v4899
    %5284 = vst [vmem:[#allocation10 + $0x8f0] sm:$0xff] %v4900
    %5285 = vst [vmem:[#allocation10 + $0x8f8] sm:$0xff] %v4901
    %5286 = vst [vmem:[#allocation10 + $0x900] sm:$0xff] %v4902
    %5287 = vst [vmem:[#allocation10 + $0x908] sm:$0xff] %v4903
    %5288 = vst [vmem:[#allocation10 + $0x910] sm:$0xff] %v4904
    %5289 = vst [vmem:[#allocation10 + $0x918] sm:$0xff] %v4905
    %5290 = vst [vmem:[#allocation10 + $0x920] sm:$0xff] %v4906
    %5291 = vst [vmem:[#allocation10 + $0x928] sm:$0xff] %v4907
    %5292 = vst [vmem:[#allocation10 + $0x930] sm:$0xff] %v4908
    %5293 = vst [vmem:[#allocation10 + $0x938] sm:$0xff] %v4909
    %5294 = vst [vmem:[#allocation10 + $0x940] sm:$0xff] %v4910
    %5295 = vst [vmem:[#allocation10 + $0x948] sm:$0xff] %v4911
    %5296 = vst [vmem:[#allocation10 + $0x950] sm:$0xff] %v4912
    %5297 = vst [vmem:[#allocation10 + $0x958] sm:$0xff] %v4913
    %5298 = vst [vmem:[#allocation10 + $0x960] sm:$0xff] %v4914
    %5299 = vst [vmem:[#allocation10 + $0x968] sm:$0xff] %v4915
    %5300 = vst [vmem:[#allocation10 + $0x970] sm:$0xff] %v4916
    %5301 = vst [vmem:[#allocation10 + $0x978] sm:$0xff] %v4917
    %5302 = vst [vmem:[#allocation10 + $0x980] sm:$0xff] %v4918
    %5303 = vst [vmem:[#allocation10 + $0x988] sm:$0xff] %v4919
    %5304 = vst [vmem:[#allocation10 + $0x990] sm:$0xff] %v4920
    %5305 = vst [vmem:[#allocation10 + $0x998] sm:$0xff] %v4921
    %5306 = vst [vmem:[#allocation10 + $0x9a0] sm:$0xff] %v4922
    %5307 = vst [vmem:[#allocation10 + $0x9a8] sm:$0xff] %v4923
    %5308 = vst [vmem:[#allocation10 + $0x9b0] sm:$0xff] %v4924
    %5309 = vst [vmem:[#allocation10 + $0x9b8] sm:$0xff] %v4925
    %5310 = vst [vmem:[#allocation10 + $0x9c0] sm:$0xff] %v4926
    %5311 = vst [vmem:[#allocation10 + $0x9c8] sm:$0xff] %v4927
    %5312 = vst [vmem:[#allocation10 + $0x9d0] sm:$0xff] %v4928
    %5313 = vst [vmem:[#allocation10 + $0x9d8] sm:$0xff] %v4929
    %5314 = vst [vmem:[#allocation10 + $0x9e0] sm:$0xff] %v4930
    %5315 = vst [vmem:[#allocation10 + $0x9e8] sm:$0xff] %v4931
    %5316 = vst [vmem:[#allocation10 + $0x9f0] sm:$0xff] %v4932
    %5317 = vst [vmem:[#allocation10 + $0x9f8] sm:$0xff] %v4933
    %5318 = vst [vmem:[#allocation10 + $0xa00] sm:$0xff] %v4934
    %5319 = vst [vmem:[#allocation10 + $0xa08] sm:$0xff] %v4935
    %5320 = vst [vmem:[#allocation10 + $0xa10] sm:$0xff] %v4936
    %5321 = vst [vmem:[#allocation10 + $0xa18] sm:$0xff] %v4937
    %5322 = vst [vmem:[#allocation10 + $0xa20] sm:$0xff] %v4938
    %5323 = vst [vmem:[#allocation10 + $0xa28] sm:$0xff] %v4939
    %5324 = vst [vmem:[#allocation10 + $0xa30] sm:$0xff] %v4940
    %5325 = vst [vmem:[#allocation10 + $0xa38] sm:$0xff] %v4941
    %5326 = vst [vmem:[#allocation10 + $0xa40] sm:$0xff] %v4942
    %5327 = vst [vmem:[#allocation10 + $0xa48] sm:$0xff] %v4943
    %5328 = vst [vmem:[#allocation10 + $0xa50] sm:$0xff] %v4944
    %5329 = vst [vmem:[#allocation10 + $0xa58] sm:$0xff] %v4945
    %5330 = vst [vmem:[#allocation10 + $0xa60] sm:$0xff] %v4946
    %5331 = vst [vmem:[#allocation10 + $0xa68] sm:$0xff] %v4947
    %5332 = vst [vmem:[#allocation10 + $0xa70] sm:$0xff] %v4948
    %5333 = vst [vmem:[#allocation10 + $0xa78] sm:$0xff] %v4949
    %5334 = vst [vmem:[#allocation10 + $0xa80] sm:$0xff] %v4950
    %5335 = vst [vmem:[#allocation10 + $0xa88] sm:$0xff] %v4951
    %5336 = vst [vmem:[#allocation10 + $0xa90] sm:$0xff] %v4952
    %5337 = vst [vmem:[#allocation10 + $0xa98] sm:$0xff] %v4953
    %5338 = vst [vmem:[#allocation10 + $0xaa0] sm:$0xff] %v4954
    %5339 = vst [vmem:[#allocation10 + $0xaa8] sm:$0xff] %v4955
    %5340 = vst [vmem:[#allocation10 + $0xab0] sm:$0xff] %v4956
    %5341 = vst [vmem:[#allocation10 + $0xab8] sm:$0xff] %v4957
    %5342 = vst [vmem:[#allocation10 + $0xac0] sm:$0xff] %v4958
    %5343 = vst [vmem:[#allocation10 + $0xac8] sm:$0xff] %v4959
    %5344 = vst [vmem:[#allocation10 + $0xad0] sm:$0xff] %v4960
    %5345 = vst [vmem:[#allocation10 + $0xad8] sm:$0xff] %v4961
    %5346 = vst [vmem:[#allocation10 + $0xae0] sm:$0xff] %v4962
    %5347 = vst [vmem:[#allocation10 + $0xae8] sm:$0xff] %v4963
    %5348 = vst [vmem:[#allocation10 + $0xaf0] sm:$0xff] %v4964
    %5349 = vst [vmem:[#allocation10 + $0xaf8] sm:$0xff] %v4965
    %5350 = vst [vmem:[#allocation10 + $0xb00] sm:$0xff] %v4966
    %5351 = vst [vmem:[#allocation10 + $0xb08] sm:$0xff] %v4967
    %5352 = vst [vmem:[#allocation10 + $0xb10] sm:$0xff] %v4968
    %5353 = vst [vmem:[#allocation10 + $0xb18] sm:$0xff] %v4969
    %5354 = vst [vmem:[#allocation10 + $0xb20] sm:$0xff] %v4970
    %5355 = vst [vmem:[#allocation10 + $0xb28] sm:$0xff] %v4971
    %5356 = vst [vmem:[#allocation10 + $0xb30] sm:$0xff] %v4972
    %5357 = vst [vmem:[#allocation10 + $0xb38] sm:$0xff] %v4973
    %5358 = vst [vmem:[#allocation10 + $0xb40] sm:$0xff] %v4974
    %5359 = vst [vmem:[#allocation10 + $0xb48] sm:$0xff] %v4975
    %5360 = vst [vmem:[#allocation10 + $0xb50] sm:$0xff] %v4976
    %5361 = vst [vmem:[#allocation10 + $0xb58] sm:$0xff] %v4977
    %5362 = vst [vmem:[#allocation10 + $0xb60] sm:$0xff] %v4978
    %5363 = vst [vmem:[#allocation10 + $0xb68] sm:$0xff] %v4979
    %5364 = vst [vmem:[#allocation10 + $0xb70] sm:$0xff] %v4980
    %5365 = vst [vmem:[#allocation10 + $0xb78] sm:$0xff] %v4981
    %5366 = vst [vmem:[#allocation10 + $0xb80] sm:$0xff] %v4982
    %5367 = vst [vmem:[#allocation10 + $0xb88] sm:$0xff] %v4983
    %5368 = vst [vmem:[#allocation10 + $0xb90] sm:$0xff] %v4984
    %5369 = vst [vmem:[#allocation10 + $0xb98] sm:$0xff] %v4985
    %5370 = vst [vmem:[#allocation10 + $0xba0] sm:$0xff] %v4986
    %5371 = vst [vmem:[#allocation10 + $0xba8] sm:$0xff] %v4987
    %5372 = vst [vmem:[#allocation10 + $0xbb0] sm:$0xff] %v4988
    %5373 = vst [vmem:[#allocation10 + $0xbb8] sm:$0xff] %v4989
    %5374 = vst [vmem:[#allocation10 + $0xbc0] sm:$0xff] %v4990
    %5375 = vst [vmem:[#allocation10 + $0xbc8] sm:$0xff] %v4991
    %5376 = vst [vmem:[#allocation10 + $0xbd0] sm:$0xff] %v4992
    %5377 = vst [vmem:[#allocation10 + $0xbd8] sm:$0xff] %v4993
    %5378 = vst [vmem:[#allocation10 + $0xbe0] sm:$0xff] %v4994
    %5379 = vst [vmem:[#allocation10 + $0xbe8] sm:$0xff] %v4995
    %5380 = vst [vmem:[#allocation10 + $0xbf0] sm:$0xff] %v4996
    %5381 = vst [vmem:[#allocation10 + $0xbf8] sm:$0xff] %v4997
    // Predicated region
    $region34: #{tpu_custom_call.1} parent=1 // pred_check
      _
    $region35: #{tpu_custom_call.1} parent=1 // pred_check_branch
      %5383 = sbr.rel (0) target = $region37
    $region36: #{tpu_custom_call.1} parent=1 // pred_region
      %s5385 = ssub.s32 49152, 49152
      %5386 = vsyncadd [#allocation4], %s5385
      %s5387 = sshll.u32 [#allocation10], 4
      %s5388 = int_to_ptr.vmem [resolvable:$true] %s5387
      %5393 = dma.vmem_to_hbm [thread:$0]  %s5388, 49152, %s4, [#allocation4], 1024, 1024, 64
    $region37: #{tpu_custom_call.1} parent=1 // pred_fallthru
      _
    // Predicated region
    $region38: #{tpu_custom_call.1} parent=1 // pred_check
      _
    $region39: #{tpu_custom_call.1} parent=1 // pred_check_branch
      %5395 = sbr.rel (0) target = $region41
    $region40: #{tpu_custom_call.1} parent=1 // pred_region
      %5396 = dma.done [#allocation4], 49152
    $region41: #{tpu_custom_call.1} parent=1 // pred_fallthru
      _
    %5397 = vsyncpa [#allocation3], 1
    %5398 = vsyncpa [#allocation6], 1
    %5399 = vsyncpa [#allocation9], 1
    %5400 = vsyncpa [#allocation4], 1

</llo_original>
